<compile_context>
chip_gen: v7x
topology: tpu7x:2x2x1
jax: 0.10.0
libtpu: 0.0.40
codegen_flags: <defaults>
</compile_context>

<pallas_src>
import functools
import math

import jax
import jax.numpy as jnp
from jax.experimental import pallas as pl
from jax.experimental.pallas import tpu as pltpu


# ----------------------------- kernel helpers ------------------------------

def _layernorm_onepass(x, gamma, beta, eps=1e-5):
    """Single pass over x: var = E[x^2] - E[x]^2 (saves one full VPU pass)."""
    mean = jnp.mean(x, axis=-1, keepdims=True)
    mean_sq = jnp.mean(x * x, axis=-1, keepdims=True)
    var = mean_sq - mean * mean
    return (x - mean) * jax.lax.rsqrt(var + eps) * gamma + beta


def transformer_kernel(
    x_ref,                    # (Bt, S, D) activations, batch-major rows, f32
    g1_ref, b1_ref,           # LayerNorm1 gamma / beta            (1, D)  f32
    wqkv_ref, bqkv_ref,       # attention in_proj   (D, 3D) cdt,   (1, 3D) f32
    wo_ref, bo_ref,           # attention out_proj  (D, D)  cdt,   (1, D)  f32
    g2_ref, b2_ref,           # LayerNorm2 gamma / beta            (1, D)  f32
    w1_ref, bm1_ref,          # MLP linear1         (D, 4D) cdt,   (1, 4D) f32
    w2_ref, bm2_ref,          # MLP linear2         (4D, D) cdt,   (1, D)  f32
    o_ref,                    # (Bt, S, D) f32
    ctx_ref,                  # (Bt*S, D) f32 VMEM scratch: per-head ctx slab
    *, heads: int, head_dim: int, approx_softmax: bool,
):
    Bt, S, D = x_ref.shape
    R = Bt * S                       # rows fed to the MXU per grid step
    cdt = wqkv_ref.dtype             # matmul operand dtype (bf16 fast / f32 exact)

    # Flatten to (R, D); each batch element contributes S consecutive
    # sublane-aligned rows, so this is a free relayout.
    x = x_ref[...].reshape(R, D).astype(jnp.float32)

    # ---------- LayerNorm 1 (f32, VPU, one-pass stats) ----------
    xn = _layernorm_onepass(x, g1_ref[...], b1_ref[...])

    # ---------- QKV projection: one (R, D) @ (D, 3D) MXU matmul ----------
    qkv = jnp.dot(xn.astype(cdt), wqkv_ref[...],
                  preferred_element_type=jnp.float32) + bqkv_ref[...]
    scale = 1.0 / math.sqrt(head_dim)
    q = qkv[:, 0 * D:1 * D] * scale
    k = qkv[:, 1 * D:2 * D]
    v = qkv[:, 2 * D:3 * D]

    # ---------- Multi-head attention ----------
    # Per-head batched 3-D einsums (proven TPU lowering pattern); each head's
    # context is written into its column slab of ctx_ref so the out-projection
    # becomes a single K=D matmul below (no per-head dots / accum chain).
    for h in range(heads):                          # static unroll, H is small
        lo, hi = h * head_dim, (h + 1) * head_dim
        qh = q[:, lo:hi].reshape(Bt, S, head_dim).astype(cdt)
        kh = k[:, lo:hi].reshape(Bt, S, head_dim).astype(cdt)
        vh = v[:, lo:hi].reshape(Bt, S, head_dim).astype(cdt)
        s = jnp.einsum("bqd,bkd->bqk", qh, kh,
                       preferred_element_type=jnp.float32)         # (Bt, S, S)
        s = s - jnp.max(s, axis=-1, keepdims=True)
        p = jnp.exp(s)
        p = p * pl.reciprocal(jnp.sum(p, axis=-1, keepdims=True),
                              approx=approx_softmax)
        ctx = jnp.einsum("bqk,bkd->bqd", p.astype(cdt), vh,
                         preferred_element_type=jnp.float32)       # (Bt, S, hd)
        ctx_ref[:, lo:hi] = ctx.reshape(R, head_dim)

    # One big (R, D) @ (D, D) out-projection.
    attn = jnp.dot(ctx_ref[...].astype(cdt), wo_ref[...],
                   preferred_element_type=jnp.float32) + bo_ref[...]
    x = x + attn                                    # residual 1

    # ---------- LayerNorm 2 + MLP (D -> 4D -> LeakyReLU(0.01) -> D) ----------
    xn = _layernorm_onepass(x, g2_ref[...], b2_ref[...])
    hdn = jnp.dot(xn.astype(cdt), w1_ref[...],
                  preferred_element_type=jnp.float32) + bm1_ref[...]
    hdn = jnp.where(hdn > 0, hdn, 0.01 * hdn)       # LeakyReLU, f32 on the VPU
    mlp = jnp.dot(hdn.astype(cdt), w2_ref[...],
                  preferred_element_type=jnp.float32) + bm2_ref[...]

    o_ref[...] = (x + mlp).reshape(Bt, S, D).astype(o_ref.dtype)   # residual 2


# ----------------------------- host-side setup -----------------------------

def _vmem_capacity_bytes() -> int:
    """Per-core VMEM capacity; defaults to 128 MiB (v5e/v6e class) if unknown."""
    try:
        return int(pltpu.get_tpu_info().vmem_capacity_bytes)
    except Exception:
        return 128 << 20


def _pick_batch_tile(B: int, S: int, max_rows: int) -> int:
    """Largest divisor of B with Bt*S <= max_rows, capped at B//2 so the grid
    always has >= 2 steps (v7x megacore + DMA/compute overlap)."""
    bt_cap = max(1, B // 2)
    best = 1
    for d in range(1, bt_cap + 1):
        if B % d == 0 and d * S <= max_rows:
            best = d
    return best


def _weight_spec(shape, single_buffer: bool) -> pl.BlockSpec:
    """Grid-invariant full-array block (weights stay VMEM-resident)."""
    idx = lambda b: (0,) * len(shape)
    if single_buffer:
        # One VMEM buffer instead of the default two (halves resident weights).
        return pl.BlockSpec(shape, idx, pipeline_mode=pl.Buffered(1))
    return pl.BlockSpec(shape, idx)


def make_params(key, dims: int):
    """Deterministic synthetic parameters matching the torch module shapes."""
    ks = jax.random.split(key, 8)
    s = 0.05
    return {
        "ln1_g": jnp.ones((dims,), jnp.float32),
        "ln1_b": jnp.zeros((dims,), jnp.float32),
        "in_proj_w": s * jax.random.normal(ks[0], (3 * dims, dims), jnp.float32),
        "in_proj_b": s * jax.random.normal(ks[1], (3 * dims,), jnp.float32),
        "out_proj_w": s * jax.random.normal(ks[2], (dims, dims), jnp.float32),
        "out_proj_b": s * jax.random.normal(ks[3], (dims,), jnp.float32),
        "ln2_g": jnp.ones((dims,), jnp.float32),
        "ln2_b": jnp.zeros((dims,), jnp.float32),
        "lin1_w": s * jax.random.normal(ks[4], (4 * dims, dims), jnp.float32),
        "lin1_b": s * jax.random.normal(ks[5], (4 * dims,), jnp.float32),
        "lin2_w": s * jax.random.normal(ks[6], (dims, 4 * dims), jnp.float32),
        "lin2_b": s * jax.random.normal(ks[7], (dims,), jnp.float32),
    }


def prepare_params(params, dims: int, compute_dtype=jnp.bfloat16):
    """One-time weight layout prep (transpose + cast).  Do this once, outside
    the per-step forward, so it is not re-run as separate XLA ops per call."""
    D = dims
    wdt = compute_dtype
    return (
        params["ln1_g"].reshape(1, D).astype(jnp.float32),
        params["ln1_b"].reshape(1, D).astype(jnp.float32),
        params["in_proj_w"].T.astype(wdt),                   # (D, 3D)
        params["in_proj_b"].reshape(1, 3 * D).astype(jnp.float32),
        params["out_proj_w"].T.astype(wdt),                  # (D, D)
        params["out_proj_b"].reshape(1, D).astype(jnp.float32),
        params["ln2_g"].reshape(1, D).astype(jnp.float32),
        params["ln2_b"].reshape(1, D).astype(jnp.float32),
        params["lin1_w"].T.astype(wdt),                      # (D, 4D)
        params["lin1_b"].reshape(1, 4 * D).astype(jnp.float32),
        params["lin2_w"].T.astype(wdt),                      # (4D, D)
        params["lin2_b"].reshape(1, D).astype(jnp.float32),
    )


def transformer_forward(x_sbd, prepared, heads: int, *,
                        approx_softmax: bool = True, max_rows=None):
    """x_sbd: (S, B, D) float32 -- same layout convention as the torch module."""
    S, B, D = x_sbd.shape
    assert D % heads == 0
    head_dim = D // heads

    cap = _vmem_capacity_bytes()
    if max_rows is None:
        # Generation-aware row budget: smaller tiles on 64-MiB-VMEM v7x.
        max_rows = 512 if cap <= (64 << 20) else 2048
    # Leave headroom for Mosaic internal scratch + double-buffered x/o tiles.
    vmem_limit = int(max(32 << 20, min((cap * 3) // 4, cap - (8 << 20))))

    Bt = _pick_batch_tile(B, S, max_rows)
    R = Bt * S

    # Batch-major activations keep every in-kernel head view a pure reshape.
    x_bsd = jnp.transpose(x_sbd, (1, 0, 2))                  # (B, S, D)

    kernel = functools.partial(transformer_kernel, heads=heads,
                               head_dim=head_dim, approx_softmax=approx_softmax)

    def run(single_buffer_weights: bool):
        in_specs = ([pl.BlockSpec((Bt, S, D), lambda b: (b, 0, 0))]
                    + [_weight_spec(a.shape, single_buffer_weights)
                       for a in prepared])
        call = pl.pallas_call(
            kernel,
            out_shape=jax.ShapeDtypeStruct((B, S, D), jnp.float32),
            grid_spec=pltpu.PrefetchScalarGridSpec(
                num_scalar_prefetch=0,
                grid=(B // Bt,),
                in_specs=in_specs,
                out_specs=pl.BlockSpec((Bt, S, D), lambda b: (b, 0, 0)),
                scratch_shapes=[pltpu.VMEM((R, D), jnp.float32)],
            ),
            compiler_params=pltpu.CompilerParams(
                # Batch tiles are independent -> shard across TensorCores.
                dimension_semantics=("parallel",),
                vmem_limit_bytes=vmem_limit,
            ),
        )
        return jax.block_until_ready(call(x_bsd, *prepared))

    try:
        out_bsd = run(True)       # single-buffered grid-invariant weights
    except Exception:
        out_bsd = run(False)      # fall back to default double-buffering

    return jnp.transpose(out_bsd, (1, 0, 2))                 # back to (S, B, D)


# ------------------------------- reference ---------------------------------

def _layernorm_ref(x, gamma, beta, eps=1e-5):
    mean = jnp.mean(x, axis=-1, keepdims=True)
    var = jnp.mean((x - mean) ** 2, axis=-1, keepdims=True)
    return (x - mean) * jax.lax.rsqrt(var + eps) * gamma + beta


def transformer_ref(x_sbd, params, heads: int):
    """Pure-JAX reference reproducing the torch forward pass (f32)."""
    S, B, D = x_sbd.shape
    hd = D // heads
    with jax.default_matmul_precision("highest"):
        x = x_sbd
        xn = _layernorm_ref(x, params["ln1_g"], params["ln1_b"])
        qkv = xn @ params["in_proj_w"].T + params["in_proj_b"]    # (S, B, 3D)
        q, k, v = qkv[..., :D], qkv[..., D:2 * D], qkv[..., 2 * D:]

        def split(t):                               # (S, B, D) -> (B, H, S, hd)
            return jnp.transpose(t.reshape(S, B, heads, hd), (1, 2, 0, 3))

        qh, kh, vh = split(q) / math.sqrt(hd), split(k), split(v)
        scores = jnp.einsum("bhqe,bhke->bhqk", qh, kh)
        p = jax.nn.softmax(scores, axis=-1)
        attn = jnp.einsum("bhqk,bhke->bhqe", p, vh)               # (B, H, S, hd)
        attn = jnp.transpose(attn, (2, 0, 1, 3)).reshape(S, B, D)
        attn = attn @ params["out_proj_w"].T + params["out_proj_b"]
        x = x + attn

        xn = _layernorm_ref(x, params["ln2_g"], params["ln2_b"])
        h = xn @ params["lin1_w"].T + params["lin1_b"]
        h = jnp.where(h > 0, h, 0.01 * h)
        mlp = h @ params["lin2_w"].T + params["lin2_b"]
        return x + mlp


# --------------------------------- main -------------------------------------

if __name__ == "__main__":
    S, B, D, H = 8, 2, 32, 4
    key = jax.random.PRNGKey(0)
    kx, kp, kx2 = jax.random.split(key, 3)
    x = jax.random.normal(kx, (S, B, D), jnp.float32)
    params = make_params(kp, D)
    ref = transformer_ref(x, params, H)

    # Prepare weights once (not per call).
    prep_f32 = prepare_params(params, D, compute_dtype=jnp.float32)
    prep_bf16 = prepare_params(params, D, compute_dtype=jnp.bfloat16)

    # 1) Exact path (f32 matmuls, exact softmax reciprocal): tight check.
    out = transformer_forward(x, prep_f32, H, approx_softmax=False)
    out = jax.block_until_ready(out)
    assert out.shape == (S, B, D)
    assert jnp.allclose(out, ref, atol=1e-3, rtol=1e-3), \
        f"f32 path err={float(jnp.max(jnp.abs(out - ref)))}"

    # 2) Fast path (bf16 matmul operands, f32 accumulation, approx reciprocal).
    out_fast = jax.block_until_ready(transformer_forward(x, prep_bf16, H))
    assert jnp.allclose(out_fast, ref, atol=5e-2, rtol=5e-2), \
        f"bf16 path err={float(jnp.max(jnp.abs(out_fast - ref)))}"

    # 3) Multi-block grid path: B=16 split into Bt=8 batch tiles -> grid=(2,).
    B2 = 16
    x2 = jax.random.normal(kx2, (S, B2, D), jnp.float32)
    ref2 = transformer_ref(x2, params, H)
    out2 = jax.block_until_ready(
        transformer_forward(x2, prep_f32, H, approx_softmax=False, max_rows=64))
    assert jnp.allclose(out2, ref2, atol=1e-3, rtol=1e-3), \
        f"tiled path err={float(jnp.max(jnp.abs(out2 - ref2)))}"

    print("KERNEL_OK")
</pallas_src>

<mosaic_0001>
module attributes {stable_mosaic.version = 11 : i64} {
  func.func @transformer_kernel(%arg0: i32, %arg1: memref<1x8x32xf32, #tpu.memory_space<vmem>>, %arg2: memref<1x32xf32, #tpu.memory_space<vmem>>, %arg3: memref<1x32xf32, #tpu.memory_space<vmem>>, %arg4: memref<32x96xf32, #tpu.memory_space<vmem>>, %arg5: memref<1x96xf32, #tpu.memory_space<vmem>>, %arg6: memref<32x32xf32, #tpu.memory_space<vmem>>, %arg7: memref<1x32xf32, #tpu.memory_space<vmem>>, %arg8: memref<1x32xf32, #tpu.memory_space<vmem>>, %arg9: memref<1x32xf32, #tpu.memory_space<vmem>>, %arg10: memref<32x128xf32, #tpu.memory_space<vmem>>, %arg11: memref<1x128xf32, #tpu.memory_space<vmem>>, %arg12: memref<128x32xf32, #tpu.memory_space<vmem>>, %arg13: memref<1x32xf32, #tpu.memory_space<vmem>>, %arg14: memref<1x8x32xf32, #tpu.memory_space<vmem>>, %arg15: memref<8x32xf32, #tpu.memory_space<vmem>>) attributes {dimension_semantics = [#tpu.dimension_semantics<parallel>], iteration_bounds = array<i64: 2>, scalar_prefetch = 0 : i64, scratch_operands = 1 : i64, tpu.core_type = #tpu.core_type<tc>, window_params = [{transform_indices = @transform_0, window_bounds = array<i64: 1, 8, 32>}, {pipeline_mode = #tpu.pipeline_mode<synchronous>, transform_indices = @transform_1, window_bounds = array<i64: 1, 32>}, {pipeline_mode = #tpu.pipeline_mode<synchronous>, transform_indices = @transform_2, window_bounds = array<i64: 1, 32>}, {pipeline_mode = #tpu.pipeline_mode<synchronous>, transform_indices = @transform_3, window_bounds = array<i64: 32, 96>}, {pipeline_mode = #tpu.pipeline_mode<synchronous>, transform_indices = @transform_4, window_bounds = array<i64: 1, 96>}, {pipeline_mode = #tpu.pipeline_mode<synchronous>, transform_indices = @transform_5, window_bounds = array<i64: 32, 32>}, {pipeline_mode = #tpu.pipeline_mode<synchronous>, transform_indices = @transform_6, window_bounds = array<i64: 1, 32>}, {pipeline_mode = #tpu.pipeline_mode<synchronous>, transform_indices = @transform_7, window_bounds = array<i64: 1, 32>}, {pipeline_mode = #tpu.pipeline_mode<synchronous>, transform_indices = @transform_8, window_bounds = array<i64: 1, 32>}, {pipeline_mode = #tpu.pipeline_mode<synchronous>, transform_indices = @transform_9, window_bounds = array<i64: 32, 128>}, {pipeline_mode = #tpu.pipeline_mode<synchronous>, transform_indices = @transform_10, window_bounds = array<i64: 1, 128>}, {pipeline_mode = #tpu.pipeline_mode<synchronous>, transform_indices = @transform_11, window_bounds = array<i64: 128, 32>}, {pipeline_mode = #tpu.pipeline_mode<synchronous>, transform_indices = @transform_12, window_bounds = array<i64: 1, 32>}, {transform_indices = @transform_13, window_bounds = array<i64: 1, 8, 32>}]} {
    %c0 = arith.constant 0 : index
    %c0_0 = arith.constant 0 : index
    %c0_1 = arith.constant 0 : index
    %0 = vector.load %arg1[%c0, %c0_0, %c0_1] : memref<1x8x32xf32, #tpu.memory_space<vmem>>, vector<1x8x32xf32>
    %1 = vector.shape_cast %0 : vector<1x8x32xf32> to vector<8x32xf32>
    %c0_2 = arith.constant 0 : index
    %c0_3 = arith.constant 0 : index
    %2 = vector.load %arg2[%c0_2, %c0_3] : memref<1x32xf32, #tpu.memory_space<vmem>>, vector<1x32xf32>
    %c0_4 = arith.constant 0 : index
    %c0_5 = arith.constant 0 : index
    %3 = vector.load %arg3[%c0_4, %c0_5] : memref<1x32xf32, #tpu.memory_space<vmem>>, vector<1x32xf32>
    %cst = arith.constant dense<0.000000e+00> : vector<8xf32>
    %4 = vector.multi_reduction <add>, %1, %cst [1] : vector<8x32xf32> to vector<8xf32>
    %5 = vector.shape_cast %4 : vector<8xf32> to vector<8x1xf32>
    %cst_6 = arith.constant 3.200000e+01 : f32
    %6 = vector.broadcast %cst_6 : f32 to vector<8x1xf32>
    %7 = arith.divf %5, %6 : vector<8x1xf32>
    %8 = arith.mulf %1, %1 : vector<8x32xf32>
    %cst_7 = arith.constant dense<0.000000e+00> : vector<8xf32>
    %9 = vector.multi_reduction <add>, %8, %cst_7 [1] : vector<8x32xf32> to vector<8xf32>
    %10 = vector.shape_cast %9 : vector<8xf32> to vector<8x1xf32>
    %cst_8 = arith.constant 3.200000e+01 : f32
    %11 = vector.broadcast %cst_8 : f32 to vector<8x1xf32>
    %12 = arith.divf %10, %11 : vector<8x1xf32>
    %13 = arith.mulf %7, %7 : vector<8x1xf32>
    %14 = arith.subf %12, %13 : vector<8x1xf32>
    %15 = vector.broadcast %7 : vector<8x1xf32> to vector<8x32xf32>
    %16 = arith.subf %1, %15 : vector<8x32xf32>
    %cst_9 = arith.constant 9.99999974E-6 : f32
    %17 = vector.broadcast %cst_9 : f32 to vector<8x1xf32>
    %18 = arith.addf %14, %17 : vector<8x1xf32>
    %19 = math.rsqrt %18 : vector<8x1xf32>
    %20 = vector.broadcast %19 : vector<8x1xf32> to vector<8x32xf32>
    %21 = arith.mulf %16, %20 : vector<8x32xf32>
    %22 = vector.broadcast %2 : vector<1x32xf32> to vector<8x32xf32>
    %23 = arith.mulf %21, %22 : vector<8x32xf32>
    %24 = vector.broadcast %3 : vector<1x32xf32> to vector<8x32xf32>
    %25 = arith.addf %23, %24 : vector<8x32xf32>
    %c0_10 = arith.constant 0 : index
    %c0_11 = arith.constant 0 : index
    %26 = vector.load %arg4[%c0_10, %c0_11] : memref<32x96xf32, #tpu.memory_space<vmem>>, vector<32x96xf32>
    %cst_12 = arith.constant dense<0.000000e+00> : vector<8x96xf32>
    %27 = tpu.matmul %25, %26, %cst_12 {dimension_numbers = #tpu.dot_dimension_numbers<[1], [0], [0], [1], [0, 0, 1, 1], [], []>} : vector<8x32xf32>, vector<32x96xf32>, vector<8x96xf32> -> vector<8x96xf32>
    %c0_13 = arith.constant 0 : index
    %c0_14 = arith.constant 0 : index
    %28 = vector.load %arg5[%c0_13, %c0_14] : memref<1x96xf32, #tpu.memory_space<vmem>>, vector<1x96xf32>
    %29 = vector.broadcast %28 : vector<1x96xf32> to vector<8x96xf32>
    %30 = arith.addf %27, %29 : vector<8x96xf32>
    %31 = vector.extract_strided_slice %30 {offsets = [0, 0], sizes = [8, 32], strides = [1, 1]} : vector<8x96xf32> to vector<8x32xf32>
    %cst_15 = arith.constant 0.353553385 : f32
    %32 = vector.broadcast %cst_15 : f32 to vector<8x32xf32>
    %33 = arith.mulf %31, %32 : vector<8x32xf32>
    %34 = vector.extract_strided_slice %30 {offsets = [0, 32], sizes = [8, 32], strides = [1, 1]} : vector<8x96xf32> to vector<8x32xf32>
    %35 = vector.extract_strided_slice %30 {offsets = [0, 64], sizes = [8, 32], strides = [1, 1]} : vector<8x96xf32> to vector<8x32xf32>
    %36 = vector.extract_strided_slice %33 {offsets = [0, 0], sizes = [8, 8], strides = [1, 1]} : vector<8x32xf32> to vector<8x8xf32>
    %37 = vector.shape_cast %36 : vector<8x8xf32> to vector<1x8x8xf32>
    %38 = vector.extract_strided_slice %34 {offsets = [0, 0], sizes = [8, 8], strides = [1, 1]} : vector<8x32xf32> to vector<8x8xf32>
    %39 = vector.shape_cast %38 : vector<8x8xf32> to vector<1x8x8xf32>
    %40 = vector.extract_strided_slice %35 {offsets = [0, 0], sizes = [8, 8], strides = [1, 1]} : vector<8x32xf32> to vector<8x8xf32>
    %41 = vector.shape_cast %40 : vector<8x8xf32> to vector<1x8x8xf32>
    "tpu.trace_start"() <{level = 10 : i32, message = "bqd,bkd->bqk"}> : () -> ()
    %cst_16 = arith.constant dense<0.000000e+00> : vector<1x8x8xf32>
    %42 = tpu.matmul %37, %39, %cst_16 {dimension_numbers = #tpu.dot_dimension_numbers<[2], [2], [1], [1], [0, 0, 0, 1, 1, 1], [0], [0]>} : vector<1x8x8xf32>, vector<1x8x8xf32>, vector<1x8x8xf32> -> vector<1x8x8xf32>
    "tpu.trace_stop"() : () -> ()
    %cst_17 = arith.constant dense<0xFF800000> : vector<1x8xf32>
    %43 = vector.multi_reduction <maximumf>, %42, %cst_17 [2] : vector<1x8x8xf32> to vector<1x8xf32>
    %44 = vector.shape_cast %43 : vector<1x8xf32> to vector<1x8x1xf32>
    %45 = vector.broadcast %44 : vector<1x8x1xf32> to vector<1x8x8xf32>
    %46 = arith.subf %42, %45 : vector<1x8x8xf32>
    %47 = math.exp %46 : vector<1x8x8xf32>
    %cst_18 = arith.constant dense<0.000000e+00> : vector<1x8xf32>
    %48 = vector.multi_reduction <add>, %47, %cst_18 [2] : vector<1x8x8xf32> to vector<1x8xf32>
    %49 = vector.shape_cast %48 : vector<1x8xf32> to vector<1x8x1xf32>
    %50 = tpu.reciprocal %49 : vector<1x8x1xf32> -> vector<1x8x1xf32>
    %51 = vector.broadcast %50 : vector<1x8x1xf32> to vector<1x8x8xf32>
    %52 = arith.mulf %47, %51 : vector<1x8x8xf32>
    "tpu.trace_start"() <{level = 10 : i32, message = "bqk,bkd->bqd"}> : () -> ()
    %cst_19 = arith.constant dense<0.000000e+00> : vector<1x8x8xf32>
    %53 = tpu.matmul %52, %41, %cst_19 {dimension_numbers = #tpu.dot_dimension_numbers<[2], [1], [1], [2], [0, 0, 0, 1, 1, 2], [0], [0]>} : vector<1x8x8xf32>, vector<1x8x8xf32>, vector<1x8x8xf32> -> vector<1x8x8xf32>
    "tpu.trace_stop"() : () -> ()
    %54 = vector.shape_cast %53 : vector<1x8x8xf32> to vector<8x8xf32>
    %c0_20 = arith.constant 0 : index
    %c0_21 = arith.constant 0 : index
    %55 = vector.load %arg15[%c0_20, %c0_21] : memref<8x32xf32, #tpu.memory_space<vmem>>, vector<8x8xf32>
    tpu.vector_store %arg15[%c0_20, %c0_21], %54 {strides = array<i32>} : memref<8x32xf32, #tpu.memory_space<vmem>>, vector<8x8xf32>,
    %56 = vector.extract_strided_slice %33 {offsets = [0, 8], sizes = [8, 8], strides = [1, 1]} : vector<8x32xf32> to vector<8x8xf32>
    %57 = vector.shape_cast %56 : vector<8x8xf32> to vector<1x8x8xf32>
    %58 = vector.extract_strided_slice %34 {offsets = [0, 8], sizes = [8, 8], strides = [1, 1]} : vector<8x32xf32> to vector<8x8xf32>
    %59 = vector.shape_cast %58 : vector<8x8xf32> to vector<1x8x8xf32>
    %60 = vector.extract_strided_slice %35 {offsets = [0, 8], sizes = [8, 8], strides = [1, 1]} : vector<8x32xf32> to vector<8x8xf32>
    %61 = vector.shape_cast %60 : vector<8x8xf32> to vector<1x8x8xf32>
    "tpu.trace_start"() <{level = 10 : i32, message = "bqd,bkd->bqk"}> : () -> ()
    %cst_22 = arith.constant dense<0.000000e+00> : vector<1x8x8xf32>
    %62 = tpu.matmul %57, %59, %cst_22 {dimension_numbers = #tpu.dot_dimension_numbers<[2], [2], [1], [1], [0, 0, 0, 1, 1, 1], [0], [0]>} : vector<1x8x8xf32>, vector<1x8x8xf32>, vector<1x8x8xf32> -> vector<1x8x8xf32>
    "tpu.trace_stop"() : () -> ()
    %cst_23 = arith.constant dense<0xFF800000> : vector<1x8xf32>
    %63 = vector.multi_reduction <maximumf>, %62, %cst_23 [2] : vector<1x8x8xf32> to vector<1x8xf32>
    %64 = vector.shape_cast %63 : vector<1x8xf32> to vector<1x8x1xf32>
    %65 = vector.broadcast %64 : vector<1x8x1xf32> to vector<1x8x8xf32>
    %66 = arith.subf %62, %65 : vector<1x8x8xf32>
    %67 = math.exp %66 : vector<1x8x8xf32>
    %cst_24 = arith.constant dense<0.000000e+00> : vector<1x8xf32>
    %68 = vector.multi_reduction <add>, %67, %cst_24 [2] : vector<1x8x8xf32> to vector<1x8xf32>
    %69 = vector.shape_cast %68 : vector<1x8xf32> to vector<1x8x1xf32>
    %70 = tpu.reciprocal %69 : vector<1x8x1xf32> -> vector<1x8x1xf32>
    %71 = vector.broadcast %70 : vector<1x8x1xf32> to vector<1x8x8xf32>
    %72 = arith.mulf %67, %71 : vector<1x8x8xf32>
    "tpu.trace_start"() <{level = 10 : i32, message = "bqk,bkd->bqd"}> : () -> ()
    %cst_25 = arith.constant dense<0.000000e+00> : vector<1x8x8xf32>
    %73 = tpu.matmul %72, %61, %cst_25 {dimension_numbers = #tpu.dot_dimension_numbers<[2], [1], [1], [2], [0, 0, 0, 1, 1, 2], [0], [0]>} : vector<1x8x8xf32>, vector<1x8x8xf32>, vector<1x8x8xf32> -> vector<1x8x8xf32>
    "tpu.trace_stop"() : () -> ()
    %74 = vector.shape_cast %73 : vector<1x8x8xf32> to vector<8x8xf32>
    %c0_26 = arith.constant 0 : index
    %c8 = arith.constant 8 : index
    %75 = vector.load %arg15[%c0_26, %c8] : memref<8x32xf32, #tpu.memory_space<vmem>>, vector<8x8xf32>
    tpu.vector_store %arg15[%c0_26, %c8], %74 {strides = array<i32>} : memref<8x32xf32, #tpu.memory_space<vmem>>, vector<8x8xf32>,
    %76 = vector.extract_strided_slice %33 {offsets = [0, 16], sizes = [8, 8], strides = [1, 1]} : vector<8x32xf32> to vector<8x8xf32>
    %77 = vector.shape_cast %76 : vector<8x8xf32> to vector<1x8x8xf32>
    %78 = vector.extract_strided_slice %34 {offsets = [0, 16], sizes = [8, 8], strides = [1, 1]} : vector<8x32xf32> to vector<8x8xf32>
    %79 = vector.shape_cast %78 : vector<8x8xf32> to vector<1x8x8xf32>
    %80 = vector.extract_strided_slice %35 {offsets = [0, 16], sizes = [8, 8], strides = [1, 1]} : vector<8x32xf32> to vector<8x8xf32>
    %81 = vector.shape_cast %80 : vector<8x8xf32> to vector<1x8x8xf32>
    "tpu.trace_start"() <{level = 10 : i32, message = "bqd,bkd->bqk"}> : () -> ()
    %cst_27 = arith.constant dense<0.000000e+00> : vector<1x8x8xf32>
    %82 = tpu.matmul %77, %79, %cst_27 {dimension_numbers = #tpu.dot_dimension_numbers<[2], [2], [1], [1], [0, 0, 0, 1, 1, 1], [0], [0]>} : vector<1x8x8xf32>, vector<1x8x8xf32>, vector<1x8x8xf32> -> vector<1x8x8xf32>
    "tpu.trace_stop"() : () -> ()
    %cst_28 = arith.constant dense<0xFF800000> : vector<1x8xf32>
    %83 = vector.multi_reduction <maximumf>, %82, %cst_28 [2] : vector<1x8x8xf32> to vector<1x8xf32>
    %84 = vector.shape_cast %83 : vector<1x8xf32> to vector<1x8x1xf32>
    %85 = vector.broadcast %84 : vector<1x8x1xf32> to vector<1x8x8xf32>
    %86 = arith.subf %82, %85 : vector<1x8x8xf32>
    %87 = math.exp %86 : vector<1x8x8xf32>
    %cst_29 = arith.constant dense<0.000000e+00> : vector<1x8xf32>
    %88 = vector.multi_reduction <add>, %87, %cst_29 [2] : vector<1x8x8xf32> to vector<1x8xf32>
    %89 = vector.shape_cast %88 : vector<1x8xf32> to vector<1x8x1xf32>
    %90 = tpu.reciprocal %89 : vector<1x8x1xf32> -> vector<1x8x1xf32>
    %91 = vector.broadcast %90 : vector<1x8x1xf32> to vector<1x8x8xf32>
    %92 = arith.mulf %87, %91 : vector<1x8x8xf32>
    "tpu.trace_start"() <{level = 10 : i32, message = "bqk,bkd->bqd"}> : () -> ()
    %cst_30 = arith.constant dense<0.000000e+00> : vector<1x8x8xf32>
    %93 = tpu.matmul %92, %81, %cst_30 {dimension_numbers = #tpu.dot_dimension_numbers<[2], [1], [1], [2], [0, 0, 0, 1, 1, 2], [0], [0]>} : vector<1x8x8xf32>, vector<1x8x8xf32>, vector<1x8x8xf32> -> vector<1x8x8xf32>
    "tpu.trace_stop"() : () -> ()
    %94 = vector.shape_cast %93 : vector<1x8x8xf32> to vector<8x8xf32>
    %c0_31 = arith.constant 0 : index
    %c16 = arith.constant 16 : index
    %95 = vector.load %arg15[%c0_31, %c16] : memref<8x32xf32, #tpu.memory_space<vmem>>, vector<8x8xf32>
    tpu.vector_store %arg15[%c0_31, %c16], %94 {strides = array<i32>} : memref<8x32xf32, #tpu.memory_space<vmem>>, vector<8x8xf32>,
    %96 = vector.extract_strided_slice %33 {offsets = [0, 24], sizes = [8, 8], strides = [1, 1]} : vector<8x32xf32> to vector<8x8xf32>
    %97 = vector.shape_cast %96 : vector<8x8xf32> to vector<1x8x8xf32>
    %98 = vector.extract_strided_slice %34 {offsets = [0, 24], sizes = [8, 8], strides = [1, 1]} : vector<8x32xf32> to vector<8x8xf32>
    %99 = vector.shape_cast %98 : vector<8x8xf32> to vector<1x8x8xf32>
    %100 = vector.extract_strided_slice %35 {offsets = [0, 24], sizes = [8, 8], strides = [1, 1]} : vector<8x32xf32> to vector<8x8xf32>
    %101 = vector.shape_cast %100 : vector<8x8xf32> to vector<1x8x8xf32>
    "tpu.trace_start"() <{level = 10 : i32, message = "bqd,bkd->bqk"}> : () -> ()
    %cst_32 = arith.constant dense<0.000000e+00> : vector<1x8x8xf32>
    %102 = tpu.matmul %97, %99, %cst_32 {dimension_numbers = #tpu.dot_dimension_numbers<[2], [2], [1], [1], [0, 0, 0, 1, 1, 1], [0], [0]>} : vector<1x8x8xf32>, vector<1x8x8xf32>, vector<1x8x8xf32> -> vector<1x8x8xf32>
    "tpu.trace_stop"() : () -> ()
    %cst_33 = arith.constant dense<0xFF800000> : vector<1x8xf32>
    %103 = vector.multi_reduction <maximumf>, %102, %cst_33 [2] : vector<1x8x8xf32> to vector<1x8xf32>
    %104 = vector.shape_cast %103 : vector<1x8xf32> to vector<1x8x1xf32>
    %105 = vector.broadcast %104 : vector<1x8x1xf32> to vector<1x8x8xf32>
    %106 = arith.subf %102, %105 : vector<1x8x8xf32>
    %107 = math.exp %106 : vector<1x8x8xf32>
    %cst_34 = arith.constant dense<0.000000e+00> : vector<1x8xf32>
    %108 = vector.multi_reduction <add>, %107, %cst_34 [2] : vector<1x8x8xf32> to vector<1x8xf32>
    %109 = vector.shape_cast %108 : vector<1x8xf32> to vector<1x8x1xf32>
    %110 = tpu.reciprocal %109 : vector<1x8x1xf32> -> vector<1x8x1xf32>
    %111 = vector.broadcast %110 : vector<1x8x1xf32> to vector<1x8x8xf32>
    %112 = arith.mulf %107, %111 : vector<1x8x8xf32>
    "tpu.trace_start"() <{level = 10 : i32, message = "bqk,bkd->bqd"}> : () -> ()
    %cst_35 = arith.constant dense<0.000000e+00> : vector<1x8x8xf32>
    %113 = tpu.matmul %112, %101, %cst_35 {dimension_numbers = #tpu.dot_dimension_numbers<[2], [1], [1], [2], [0, 0, 0, 1, 1, 2], [0], [0]>} : vector<1x8x8xf32>, vector<1x8x8xf32>, vector<1x8x8xf32> -> vector<1x8x8xf32>
    "tpu.trace_stop"() : () -> ()
    %114 = vector.shape_cast %113 : vector<1x8x8xf32> to vector<8x8xf32>
    %c0_36 = arith.constant 0 : index
    %c24 = arith.constant 24 : index
    %115 = vector.load %arg15[%c0_36, %c24] : memref<8x32xf32, #tpu.memory_space<vmem>>, vector<8x8xf32>
    tpu.vector_store %arg15[%c0_36, %c24], %114 {strides = array<i32>} : memref<8x32xf32, #tpu.memory_space<vmem>>, vector<8x8xf32>,
    %c0_37 = arith.constant 0 : index
    %c0_38 = arith.constant 0 : index
    %116 = vector.load %arg15[%c0_37, %c0_38] : memref<8x32xf32, #tpu.memory_space<vmem>>, vector<8x32xf32>
    %c0_39 = arith.constant 0 : index
    %c0_40 = arith.constant 0 : index
    %117 = vector.load %arg6[%c0_39, %c0_40] : memref<32x32xf32, #tpu.memory_space<vmem>>, vector<32x32xf32>
    %cst_41 = arith.constant dense<0.000000e+00> : vector<8x32xf32>
    %118 = tpu.matmul %116, %117, %cst_41 {dimension_numbers = #tpu.dot_dimension_numbers<[1], [0], [0], [1], [0, 0, 1, 1], [], []>} : vector<8x32xf32>, vector<32x32xf32>, vector<8x32xf32> -> vector<8x32xf32>
    %c0_42 = arith.constant 0 : index
    %c0_43 = arith.constant 0 : index
    %119 = vector.load %arg7[%c0_42, %c0_43] : memref<1x32xf32, #tpu.memory_space<vmem>>, vector<1x32xf32>
    %120 = vector.broadcast %119 : vector<1x32xf32> to vector<8x32xf32>
    %121 = arith.addf %118, %120 : vector<8x32xf32>
    %122 = arith.addf %1, %121 : vector<8x32xf32>
    %c0_44 = arith.constant 0 : index
    %c0_45 = arith.constant 0 : index
    %123 = vector.load %arg8[%c0_44, %c0_45] : memref<1x32xf32, #tpu.memory_space<vmem>>, vector<1x32xf32>
    %c0_46 = arith.constant 0 : index
    %c0_47 = arith.constant 0 : index
    %124 = vector.load %arg9[%c0_46, %c0_47] : memref<1x32xf32, #tpu.memory_space<vmem>>, vector<1x32xf32>
    %cst_48 = arith.constant dense<0.000000e+00> : vector<8xf32>
    %125 = vector.multi_reduction <add>, %122, %cst_48 [1] : vector<8x32xf32> to vector<8xf32>
    %126 = vector.shape_cast %125 : vector<8xf32> to vector<8x1xf32>
    %cst_49 = arith.constant 3.200000e+01 : f32
    %127 = vector.broadcast %cst_49 : f32 to vector<8x1xf32>
    %128 = arith.divf %126, %127 : vector<8x1xf32>
    %129 = arith.mulf %122, %122 : vector<8x32xf32>
    %cst_50 = arith.constant dense<0.000000e+00> : vector<8xf32>
    %130 = vector.multi_reduction <add>, %129, %cst_50 [1] : vector<8x32xf32> to vector<8xf32>
    %131 = vector.shape_cast %130 : vector<8xf32> to vector<8x1xf32>
    %cst_51 = arith.constant 3.200000e+01 : f32
    %132 = vector.broadcast %cst_51 : f32 to vector<8x1xf32>
    %133 = arith.divf %131, %132 : vector<8x1xf32>
    %134 = arith.mulf %128, %128 : vector<8x1xf32>
    %135 = arith.subf %133, %134 : vector<8x1xf32>
    %136 = vector.broadcast %128 : vector<8x1xf32> to vector<8x32xf32>
    %137 = arith.subf %122, %136 : vector<8x32xf32>
    %cst_52 = arith.constant 9.99999974E-6 : f32
    %138 = vector.broadcast %cst_52 : f32 to vector<8x1xf32>
    %139 = arith.addf %135, %138 : vector<8x1xf32>
    %140 = math.rsqrt %139 : vector<8x1xf32>
    %141 = vector.broadcast %140 : vector<8x1xf32> to vector<8x32xf32>
    %142 = arith.mulf %137, %141 : vector<8x32xf32>
    %143 = vector.broadcast %123 : vector<1x32xf32> to vector<8x32xf32>
    %144 = arith.mulf %142, %143 : vector<8x32xf32>
    %145 = vector.broadcast %124 : vector<1x32xf32> to vector<8x32xf32>
    %146 = arith.addf %144, %145 : vector<8x32xf32>
    %c0_53 = arith.constant 0 : index
    %c0_54 = arith.constant 0 : index
    %147 = vector.load %arg10[%c0_53, %c0_54] : memref<32x128xf32, #tpu.memory_space<vmem>>, vector<32x128xf32>
    %cst_55 = arith.constant dense<0.000000e+00> : vector<8x128xf32>
    %148 = tpu.matmul %146, %147, %cst_55 {dimension_numbers = #tpu.dot_dimension_numbers<[1], [0], [0], [1], [0, 0, 1, 1], [], []>} : vector<8x32xf32>, vector<32x128xf32>, vector<8x128xf32> -> vector<8x128xf32>
    %c0_56 = arith.constant 0 : index
    %c0_57 = arith.constant 0 : index
    %149 = vector.load %arg11[%c0_56, %c0_57] : memref<1x128xf32, #tpu.memory_space<vmem>>, vector<1x128xf32>
    %150 = vector.broadcast %149 : vector<1x128xf32> to vector<8x128xf32>
    %151 = arith.addf %148, %150 : vector<8x128xf32>
    %cst_58 = arith.constant 0.000000e+00 : f32
    %152 = vector.broadcast %cst_58 : f32 to vector<8x128xf32>
    %153 = arith.cmpf ogt, %151, %152 : vector<8x128xf32>
    %cst_59 = arith.constant 0.00999999977 : f32
    %154 = vector.broadcast %cst_59 : f32 to vector<8x128xf32>
    %155 = arith.mulf %154, %151 : vector<8x128xf32>
    %156 = arith.select %153, %151, %155 : vector<8x128xi1>, vector<8x128xf32>
    %c0_60 = arith.constant 0 : index
    %c0_61 = arith.constant 0 : index
    %157 = vector.load %arg12[%c0_60, %c0_61] : memref<128x32xf32, #tpu.memory_space<vmem>>, vector<128x32xf32>
    %cst_62 = arith.constant dense<0.000000e+00> : vector<8x32xf32>
    %158 = tpu.matmul %156, %157, %cst_62 {dimension_numbers = #tpu.dot_dimension_numbers<[1], [0], [0], [1], [0, 0, 1, 1], [], []>} : vector<8x128xf32>, vector<128x32xf32>, vector<8x32xf32> -> vector<8x32xf32>
    %c0_63 = arith.constant 0 : index
    %c0_64 = arith.constant 0 : index
    %159 = vector.load %arg13[%c0_63, %c0_64] : memref<1x32xf32, #tpu.memory_space<vmem>>, vector<1x32xf32>
    %160 = vector.broadcast %159 : vector<1x32xf32> to vector<8x32xf32>
    %161 = arith.addf %158, %160 : vector<8x32xf32>
    %162 = arith.addf %122, %161 : vector<8x32xf32>
    %163 = vector.shape_cast %162 : vector<8x32xf32> to vector<1x8x32xf32>
    %c0_65 = arith.constant 0 : index
    %c0_66 = arith.constant 0 : index
    %c0_67 = arith.constant 0 : index
    %164 = vector.load %arg14[%c0_65, %c0_66, %c0_67] : memref<1x8x32xf32, #tpu.memory_space<vmem>>, vector<1x8x32xf32>
    tpu.vector_store %arg14[%c0_65, %c0_66, %c0_67], %163 {strides = array<i32>} : memref<1x8x32xf32, #tpu.memory_space<vmem>>, vector<1x8x32xf32>,
    return
  }
  func.func @transform_0(%arg0: i32) -> (i32, i32, i32) {
    %c0_i32 = arith.constant 0 : i32
    %c0_i32_0 = arith.constant 0 : i32
    %c0_i32_1 = arith.constant 0 : i32
    return %arg0, %c0_i32, %c0_i32_0 : i32, i32, i32
  }
  func.func @transform_1(%arg0: i32) -> (i32, i32) {
    %c0_i32 = arith.constant 0 : i32
    %c0_i32_0 = arith.constant 0 : i32
    %c0_i32_1 = arith.constant 0 : i32
    return %c0_i32, %c0_i32_0 : i32, i32
  }
  func.func @transform_2(%arg0: i32) -> (i32, i32) {
    %c0_i32 = arith.constant 0 : i32
    %c0_i32_0 = arith.constant 0 : i32
    %c0_i32_1 = arith.constant 0 : i32
    return %c0_i32, %c0_i32_0 : i32, i32
  }
  func.func @transform_3(%arg0: i32) -> (i32, i32) {
    %c0_i32 = arith.constant 0 : i32
    %c0_i32_0 = arith.constant 0 : i32
    %c0_i32_1 = arith.constant 0 : i32
    return %c0_i32, %c0_i32_0 : i32, i32
  }
  func.func @transform_4(%arg0: i32) -> (i32, i32) {
    %c0_i32 = arith.constant 0 : i32
    %c0_i32_0 = arith.constant 0 : i32
    %c0_i32_1 = arith.constant 0 : i32
    return %c0_i32, %c0_i32_0 : i32, i32
  }
  func.func @transform_5(%arg0: i32) -> (i32, i32) {
    %c0_i32 = arith.constant 0 : i32
    %c0_i32_0 = arith.constant 0 : i32
    %c0_i32_1 = arith.constant 0 : i32
    return %c0_i32, %c0_i32_0 : i32, i32
  }
  func.func @transform_6(%arg0: i32) -> (i32, i32) {
    %c0_i32 = arith.constant 0 : i32
    %c0_i32_0 = arith.constant 0 : i32
    %c0_i32_1 = arith.constant 0 : i32
    return %c0_i32, %c0_i32_0 : i32, i32
  }
  func.func @transform_7(%arg0: i32) -> (i32, i32) {
    %c0_i32 = arith.constant 0 : i32
    %c0_i32_0 = arith.constant 0 : i32
    %c0_i32_1 = arith.constant 0 : i32
    return %c0_i32, %c0_i32_0 : i32, i32
  }
  func.func @transform_8(%arg0: i32) -> (i32, i32) {
    %c0_i32 = arith.constant 0 : i32
    %c0_i32_0 = arith.constant 0 : i32
    %c0_i32_1 = arith.constant 0 : i32
    return %c0_i32, %c0_i32_0 : i32, i32
  }
  func.func @transform_9(%arg0: i32) -> (i32, i32) {
    %c0_i32 = arith.constant 0 : i32
    %c0_i32_0 = arith.constant 0 : i32
    %c0_i32_1 = arith.constant 0 : i32
    return %c0_i32, %c0_i32_0 : i32, i32
  }
  func.func @transform_10(%arg0: i32) -> (i32, i32) {
    %c0_i32 = arith.constant 0 : i32
    %c0_i32_0 = arith.constant 0 : i32
    %c0_i32_1 = arith.constant 0 : i32
    return %c0_i32, %c0_i32_0 : i32, i32
  }
  func.func @transform_11(%arg0: i32) -> (i32, i32) {
    %c0_i32 = arith.constant 0 : i32
    %c0_i32_0 = arith.constant 0 : i32
    %c0_i32_1 = arith.constant 0 : i32
    return %c0_i32, %c0_i32_0 : i32, i32
  }
  func.func @transform_12(%arg0: i32) -> (i32, i32) {
    %c0_i32 = arith.constant 0 : i32
    %c0_i32_0 = arith.constant 0 : i32
    %c0_i32_1 = arith.constant 0 : i32
    return %c0_i32, %c0_i32_0 : i32, i32
  }
  func.func @transform_13(%arg0: i32) -> (i32, i32, i32) {
    %c0_i32 = arith.constant 0 : i32
    %c0_i32_0 = arith.constant 0 : i32
    %c0_i32_1 = arith.constant 0 : i32
    return %arg0, %c0_i32, %c0_i32_0 : i32, i32, i32
  }
}

module attributes {stable_mosaic.version = 11 : i64} {
  func.func @transformer_kernel(%arg0: i32, %arg1: memref<1x8x32xf32, #tpu.memory_space<vmem>>, %arg2: memref<1x32xf32, #tpu.memory_space<vmem>>, %arg3: memref<1x32xf32, #tpu.memory_space<vmem>>, %arg4: memref<32x96xf32, #tpu.memory_space<vmem>>, %arg5: memref<1x96xf32, #tpu.memory_space<vmem>>, %arg6: memref<32x32xf32, #tpu.memory_space<vmem>>, %arg7: memref<1x32xf32, #tpu.memory_space<vmem>>, %arg8: memref<1x32xf32, #tpu.memory_space<vmem>>, %arg9: memref<1x32xf32, #tpu.memory_space<vmem>>, %arg10: memref<32x128xf32, #tpu.memory_space<vmem>>, %arg11: memref<1x128xf32, #tpu.memory_space<vmem>>, %arg12: memref<128x32xf32, #tpu.memory_space<vmem>>, %arg13: memref<1x32xf32, #tpu.memory_space<vmem>>, %arg14: memref<1x8x32xf32, #tpu.memory_space<vmem>>, %arg15: memref<8x32xf32, #tpu.memory_space<vmem>>) attributes {dimension_semantics = [#tpu.dimension_semantics<parallel>], iteration_bounds = array<i64: 2>, scalar_prefetch = 0 : i64, scratch_operands = 1 : i64, tpu.core_type = #tpu.core_type<tc>, window_params = [{transform_indices = @transform_0, window_bounds = array<i64: 1, 8, 32>}, {pipeline_mode = #tpu.pipeline_mode<synchronous>, transform_indices = @transform_1, window_bounds = array<i64: 1, 32>}, {pipeline_mode = #tpu.pipeline_mode<synchronous>, transform_indices = @transform_2, window_bounds = array<i64: 1, 32>}, {pipeline_mode = #tpu.pipeline_mode<synchronous>, transform_indices = @transform_3, window_bounds = array<i64: 32, 96>}, {pipeline_mode = #tpu.pipeline_mode<synchronous>, transform_indices = @transform_4, window_bounds = array<i64: 1, 96>}, {pipeline_mode = #tpu.pipeline_mode<synchronous>, transform_indices = @transform_5, window_bounds = array<i64: 32, 32>}, {pipeline_mode = #tpu.pipeline_mode<synchronous>, transform_indices = @transform_6, window_bounds = array<i64: 1, 32>}, {pipeline_mode = #tpu.pipeline_mode<synchronous>, transform_indices = @transform_7, window_bounds = array<i64: 1, 32>}, {pipeline_mode = #tpu.pipeline_mode<synchronous>, transform_indices = @transform_8, window_bounds = array<i64: 1, 32>}, {pipeline_mode = #tpu.pipeline_mode<synchronous>, transform_indices = @transform_9, window_bounds = array<i64: 32, 128>}, {pipeline_mode = #tpu.pipeline_mode<synchronous>, transform_indices = @transform_10, window_bounds = array<i64: 1, 128>}, {pipeline_mode = #tpu.pipeline_mode<synchronous>, transform_indices = @transform_11, window_bounds = array<i64: 128, 32>}, {pipeline_mode = #tpu.pipeline_mode<synchronous>, transform_indices = @transform_12, window_bounds = array<i64: 1, 32>}, {transform_indices = @transform_13, window_bounds = array<i64: 1, 8, 32>}]} {
    %c0 = arith.constant 0 : index
    %c0_0 = arith.constant 0 : index
    %c0_1 = arith.constant 0 : index
    %0 = vector.load %arg1[%c0, %c0_0, %c0_1] : memref<1x8x32xf32, #tpu.memory_space<vmem>>, vector<1x8x32xf32>
    %1 = vector.shape_cast %0 : vector<1x8x32xf32> to vector<8x32xf32>
    %c0_2 = arith.constant 0 : index
    %c0_3 = arith.constant 0 : index
    %2 = vector.load %arg2[%c0_2, %c0_3] : memref<1x32xf32, #tpu.memory_space<vmem>>, vector<1x32xf32>
    %c0_4 = arith.constant 0 : index
    %c0_5 = arith.constant 0 : index
    %3 = vector.load %arg3[%c0_4, %c0_5] : memref<1x32xf32, #tpu.memory_space<vmem>>, vector<1x32xf32>
    %cst = arith.constant dense<0.000000e+00> : vector<8xf32>
    %4 = vector.multi_reduction <add>, %1, %cst [1] : vector<8x32xf32> to vector<8xf32>
    %5 = vector.shape_cast %4 : vector<8xf32> to vector<8x1xf32>
    %cst_6 = arith.constant 3.200000e+01 : f32
    %6 = vector.broadcast %cst_6 : f32 to vector<8x1xf32>
    %7 = arith.divf %5, %6 : vector<8x1xf32>
    %8 = arith.mulf %1, %1 : vector<8x32xf32>
    %cst_7 = arith.constant dense<0.000000e+00> : vector<8xf32>
    %9 = vector.multi_reduction <add>, %8, %cst_7 [1] : vector<8x32xf32> to vector<8xf32>
    %10 = vector.shape_cast %9 : vector<8xf32> to vector<8x1xf32>
    %cst_8 = arith.constant 3.200000e+01 : f32
    %11 = vector.broadcast %cst_8 : f32 to vector<8x1xf32>
    %12 = arith.divf %10, %11 : vector<8x1xf32>
    %13 = arith.mulf %7, %7 : vector<8x1xf32>
    %14 = arith.subf %12, %13 : vector<8x1xf32>
    %15 = vector.broadcast %7 : vector<8x1xf32> to vector<8x32xf32>
    %16 = arith.subf %1, %15 : vector<8x32xf32>
    %cst_9 = arith.constant 9.99999974E-6 : f32
    %17 = vector.broadcast %cst_9 : f32 to vector<8x1xf32>
    %18 = arith.addf %14, %17 : vector<8x1xf32>
    %19 = math.rsqrt %18 : vector<8x1xf32>
    %20 = vector.broadcast %19 : vector<8x1xf32> to vector<8x32xf32>
    %21 = arith.mulf %16, %20 : vector<8x32xf32>
    %22 = vector.broadcast %2 : vector<1x32xf32> to vector<8x32xf32>
    %23 = arith.mulf %21, %22 : vector<8x32xf32>
    %24 = vector.broadcast %3 : vector<1x32xf32> to vector<8x32xf32>
    %25 = arith.addf %23, %24 : vector<8x32xf32>
    %c0_10 = arith.constant 0 : index
    %c0_11 = arith.constant 0 : index
    %26 = vector.load %arg4[%c0_10, %c0_11] : memref<32x96xf32, #tpu.memory_space<vmem>>, vector<32x96xf32>
    %cst_12 = arith.constant dense<0.000000e+00> : vector<8x96xf32>
    %27 = tpu.matmul %25, %26, %cst_12 {dimension_numbers = #tpu.dot_dimension_numbers<[1], [0], [0], [1], [0, 0, 1, 1], [], []>} : vector<8x32xf32>, vector<32x96xf32>, vector<8x96xf32> -> vector<8x96xf32>
    %c0_13 = arith.constant 0 : index
    %c0_14 = arith.constant 0 : index
    %28 = vector.load %arg5[%c0_13, %c0_14] : memref<1x96xf32, #tpu.memory_space<vmem>>, vector<1x96xf32>
    %29 = vector.broadcast %28 : vector<1x96xf32> to vector<8x96xf32>
    %30 = arith.addf %27, %29 : vector<8x96xf32>
    %31 = vector.extract_strided_slice %30 {offsets = [0, 0], sizes = [8, 32], strides = [1, 1]} : vector<8x96xf32> to vector<8x32xf32>
    %cst_15 = arith.constant 0.353553385 : f32
    %32 = vector.broadcast %cst_15 : f32 to vector<8x32xf32>
    %33 = arith.mulf %31, %32 : vector<8x32xf32>
    %34 = vector.extract_strided_slice %30 {offsets = [0, 32], sizes = [8, 32], strides = [1, 1]} : vector<8x96xf32> to vector<8x32xf32>
    %35 = vector.extract_strided_slice %30 {offsets = [0, 64], sizes = [8, 32], strides = [1, 1]} : vector<8x96xf32> to vector<8x32xf32>
    %36 = vector.extract_strided_slice %33 {offsets = [0, 0], sizes = [8, 8], strides = [1, 1]} : vector<8x32xf32> to vector<8x8xf32>
    %37 = vector.shape_cast %36 : vector<8x8xf32> to vector<1x8x8xf32>
    %38 = vector.extract_strided_slice %34 {offsets = [0, 0], sizes = [8, 8], strides = [1, 1]} : vector<8x32xf32> to vector<8x8xf32>
    %39 = vector.shape_cast %38 : vector<8x8xf32> to vector<1x8x8xf32>
    %40 = vector.extract_strided_slice %35 {offsets = [0, 0], sizes = [8, 8], strides = [1, 1]} : vector<8x32xf32> to vector<8x8xf32>
    %41 = vector.shape_cast %40 : vector<8x8xf32> to vector<1x8x8xf32>
    "tpu.trace_start"() <{level = 10 : i32, message = "bqd,bkd->bqk"}> : () -> ()
    %cst_16 = arith.constant dense<0.000000e+00> : vector<1x8x8xf32>
    %42 = tpu.matmul %37, %39, %cst_16 {dimension_numbers = #tpu.dot_dimension_numbers<[2], [2], [1], [1], [0, 0, 0, 1, 1, 1], [0], [0]>} : vector<1x8x8xf32>, vector<1x8x8xf32>, vector<1x8x8xf32> -> vector<1x8x8xf32>
    "tpu.trace_stop"() : () -> ()
    %cst_17 = arith.constant dense<0xFF800000> : vector<1x8xf32>
    %43 = vector.multi_reduction <maximumf>, %42, %cst_17 [2] : vector<1x8x8xf32> to vector<1x8xf32>
    %44 = vector.shape_cast %43 : vector<1x8xf32> to vector<1x8x1xf32>
    %45 = vector.broadcast %44 : vector<1x8x1xf32> to vector<1x8x8xf32>
    %46 = arith.subf %42, %45 : vector<1x8x8xf32>
    %47 = math.exp %46 : vector<1x8x8xf32>
    %cst_18 = arith.constant dense<0.000000e+00> : vector<1x8xf32>
    %48 = vector.multi_reduction <add>, %47, %cst_18 [2] : vector<1x8x8xf32> to vector<1x8xf32>
    %49 = vector.shape_cast %48 : vector<1x8xf32> to vector<1x8x1xf32>
    %50 = tpu.reciprocal %49 : vector<1x8x1xf32> -> vector<1x8x1xf32>
    %51 = vector.broadcast %50 : vector<1x8x1xf32> to vector<1x8x8xf32>
    %52 = arith.mulf %47, %51 : vector<1x8x8xf32>
    "tpu.trace_start"() <{level = 10 : i32, message = "bqk,bkd->bqd"}> : () -> ()
    %cst_19 = arith.constant dense<0.000000e+00> : vector<1x8x8xf32>
    %53 = tpu.matmul %52, %41, %cst_19 {dimension_numbers = #tpu.dot_dimension_numbers<[2], [1], [1], [2], [0, 0, 0, 1, 1, 2], [0], [0]>} : vector<1x8x8xf32>, vector<1x8x8xf32>, vector<1x8x8xf32> -> vector<1x8x8xf32>
    "tpu.trace_stop"() : () -> ()
    %54 = vector.shape_cast %53 : vector<1x8x8xf32> to vector<8x8xf32>
    %c0_20 = arith.constant 0 : index
    %c0_21 = arith.constant 0 : index
    %55 = vector.load %arg15[%c0_20, %c0_21] : memref<8x32xf32, #tpu.memory_space<vmem>>, vector<8x8xf32>
    tpu.vector_store %arg15[%c0_20, %c0_21], %54 {strides = array<i32>} : memref<8x32xf32, #tpu.memory_space<vmem>>, vector<8x8xf32>,
    %56 = vector.extract_strided_slice %33 {offsets = [0, 8], sizes = [8, 8], strides = [1, 1]} : vector<8x32xf32> to vector<8x8xf32>
    %57 = vector.shape_cast %56 : vector<8x8xf32> to vector<1x8x8xf32>
    %58 = vector.extract_strided_slice %34 {offsets = [0, 8], sizes = [8, 8], strides = [1, 1]} : vector<8x32xf32> to vector<8x8xf32>
    %59 = vector.shape_cast %58 : vector<8x8xf32> to vector<1x8x8xf32>
    %60 = vector.extract_strided_slice %35 {offsets = [0, 8], sizes = [8, 8], strides = [1, 1]} : vector<8x32xf32> to vector<8x8xf32>
    %61 = vector.shape_cast %60 : vector<8x8xf32> to vector<1x8x8xf32>
    "tpu.trace_start"() <{level = 10 : i32, message = "bqd,bkd->bqk"}> : () -> ()
    %cst_22 = arith.constant dense<0.000000e+00> : vector<1x8x8xf32>
    %62 = tpu.matmul %57, %59, %cst_22 {dimension_numbers = #tpu.dot_dimension_numbers<[2], [2], [1], [1], [0, 0, 0, 1, 1, 1], [0], [0]>} : vector<1x8x8xf32>, vector<1x8x8xf32>, vector<1x8x8xf32> -> vector<1x8x8xf32>
    "tpu.trace_stop"() : () -> ()
    %cst_23 = arith.constant dense<0xFF800000> : vector<1x8xf32>
    %63 = vector.multi_reduction <maximumf>, %62, %cst_23 [2] : vector<1x8x8xf32> to vector<1x8xf32>
    %64 = vector.shape_cast %63 : vector<1x8xf32> to vector<1x8x1xf32>
    %65 = vector.broadcast %64 : vector<1x8x1xf32> to vector<1x8x8xf32>
    %66 = arith.subf %62, %65 : vector<1x8x8xf32>
    %67 = math.exp %66 : vector<1x8x8xf32>
    %cst_24 = arith.constant dense<0.000000e+00> : vector<1x8xf32>
    %68 = vector.multi_reduction <add>, %67, %cst_24 [2] : vector<1x8x8xf32> to vector<1x8xf32>
    %69 = vector.shape_cast %68 : vector<1x8xf32> to vector<1x8x1xf32>
    %70 = tpu.reciprocal %69 : vector<1x8x1xf32> -> vector<1x8x1xf32>
    %71 = vector.broadcast %70 : vector<1x8x1xf32> to vector<1x8x8xf32>
    %72 = arith.mulf %67, %71 : vector<1x8x8xf32>
    "tpu.trace_start"() <{level = 10 : i32, message = "bqk,bkd->bqd"}> : () -> ()
    %cst_25 = arith.constant dense<0.000000e+00> : vector<1x8x8xf32>
    %73 = tpu.matmul %72, %61, %cst_25 {dimension_numbers = #tpu.dot_dimension_numbers<[2], [1], [1], [2], [0, 0, 0, 1, 1, 2], [0], [0]>} : vector<1x8x8xf32>, vector<1x8x8xf32>, vector<1x8x8xf32> -> vector<1x8x8xf32>
    "tpu.trace_stop"() : () -> ()
    %74 = vector.shape_cast %73 : vector<1x8x8xf32> to vector<8x8xf32>
    %c0_26 = arith.constant 0 : index
    %c8 = arith.constant 8 : index
    %75 = vector.load %arg15[%c0_26, %c8] : memref<8x32xf32, #tpu.memory_space<vmem>>, vector<8x8xf32>
    tpu.vector_store %arg15[%c0_26, %c8], %74 {strides = array<i32>} : memref<8x32xf32, #tpu.memory_space<vmem>>, vector<8x8xf32>,
    %76 = vector.extract_strided_slice %33 {offsets = [0, 16], sizes = [8, 8], strides = [1, 1]} : vector<8x32xf32> to vector<8x8xf32>
    %77 = vector.shape_cast %76 : vector<8x8xf32> to vector<1x8x8xf32>
    %78 = vector.extract_strided_slice %34 {offsets = [0, 16], sizes = [8, 8], strides = [1, 1]} : vector<8x32xf32> to vector<8x8xf32>
    %79 = vector.shape_cast %78 : vector<8x8xf32> to vector<1x8x8xf32>
    %80 = vector.extract_strided_slice %35 {offsets = [0, 16], sizes = [8, 8], strides = [1, 1]} : vector<8x32xf32> to vector<8x8xf32>
    %81 = vector.shape_cast %80 : vector<8x8xf32> to vector<1x8x8xf32>
    "tpu.trace_start"() <{level = 10 : i32, message = "bqd,bkd->bqk"}> : () -> ()
    %cst_27 = arith.constant dense<0.000000e+00> : vector<1x8x8xf32>
    %82 = tpu.matmul %77, %79, %cst_27 {dimension_numbers = #tpu.dot_dimension_numbers<[2], [2], [1], [1], [0, 0, 0, 1, 1, 1], [0], [0]>} : vector<1x8x8xf32>, vector<1x8x8xf32>, vector<1x8x8xf32> -> vector<1x8x8xf32>
    "tpu.trace_stop"() : () -> ()
    %cst_28 = arith.constant dense<0xFF800000> : vector<1x8xf32>
    %83 = vector.multi_reduction <maximumf>, %82, %cst_28 [2] : vector<1x8x8xf32> to vector<1x8xf32>
    %84 = vector.shape_cast %83 : vector<1x8xf32> to vector<1x8x1xf32>
    %85 = vector.broadcast %84 : vector<1x8x1xf32> to vector<1x8x8xf32>
    %86 = arith.subf %82, %85 : vector<1x8x8xf32>
    %87 = math.exp %86 : vector<1x8x8xf32>
    %cst_29 = arith.constant dense<0.000000e+00> : vector<1x8xf32>
    %88 = vector.multi_reduction <add>, %87, %cst_29 [2] : vector<1x8x8xf32> to vector<1x8xf32>
    %89 = vector.shape_cast %88 : vector<1x8xf32> to vector<1x8x1xf32>
    %90 = tpu.reciprocal %89 : vector<1x8x1xf32> -> vector<1x8x1xf32>
    %91 = vector.broadcast %90 : vector<1x8x1xf32> to vector<1x8x8xf32>
    %92 = arith.mulf %87, %91 : vector<1x8x8xf32>
    "tpu.trace_start"() <{level = 10 : i32, message = "bqk,bkd->bqd"}> : () -> ()
    %cst_30 = arith.constant dense<0.000000e+00> : vector<1x8x8xf32>
    %93 = tpu.matmul %92, %81, %cst_30 {dimension_numbers = #tpu.dot_dimension_numbers<[2], [1], [1], [2], [0, 0, 0, 1, 1, 2], [0], [0]>} : vector<1x8x8xf32>, vector<1x8x8xf32>, vector<1x8x8xf32> -> vector<1x8x8xf32>
    "tpu.trace_stop"() : () -> ()
    %94 = vector.shape_cast %93 : vector<1x8x8xf32> to vector<8x8xf32>
    %c0_31 = arith.constant 0 : index
    %c16 = arith.constant 16 : index
    %95 = vector.load %arg15[%c0_31, %c16] : memref<8x32xf32, #tpu.memory_space<vmem>>, vector<8x8xf32>
    tpu.vector_store %arg15[%c0_31, %c16], %94 {strides = array<i32>} : memref<8x32xf32, #tpu.memory_space<vmem>>, vector<8x8xf32>,
    %96 = vector.extract_strided_slice %33 {offsets = [0, 24], sizes = [8, 8], strides = [1, 1]} : vector<8x32xf32> to vector<8x8xf32>
    %97 = vector.shape_cast %96 : vector<8x8xf32> to vector<1x8x8xf32>
    %98 = vector.extract_strided_slice %34 {offsets = [0, 24], sizes = [8, 8], strides = [1, 1]} : vector<8x32xf32> to vector<8x8xf32>
    %99 = vector.shape_cast %98 : vector<8x8xf32> to vector<1x8x8xf32>
    %100 = vector.extract_strided_slice %35 {offsets = [0, 24], sizes = [8, 8], strides = [1, 1]} : vector<8x32xf32> to vector<8x8xf32>
    %101 = vector.shape_cast %100 : vector<8x8xf32> to vector<1x8x8xf32>
    "tpu.trace_start"() <{level = 10 : i32, message = "bqd,bkd->bqk"}> : () -> ()
    %cst_32 = arith.constant dense<0.000000e+00> : vector<1x8x8xf32>
    %102 = tpu.matmul %97, %99, %cst_32 {dimension_numbers = #tpu.dot_dimension_numbers<[2], [2], [1], [1], [0, 0, 0, 1, 1, 1], [0], [0]>} : vector<1x8x8xf32>, vector<1x8x8xf32>, vector<1x8x8xf32> -> vector<1x8x8xf32>
    "tpu.trace_stop"() : () -> ()
    %cst_33 = arith.constant dense<0xFF800000> : vector<1x8xf32>
    %103 = vector.multi_reduction <maximumf>, %102, %cst_33 [2] : vector<1x8x8xf32> to vector<1x8xf32>
    %104 = vector.shape_cast %103 : vector<1x8xf32> to vector<1x8x1xf32>
    %105 = vector.broadcast %104 : vector<1x8x1xf32> to vector<1x8x8xf32>
    %106 = arith.subf %102, %105 : vector<1x8x8xf32>
    %107 = math.exp %106 : vector<1x8x8xf32>
    %cst_34 = arith.constant dense<0.000000e+00> : vector<1x8xf32>
    %108 = vector.multi_reduction <add>, %107, %cst_34 [2] : vector<1x8x8xf32> to vector<1x8xf32>
    %109 = vector.shape_cast %108 : vector<1x8xf32> to vector<1x8x1xf32>
    %110 = tpu.reciprocal %109 : vector<1x8x1xf32> -> vector<1x8x1xf32>
    %111 = vector.broadcast %110 : vector<1x8x1xf32> to vector<1x8x8xf32>
    %112 = arith.mulf %107, %111 : vector<1x8x8xf32>
    "tpu.trace_start"() <{level = 10 : i32, message = "bqk,bkd->bqd"}> : () -> ()
    %cst_35 = arith.constant dense<0.000000e+00> : vector<1x8x8xf32>
    %113 = tpu.matmul %112, %101, %cst_35 {dimension_numbers = #tpu.dot_dimension_numbers<[2], [1], [1], [2], [0, 0, 0, 1, 1, 2], [0], [0]>} : vector<1x8x8xf32>, vector<1x8x8xf32>, vector<1x8x8xf32> -> vector<1x8x8xf32>
    "tpu.trace_stop"() : () -> ()
    %114 = vector.shape_cast %113 : vector<1x8x8xf32> to vector<8x8xf32>
    %c0_36 = arith.constant 0 : index
    %c24 = arith.constant 24 : index
    %115 = vector.load %arg15[%c0_36, %c24] : memref<8x32xf32, #tpu.memory_space<vmem>>, vector<8x8xf32>
    tpu.vector_store %arg15[%c0_36, %c24], %114 {strides = array<i32>} : memref<8x32xf32, #tpu.memory_space<vmem>>, vector<8x8xf32>,
    %c0_37 = arith.constant 0 : index
    %c0_38 = arith.constant 0 : index
    %116 = vector.load %arg15[%c0_37, %c0_38] : memref<8x32xf32, #tpu.memory_space<vmem>>, vector<8x32xf32>
    %c0_39 = arith.constant 0 : index
    %c0_40 = arith.constant 0 : index
    %117 = vector.load %arg6[%c0_39, %c0_40] : memref<32x32xf32, #tpu.memory_space<vmem>>, vector<32x32xf32>
    %cst_41 = arith.constant dense<0.000000e+00> : vector<8x32xf32>
    %118 = tpu.matmul %116, %117, %cst_41 {dimension_numbers = #tpu.dot_dimension_numbers<[1], [0], [0], [1], [0, 0, 1, 1], [], []>} : vector<8x32xf32>, vector<32x32xf32>, vector<8x32xf32> -> vector<8x32xf32>
    %c0_42 = arith.constant 0 : index
    %c0_43 = arith.constant 0 : index
    %119 = vector.load %arg7[%c0_42, %c0_43] : memref<1x32xf32, #tpu.memory_space<vmem>>, vector<1x32xf32>
    %120 = vector.broadcast %119 : vector<1x32xf32> to vector<8x32xf32>
    %121 = arith.addf %118, %120 : vector<8x32xf32>
    %122 = arith.addf %1, %121 : vector<8x32xf32>
    %c0_44 = arith.constant 0 : index
    %c0_45 = arith.constant 0 : index
    %123 = vector.load %arg8[%c0_44, %c0_45] : memref<1x32xf32, #tpu.memory_space<vmem>>, vector<1x32xf32>
    %c0_46 = arith.constant 0 : index
    %c0_47 = arith.constant 0 : index
    %124 = vector.load %arg9[%c0_46, %c0_47] : memref<1x32xf32, #tpu.memory_space<vmem>>, vector<1x32xf32>
    %cst_48 = arith.constant dense<0.000000e+00> : vector<8xf32>
    %125 = vector.multi_reduction <add>, %122, %cst_48 [1] : vector<8x32xf32> to vector<8xf32>
    %126 = vector.shape_cast %125 : vector<8xf32> to vector<8x1xf32>
    %cst_49 = arith.constant 3.200000e+01 : f32
    %127 = vector.broadcast %cst_49 : f32 to vector<8x1xf32>
    %128 = arith.divf %126, %127 : vector<8x1xf32>
    %129 = arith.mulf %122, %122 : vector<8x32xf32>
    %cst_50 = arith.constant dense<0.000000e+00> : vector<8xf32>
    %130 = vector.multi_reduction <add>, %129, %cst_50 [1] : vector<8x32xf32> to vector<8xf32>
    %131 = vector.shape_cast %130 : vector<8xf32> to vector<8x1xf32>
    %cst_51 = arith.constant 3.200000e+01 : f32
    %132 = vector.broadcast %cst_51 : f32 to vector<8x1xf32>
    %133 = arith.divf %131, %132 : vector<8x1xf32>
    %134 = arith.mulf %128, %128 : vector<8x1xf32>
    %135 = arith.subf %133, %134 : vector<8x1xf32>
    %136 = vector.broadcast %128 : vector<8x1xf32> to vector<8x32xf32>
    %137 = arith.subf %122, %136 : vector<8x32xf32>
    %cst_52 = arith.constant 9.99999974E-6 : f32
    %138 = vector.broadcast %cst_52 : f32 to vector<8x1xf32>
    %139 = arith.addf %135, %138 : vector<8x1xf32>
    %140 = math.rsqrt %139 : vector<8x1xf32>
    %141 = vector.broadcast %140 : vector<8x1xf32> to vector<8x32xf32>
    %142 = arith.mulf %137, %141 : vector<8x32xf32>
    %143 = vector.broadcast %123 : vector<1x32xf32> to vector<8x32xf32>
    %144 = arith.mulf %142, %143 : vector<8x32xf32>
    %145 = vector.broadcast %124 : vector<1x32xf32> to vector<8x32xf32>
    %146 = arith.addf %144, %145 : vector<8x32xf32>
    %c0_53 = arith.constant 0 : index
    %c0_54 = arith.constant 0 : index
    %147 = vector.load %arg10[%c0_53, %c0_54] : memref<32x128xf32, #tpu.memory_space<vmem>>, vector<32x128xf32>
    %cst_55 = arith.constant dense<0.000000e+00> : vector<8x128xf32>
    %148 = tpu.matmul %146, %147, %cst_55 {dimension_numbers = #tpu.dot_dimension_numbers<[1], [0], [0], [1], [0, 0, 1, 1], [], []>} : vector<8x32xf32>, vector<32x128xf32>, vector<8x128xf32> -> vector<8x128xf32>
    %c0_56 = arith.constant 0 : index
    %c0_57 = arith.constant 0 : index
    %149 = vector.load %arg11[%c0_56, %c0_57] : memref<1x128xf32, #tpu.memory_space<vmem>>, vector<1x128xf32>
    %150 = vector.broadcast %149 : vector<1x128xf32> to vector<8x128xf32>
    %151 = arith.addf %148, %150 : vector<8x128xf32>
    %cst_58 = arith.constant 0.000000e+00 : f32
    %152 = vector.broadcast %cst_58 : f32 to vector<8x128xf32>
    %153 = arith.cmpf ogt, %151, %152 : vector<8x128xf32>
    %cst_59 = arith.constant 0.00999999977 : f32
    %154 = vector.broadcast %cst_59 : f32 to vector<8x128xf32>
    %155 = arith.mulf %154, %151 : vector<8x128xf32>
    %156 = arith.select %153, %151, %155 : vector<8x128xi1>, vector<8x128xf32>
    %c0_60 = arith.constant 0 : index
    %c0_61 = arith.constant 0 : index
    %157 = vector.load %arg12[%c0_60, %c0_61] : memref<128x32xf32, #tpu.memory_space<vmem>>, vector<128x32xf32>
    %cst_62 = arith.constant dense<0.000000e+00> : vector<8x32xf32>
    %158 = tpu.matmul %156, %157, %cst_62 {dimension_numbers = #tpu.dot_dimension_numbers<[1], [0], [0], [1], [0, 0, 1, 1], [], []>} : vector<8x128xf32>, vector<128x32xf32>, vector<8x32xf32> -> vector<8x32xf32>
    %c0_63 = arith.constant 0 : index
    %c0_64 = arith.constant 0 : index
    %159 = vector.load %arg13[%c0_63, %c0_64] : memref<1x32xf32, #tpu.memory_space<vmem>>, vector<1x32xf32>
    %160 = vector.broadcast %159 : vector<1x32xf32> to vector<8x32xf32>
    %161 = arith.addf %158, %160 : vector<8x32xf32>
    %162 = arith.addf %122, %161 : vector<8x32xf32>
    %163 = vector.shape_cast %162 : vector<8x32xf32> to vector<1x8x32xf32>
    %c0_65 = arith.constant 0 : index
    %c0_66 = arith.constant 0 : index
    %c0_67 = arith.constant 0 : index
    %164 = vector.load %arg14[%c0_65, %c0_66, %c0_67] : memref<1x8x32xf32, #tpu.memory_space<vmem>>, vector<1x8x32xf32>
    tpu.vector_store %arg14[%c0_65, %c0_66, %c0_67], %163 {strides = array<i32>} : memref<1x8x32xf32, #tpu.memory_space<vmem>>, vector<1x8x32xf32>,
    return
  }
  func.func @transform_0(%arg0: i32) -> (i32, i32, i32) {
    %c0_i32 = arith.constant 0 : i32
    %c0_i32_0 = arith.constant 0 : i32
    %c0_i32_1 = arith.constant 0 : i32
    return %arg0, %c0_i32, %c0_i32_0 : i32, i32, i32
  }
  func.func @transform_1(%arg0: i32) -> (i32, i32) {
    %c0_i32 = arith.constant 0 : i32
    %c0_i32_0 = arith.constant 0 : i32
    %c0_i32_1 = arith.constant 0 : i32
    return %c0_i32, %c0_i32_0 : i32, i32
  }
  func.func @transform_2(%arg0: i32) -> (i32, i32) {
    %c0_i32 = arith.constant 0 : i32
    %c0_i32_0 = arith.constant 0 : i32
    %c0_i32_1 = arith.constant 0 : i32
    return %c0_i32, %c0_i32_0 : i32, i32
  }
  func.func @transform_3(%arg0: i32) -> (i32, i32) {
    %c0_i32 = arith.constant 0 : i32
    %c0_i32_0 = arith.constant 0 : i32
    %c0_i32_1 = arith.constant 0 : i32
    return %c0_i32, %c0_i32_0 : i32, i32
  }
  func.func @transform_4(%arg0: i32) -> (i32, i32) {
    %c0_i32 = arith.constant 0 : i32
    %c0_i32_0 = arith.constant 0 : i32
    %c0_i32_1 = arith.constant 0 : i32
    return %c0_i32, %c0_i32_0 : i32, i32
  }
  func.func @transform_5(%arg0: i32) -> (i32, i32) {
    %c0_i32 = arith.constant 0 : i32
    %c0_i32_0 = arith.constant 0 : i32
    %c0_i32_1 = arith.constant 0 : i32
    return %c0_i32, %c0_i32_0 : i32, i32
  }
  func.func @transform_6(%arg0: i32) -> (i32, i32) {
    %c0_i32 = arith.constant 0 : i32
    %c0_i32_0 = arith.constant 0 : i32
    %c0_i32_1 = arith.constant 0 : i32
    return %c0_i32, %c0_i32_0 : i32, i32
  }
  func.func @transform_7(%arg0: i32) -> (i32, i32) {
    %c0_i32 = arith.constant 0 : i32
    %c0_i32_0 = arith.constant 0 : i32
    %c0_i32_1 = arith.constant 0 : i32
    return %c0_i32, %c0_i32_0 : i32, i32
  }
  func.func @transform_8(%arg0: i32) -> (i32, i32) {
    %c0_i32 = arith.constant 0 : i32
    %c0_i32_0 = arith.constant 0 : i32
    %c0_i32_1 = arith.constant 0 : i32
    return %c0_i32, %c0_i32_0 : i32, i32
  }
  func.func @transform_9(%arg0: i32) -> (i32, i32) {
    %c0_i32 = arith.constant 0 : i32
    %c0_i32_0 = arith.constant 0 : i32
    %c0_i32_1 = arith.constant 0 : i32
    return %c0_i32, %c0_i32_0 : i32, i32
  }
  func.func @transform_10(%arg0: i32) -> (i32, i32) {
    %c0_i32 = arith.constant 0 : i32
    %c0_i32_0 = arith.constant 0 : i32
    %c0_i32_1 = arith.constant 0 : i32
    return %c0_i32, %c0_i32_0 : i32, i32
  }
  func.func @transform_11(%arg0: i32) -> (i32, i32) {
    %c0_i32 = arith.constant 0 : i32
    %c0_i32_0 = arith.constant 0 : i32
    %c0_i32_1 = arith.constant 0 : i32
    return %c0_i32, %c0_i32_0 : i32, i32
  }
  func.func @transform_12(%arg0: i32) -> (i32, i32) {
    %c0_i32 = arith.constant 0 : i32
    %c0_i32_0 = arith.constant 0 : i32
    %c0_i32_1 = arith.constant 0 : i32
    return %c0_i32, %c0_i32_0 : i32, i32
  }
  func.func @transform_13(%arg0: i32) -> (i32, i32, i32) {
    %c0_i32 = arith.constant 0 : i32
    %c0_i32_0 = arith.constant 0 : i32
    %c0_i32_1 = arith.constant 0 : i32
    return %arg0, %c0_i32, %c0_i32_0 : i32, i32, i32
  }
}

</mosaic_0001>

<llo_original>
// kernel: tpu_custom_call.1
$region0: #{tpu_custom_call.1}
  #allocation0 [shape = 'u32[]', space=smem, size = 0x4, offset = 0x4, fixed_abs, tag = 'smem constant byte address 0x4 - core index']
  #allocation1 [shape = 'u32[144,128]{1,0:T(1,128)}', space=vmem, size = 0x12000, scoped, tag = 'internal scratch']
  #allocation2 [shape = 'f32[8,32]{1,0:T(8,128)}', space=vmem, size = 0x1000, scoped, tag = 'scratch operand']
  %s0 = inlined_call_operand.hbm [shape: f32[2,8,32], index: 0, kind: input, shape index: {}]
  %s1 = inlined_call_operand.hbm [shape: f32[1,32], index: 1, kind: input, shape index: {}]
  %s2 = inlined_call_operand.hbm [shape: f32[1,32], index: 2, kind: input, shape index: {}]
  %s3 = inlined_call_operand.hbm [shape: f32[32,96], index: 3, kind: input, shape index: {}]
  %s4 = inlined_call_operand.hbm [shape: f32[1,96], index: 4, kind: input, shape index: {}]
  %s5 = inlined_call_operand.hbm [shape: f32[32,32], index: 5, kind: input, shape index: {}]
  %s6 = inlined_call_operand.hbm [shape: f32[1,32], index: 6, kind: input, shape index: {}]
  %s7 = inlined_call_operand.hbm [shape: f32[1,32], index: 7, kind: input, shape index: {}]
  %s8 = inlined_call_operand.hbm [shape: f32[1,32], index: 8, kind: input, shape index: {}]
  %s9 = inlined_call_operand.hbm [shape: f32[32,128], index: 9, kind: input, shape index: {}]
  %s10 = inlined_call_operand.hbm [shape: f32[1,128], index: 10, kind: input, shape index: {}]
  %s11 = inlined_call_operand.hbm [shape: f32[128,32], index: 11, kind: input, shape index: {}]
  %s12 = inlined_call_operand.hbm [shape: f32[1,32], index: 12, kind: input, shape index: {}]
  %s13 = inlined_call_operand.hbm [shape: f32[2,8,32], index: 13, kind: output, shape index: {}]
  %s14 = sld [smem:[#allocation0]]
  $region137: #{tpu_custom_call.1} parent=0
    _
  %s16 = ssub.s32 1, %s14
  %s17 = scalar_select 0, %s16, %s14
  $region1: #{tpu_custom_call.1} parent=0
    #allocation3 [shape = 'u8[8192]{0}', space=vmem, size = 0x2000, scoped, tag = 'input window, operand 0']
    #allocation4 [shape = 's32[2]{0}', space=sflag, size = 0x8, scoped, tag = 'scoped memory for tpu_custom_call.1']
    #allocation5 [shape = 's32[2]{0}', space=sflag, size = 0x8, scoped, tag = 'scoped memory for tpu_custom_call.1']
    #allocation6 [shape = 'u8[512]{0}', space=vmem, size = 0x400, scoped, tag = 'input window, operand 1, single buffered']
    #allocation7 [shape = 's32[1]{0}', space=sflag, size = 0x4, scoped, tag = 'scoped memory for tpu_custom_call.1']
    #allocation8 [shape = 'u8[512]{0}', space=vmem, size = 0x400, scoped, tag = 'input window, operand 2, single buffered']
    #allocation9 [shape = 'u8[16384]{0}', space=vmem, size = 0x4000, scoped, tag = 'input window, operand 3, single buffered']
    #allocation10 [shape = 's32[1]{0}', space=sflag, size = 0x4, scoped, tag = 'scoped memory for tpu_custom_call.1']
    #allocation11 [shape = 'u8[512]{0}', space=vmem, size = 0x400, scoped, tag = 'input window, operand 4, single buffered']
    #allocation12 [shape = 'u8[16384]{0}', space=vmem, size = 0x4000, scoped, tag = 'input window, operand 5, single buffered']
    #allocation13 [shape = 's32[1]{0}', space=sflag, size = 0x4, scoped, tag = 'scoped memory for tpu_custom_call.1']
    #allocation14 [shape = 'u8[512]{0}', space=vmem, size = 0x400, scoped, tag = 'input window, operand 6, single buffered']
    #allocation15 [shape = 'u8[512]{0}', space=vmem, size = 0x400, scoped, tag = 'input window, operand 7, single buffered']
    #allocation16 [shape = 's32[1]{0}', space=sflag, size = 0x4, scoped, tag = 'scoped memory for tpu_custom_call.1']
    #allocation17 [shape = 'u8[512]{0}', space=vmem, size = 0x400, scoped, tag = 'input window, operand 8, single buffered']
    #allocation18 [shape = 'u8[16384]{0}', space=vmem, size = 0x4000, scoped, tag = 'input window, operand 9, single buffered']
    #allocation19 [shape = 's32[1]{0}', space=sflag, size = 0x4, scoped, tag = 'scoped memory for tpu_custom_call.1']
    #allocation20 [shape = 'u8[512]{0}', space=vmem, size = 0x400, scoped, tag = 'input window, operand 10, single buffered']
    #allocation21 [shape = 'u8[65536]{0}', space=vmem, size = 0x10000, scoped, tag = 'input window, operand 11, single buffered']
    #allocation22 [shape = 's32[1]{0}', space=sflag, size = 0x4, scoped, tag = 'scoped memory for tpu_custom_call.1']
    #allocation23 [shape = 'u8[512]{0}', space=vmem, size = 0x400, scoped, tag = 'input window, operand 12, single buffered']
    #allocation24 [shape = 'u8[8192]{0}', space=vmem, size = 0x2000, scoped, tag = 'output window, operand 0']
    %18 = vsyncpa [#allocation4], 0
    %s19 = scalar_lea.sflag [#allocation4], 1
    %20 = vsyncpa %s19, 0
    %21 = vsyncpa [#allocation7], 0
    %22 = vsyncpa [#allocation10], 0
    %23 = vsyncpa [#allocation13], 0
    %24 = vsyncpa [#allocation16], 0
    %25 = vsyncpa [#allocation19], 0
    %26 = vsyncpa [#allocation22], 0
    %27 = vsyncpa [#allocation5], 0
    %s28 = scalar_lea.sflag [#allocation5], 1
    %29 = vsyncpa %s28, 0
    loop: start=0, step=1, limit=4
    $region2: #{tpu_custom_call.1} parent=1 // loop_pre_header
      _
    $region3: #{tpu_custom_call.1} parent=1 // loop_header
      %s31 = sphi 0, %s35
      %p32 = scmp.ge.s32.totalorder %s31, 4
      %s41 = sphi 0, %s43
      %s44 = sphi 0, %s41
      %s45 = sphi 0, %s44
      %s61 = sphi 0, %s45
      %s65 = sphi 0, %s65
      %s67 = sphi 0, %s65
      %s68 = sphi 0, %s67
      %s82 = sphi 0, %s68
      %s86 = sphi 0, %s86
      %s88 = sphi 0, %s86
      %s89 = sphi 0, %s88
      %s103 = sphi 0, %s89
      %s107 = sphi 0, %s107
      %s109 = sphi 0, %s107
      %s110 = sphi 0, %s109
      %s124 = sphi 0, %s110
      %s128 = sphi 0, %s128
      %s130 = sphi 0, %s128
      %s131 = sphi 0, %s130
      %s145 = sphi 0, %s131
      %s149 = sphi 0, %s149
      %s151 = sphi 0, %s149
      %s152 = sphi 0, %s151
      %s166 = sphi 0, %s152
      %s170 = sphi 0, %s170
      %s172 = sphi 0, %s170
      %s173 = sphi 0, %s172
      %s187 = sphi 0, %s173
      %s191 = sphi 0, %s191
      %s193 = sphi 0, %s191
      %s194 = sphi 0, %s193
      %s208 = sphi 0, %s194
      %s212 = sphi 0, %s212
      %s214 = sphi 0, %s212
      %s215 = sphi 0, %s214
      %s229 = sphi 0, %s215
      %s233 = sphi 0, %s233
      %s235 = sphi 0, %s233
      %s236 = sphi 0, %s235
      %s250 = sphi 0, %s236
      %s254 = sphi 0, %s254
      %s256 = sphi 0, %s254
      %s257 = sphi 0, %s256
      %s271 = sphi 0, %s257
      %s275 = sphi 0, %s275
      %s277 = sphi 0, %s275
      %s278 = sphi 0, %s277
      %s292 = sphi 0, %s278
      %s296 = sphi 0, %s296
      %s298 = sphi 0, %s296
      %s299 = sphi 0, %s298
      %s313 = sphi 0, %s299
      %s319 = sphi 0, %s321
      %s322 = sphi 0, %s319
      %s323 = sphi 0, %s322
      %s339 = sphi 0, %s323
    $region4: #{tpu_custom_call.1} parent=1 // loop_header_branch
      %34 = sbr.rel (%p32) target = $region8
    $region5: #{tpu_custom_call.1} parent=1 // loop_body
      %s36 = ssub.s32 %s31, 1
      %s37 = ssub.s32 %s31, 2
      %s38 = sadd.s32 %s31, 1
      %s39 = ssub.s32 %s31, %s38
      %p40 = scmp.eq.s32.totalorder %s39, 0
      %s42 = sadd.s32 %s41, 1
      %s43 = scalar_select %p40, %s41, %s42
      %p46 = pneg %p40
      %p47 = scmp.eq.s32.totalorder %s31, 1
      %p48 = por %p46, %p47
      %p49 = scmp.ne.s32.totalorder %s41, %s44
      %p50 = scmp.eq.s32.totalorder %s31, 0
      %p51 = por %p49, %p50
      %p52 = scmp.ne.s32.totalorder %s41, %s44
      %p53 = scmp.eq.s32.totalorder %s36, 1
      %p54 = por %p52, %p53
      %p55 = scmp.ne.s32.totalorder %s44, %s45
      %p56 = scmp.eq.s32.totalorder %s36, 0
      %p57 = por %p55, %p56
      %p58 = scmp.ne.s32.totalorder %s44, %s45
      %p59 = scmp.eq.s32.totalorder %s37, 1
      %p60 = por %p58, %p59
      %p62 = scmp.ne.s32.totalorder %s45, %s61
      %p63 = scmp.eq.s32.totalorder %s37, 0
      %p64 = por %p62, %p63
      %s66 = sadd.s32 %s65, 1
      %p69 = scmp.eq.s32.totalorder %s31, 1
      %p70 = scmp.ne.s32.totalorder %s65, %s67
      %p71 = scmp.eq.s32.totalorder %s31, 0
      %p72 = por %p70, %p71
      %p73 = scmp.ne.s32.totalorder %s65, %s67
      %p74 = scmp.eq.s32.totalorder %s36, 1
      %p75 = por %p73, %p74
      %p76 = scmp.ne.s32.totalorder %s67, %s68
      %p77 = scmp.eq.s32.totalorder %s36, 0
      %p78 = por %p76, %p77
      %p79 = scmp.ne.s32.totalorder %s67, %s68
      %p80 = scmp.eq.s32.totalorder %s37, 1
      %p81 = por %p79, %p80
      %p83 = scmp.ne.s32.totalorder %s68, %s82
      %p84 = scmp.eq.s32.totalorder %s37, 0
      %p85 = por %p83, %p84
      %s87 = sadd.s32 %s86, 1
      %p90 = scmp.eq.s32.totalorder %s31, 1
      %p91 = scmp.ne.s32.totalorder %s86, %s88
      %p92 = scmp.eq.s32.totalorder %s31, 0
      %p93 = por %p91, %p92
      %p94 = scmp.ne.s32.totalorder %s86, %s88
      %p95 = scmp.eq.s32.totalorder %s36, 1
      %p96 = por %p94, %p95
      %p97 = scmp.ne.s32.totalorder %s88, %s89
      %p98 = scmp.eq.s32.totalorder %s36, 0
      %p99 = por %p97, %p98
      %p100 = scmp.ne.s32.totalorder %s88, %s89
      %p101 = scmp.eq.s32.totalorder %s37, 1
      %p102 = por %p100, %p101
      %p104 = scmp.ne.s32.totalorder %s89, %s103
      %p105 = scmp.eq.s32.totalorder %s37, 0
      %p106 = por %p104, %p105
      %s108 = sadd.s32 %s107, 1
      %p111 = scmp.eq.s32.totalorder %s31, 1
      %p112 = scmp.ne.s32.totalorder %s107, %s109
      %p113 = scmp.eq.s32.totalorder %s31, 0
      %p114 = por %p112, %p113
      %p115 = scmp.ne.s32.totalorder %s107, %s109
      %p116 = scmp.eq.s32.totalorder %s36, 1
      %p117 = por %p115, %p116
      %p118 = scmp.ne.s32.totalorder %s109, %s110
      %p119 = scmp.eq.s32.totalorder %s36, 0
      %p120 = por %p118, %p119
      %p121 = scmp.ne.s32.totalorder %s109, %s110
      %p122 = scmp.eq.s32.totalorder %s37, 1
      %p123 = por %p121, %p122
      %p125 = scmp.ne.s32.totalorder %s110, %s124
      %p126 = scmp.eq.s32.totalorder %s37, 0
      %p127 = por %p125, %p126
      %s129 = sadd.s32 %s128, 1
      %p132 = scmp.eq.s32.totalorder %s31, 1
      %p133 = scmp.ne.s32.totalorder %s128, %s130
      %p134 = scmp.eq.s32.totalorder %s31, 0
      %p135 = por %p133, %p134
      %p136 = scmp.ne.s32.totalorder %s128, %s130
      %p137 = scmp.eq.s32.totalorder %s36, 1
      %p138 = por %p136, %p137
      %p139 = scmp.ne.s32.totalorder %s130, %s131
      %p140 = scmp.eq.s32.totalorder %s36, 0
      %p141 = por %p139, %p140
      %p142 = scmp.ne.s32.totalorder %s130, %s131
      %p143 = scmp.eq.s32.totalorder %s37, 1
      %p144 = por %p142, %p143
      %p146 = scmp.ne.s32.totalorder %s131, %s145
      %p147 = scmp.eq.s32.totalorder %s37, 0
      %p148 = por %p146, %p147
      %s150 = sadd.s32 %s149, 1
      %p153 = scmp.eq.s32.totalorder %s31, 1
      %p154 = scmp.ne.s32.totalorder %s149, %s151
      %p155 = scmp.eq.s32.totalorder %s31, 0
      %p156 = por %p154, %p155
      %p157 = scmp.ne.s32.totalorder %s149, %s151
      %p158 = scmp.eq.s32.totalorder %s36, 1
      %p159 = por %p157, %p158
      %p160 = scmp.ne.s32.totalorder %s151, %s152
      %p161 = scmp.eq.s32.totalorder %s36, 0
      %p162 = por %p160, %p161
      %p163 = scmp.ne.s32.totalorder %s151, %s152
      %p164 = scmp.eq.s32.totalorder %s37, 1
      %p165 = por %p163, %p164
      %p167 = scmp.ne.s32.totalorder %s152, %s166
      %p168 = scmp.eq.s32.totalorder %s37, 0
      %p169 = por %p167, %p168
      %s171 = sadd.s32 %s170, 1
      %p174 = scmp.eq.s32.totalorder %s31, 1
      %p175 = scmp.ne.s32.totalorder %s170, %s172
      %p176 = scmp.eq.s32.totalorder %s31, 0
      %p177 = por %p175, %p176
      %p178 = scmp.ne.s32.totalorder %s170, %s172
      %p179 = scmp.eq.s32.totalorder %s36, 1
      %p180 = por %p178, %p179
      %p181 = scmp.ne.s32.totalorder %s172, %s173
      %p182 = scmp.eq.s32.totalorder %s36, 0
      %p183 = por %p181, %p182
      %p184 = scmp.ne.s32.totalorder %s172, %s173
      %p185 = scmp.eq.s32.totalorder %s37, 1
      %p186 = por %p184, %p185
      %p188 = scmp.ne.s32.totalorder %s173, %s187
      %p189 = scmp.eq.s32.totalorder %s37, 0
      %p190 = por %p188, %p189
      %s192 = sadd.s32 %s191, 1
      %p195 = scmp.eq.s32.totalorder %s31, 1
      %p196 = scmp.ne.s32.totalorder %s191, %s193
      %p197 = scmp.eq.s32.totalorder %s31, 0
      %p198 = por %p196, %p197
      %p199 = scmp.ne.s32.totalorder %s191, %s193
      %p200 = scmp.eq.s32.totalorder %s36, 1
      %p201 = por %p199, %p200
      %p202 = scmp.ne.s32.totalorder %s193, %s194
      %p203 = scmp.eq.s32.totalorder %s36, 0
      %p204 = por %p202, %p203
      %p205 = scmp.ne.s32.totalorder %s193, %s194
      %p206 = scmp.eq.s32.totalorder %s37, 1
      %p207 = por %p205, %p206
      %p209 = scmp.ne.s32.totalorder %s194, %s208
      %p210 = scmp.eq.s32.totalorder %s37, 0
      %p211 = por %p209, %p210
      %s213 = sadd.s32 %s212, 1
      %p216 = scmp.eq.s32.totalorder %s31, 1
      %p217 = scmp.ne.s32.totalorder %s212, %s214
      %p218 = scmp.eq.s32.totalorder %s31, 0
      %p219 = por %p217, %p218
      %p220 = scmp.ne.s32.totalorder %s212, %s214
      %p221 = scmp.eq.s32.totalorder %s36, 1
      %p222 = por %p220, %p221
      %p223 = scmp.ne.s32.totalorder %s214, %s215
      %p224 = scmp.eq.s32.totalorder %s36, 0
      %p225 = por %p223, %p224
      %p226 = scmp.ne.s32.totalorder %s214, %s215
      %p227 = scmp.eq.s32.totalorder %s37, 1
      %p228 = por %p226, %p227
      %p230 = scmp.ne.s32.totalorder %s215, %s229
      %p231 = scmp.eq.s32.totalorder %s37, 0
      %p232 = por %p230, %p231
      %s234 = sadd.s32 %s233, 1
      %p237 = scmp.eq.s32.totalorder %s31, 1
      %p238 = scmp.ne.s32.totalorder %s233, %s235
      %p239 = scmp.eq.s32.totalorder %s31, 0
      %p240 = por %p238, %p239
      %p241 = scmp.ne.s32.totalorder %s233, %s235
      %p242 = scmp.eq.s32.totalorder %s36, 1
      %p243 = por %p241, %p242
      %p244 = scmp.ne.s32.totalorder %s235, %s236
      %p245 = scmp.eq.s32.totalorder %s36, 0
      %p246 = por %p244, %p245
      %p247 = scmp.ne.s32.totalorder %s235, %s236
      %p248 = scmp.eq.s32.totalorder %s37, 1
      %p249 = por %p247, %p248
      %p251 = scmp.ne.s32.totalorder %s236, %s250
      %p252 = scmp.eq.s32.totalorder %s37, 0
      %p253 = por %p251, %p252
      %s255 = sadd.s32 %s254, 1
      %p258 = scmp.eq.s32.totalorder %s31, 1
      %p259 = scmp.ne.s32.totalorder %s254, %s256
      %p260 = scmp.eq.s32.totalorder %s31, 0
      %p261 = por %p259, %p260
      %p262 = scmp.ne.s32.totalorder %s254, %s256
      %p263 = scmp.eq.s32.totalorder %s36, 1
      %p264 = por %p262, %p263
      %p265 = scmp.ne.s32.totalorder %s256, %s257
      %p266 = scmp.eq.s32.totalorder %s36, 0
      %p267 = por %p265, %p266
      %p268 = scmp.ne.s32.totalorder %s256, %s257
      %p269 = scmp.eq.s32.totalorder %s37, 1
      %p270 = por %p268, %p269
      %p272 = scmp.ne.s32.totalorder %s257, %s271
      %p273 = scmp.eq.s32.totalorder %s37, 0
      %p274 = por %p272, %p273
      %s276 = sadd.s32 %s275, 1
      %p279 = scmp.eq.s32.totalorder %s31, 1
      %p280 = scmp.ne.s32.totalorder %s275, %s277
      %p281 = scmp.eq.s32.totalorder %s31, 0
      %p282 = por %p280, %p281
      %p283 = scmp.ne.s32.totalorder %s275, %s277
      %p284 = scmp.eq.s32.totalorder %s36, 1
      %p285 = por %p283, %p284
      %p286 = scmp.ne.s32.totalorder %s277, %s278
      %p287 = scmp.eq.s32.totalorder %s36, 0
      %p288 = por %p286, %p287
      %p289 = scmp.ne.s32.totalorder %s277, %s278
      %p290 = scmp.eq.s32.totalorder %s37, 1
      %p291 = por %p289, %p290
      %p293 = scmp.ne.s32.totalorder %s278, %s292
      %p294 = scmp.eq.s32.totalorder %s37, 0
      %p295 = por %p293, %p294
      %s297 = sadd.s32 %s296, 1
      %p300 = scmp.eq.s32.totalorder %s31, 1
      %p301 = scmp.ne.s32.totalorder %s296, %s298
      %p302 = scmp.eq.s32.totalorder %s31, 0
      %p303 = por %p301, %p302
      %p304 = scmp.ne.s32.totalorder %s296, %s298
      %p305 = scmp.eq.s32.totalorder %s36, 1
      %p306 = por %p304, %p305
      %p307 = scmp.ne.s32.totalorder %s298, %s299
      %p308 = scmp.eq.s32.totalorder %s36, 0
      %p309 = por %p307, %p308
      %p310 = scmp.ne.s32.totalorder %s298, %s299
      %p311 = scmp.eq.s32.totalorder %s37, 1
      %p312 = por %p310, %p311
      %p314 = scmp.ne.s32.totalorder %s299, %s313
      %p315 = scmp.eq.s32.totalorder %s37, 0
      %p316 = por %p314, %p315
      %s317 = ssub.s32 %s31, %s38
      %p318 = scmp.eq.s32.totalorder %s317, 0
      %s320 = sadd.s32 %s319, 1
      %s321 = scalar_select %p318, %s319, %s320
      %p324 = pneg %p318
      %p325 = scmp.eq.s32.totalorder %s31, 1
      %p326 = por %p324, %p325
      %p327 = scmp.ne.s32.totalorder %s319, %s322
      %p328 = scmp.eq.s32.totalorder %s31, 0
      %p329 = por %p327, %p328
      %p330 = scmp.ne.s32.totalorder %s319, %s322
      %p331 = scmp.eq.s32.totalorder %s36, 1
      %p332 = por %p330, %p331
      %p333 = scmp.ne.s32.totalorder %s322, %s323
      %p334 = scmp.eq.s32.totalorder %s36, 0
      %p335 = por %p333, %p334
      %p336 = scmp.ne.s32.totalorder %s322, %s323
      %p337 = scmp.eq.s32.totalorder %s37, 1
      %p338 = por %p336, %p337
      %p340 = scmp.ne.s32.totalorder %s323, %s339
      %p341 = scmp.eq.s32.totalorder %s37, 0
      %p342 = por %p340, %p341
      %p343 = scmp.le.s32.totalorder 1, %s31
      %p344 = scmp.lt.s32.totalorder %s31, 3
      %p345 = pnand %p343, %p344
      %p346 = pneg %p345
      // Predicated region
      $region9: #{tpu_custom_call.1} parent=5 // pred_check
        _
      $region10: #{tpu_custom_call.1} parent=5 // pred_check_branch
        %348 = sbr.rel (%p345) target = $region12
      $region11: #{tpu_custom_call.1} parent=5 // pred_region
        %s349 = ssub.s32 %s31, 1
        // Predicated region
        $region13: #{tpu_custom_call.1} parent=11 // pred_check
          %p350 = pneg %p78
        $region14: #{tpu_custom_call.1} parent=11 // pred_check_branch
          %352 = sbr.rel (%p350) target = $region16
        $region15: #{tpu_custom_call.1} parent=11 // pred_region
          %s354 = ssub.s32 16, 16
          %355 = vsyncadd [#allocation7], %s354
          %s357 = sshll.u32 [#allocation6], 4
          %s358 = int_to_ptr.vmem [resolvable:$true] %s357
          %360 = dma.hbm_to_vmem [thread:$0]  %s1, 16, %s358, [#allocation7]
        $region16: #{tpu_custom_call.1} parent=11 // pred_fallthru
          _
        // Predicated region
        $region17: #{tpu_custom_call.1} parent=11 // pred_check
          %p361 = pneg %p99
        $region18: #{tpu_custom_call.1} parent=11 // pred_check_branch
          %363 = sbr.rel (%p361) target = $region20
        $region19: #{tpu_custom_call.1} parent=11 // pred_region
          %s365 = ssub.s32 16, 16
          %366 = vsyncadd [#allocation7], %s365
          %s368 = sshll.u32 [#allocation8], 4
          %s369 = int_to_ptr.vmem [resolvable:$true] %s368
          %371 = dma.hbm_to_vmem [thread:$0]  %s2, 16, %s369, [#allocation7]
        $region20: #{tpu_custom_call.1} parent=11 // pred_fallthru
          _
        // Predicated region
        $region21: #{tpu_custom_call.1} parent=11 // pred_check
          %p372 = pneg %p120
        $region22: #{tpu_custom_call.1} parent=11 // pred_check_branch
          %374 = sbr.rel (%p372) target = $region24
        $region23: #{tpu_custom_call.1} parent=11 // pred_region
          %s376 = ssub.s32 512, 512
          %377 = vsyncadd [#allocation10], %s376
          %s378 = sshll.u32 [#allocation9], 4
          %s379 = int_to_ptr.vmem [resolvable:$true] %s378
          %384 = dma.hbm_to_vmem [thread:$0]  %s3, 512, %s379, [#allocation10], 128, 128, 8
        $region24: #{tpu_custom_call.1} parent=11 // pred_fallthru
          _
        // Predicated region
        $region25: #{tpu_custom_call.1} parent=11 // pred_check
          %p385 = pneg %p141
        $region26: #{tpu_custom_call.1} parent=11 // pred_check_branch
          %387 = sbr.rel (%p385) target = $region28
        $region27: #{tpu_custom_call.1} parent=11 // pred_region
          %s389 = ssub.s32 16, 16
          %390 = vsyncadd [#allocation10], %s389
          %s392 = sshll.u32 [#allocation11], 4
          %s393 = int_to_ptr.vmem [resolvable:$true] %s392
          %395 = dma.hbm_to_vmem [thread:$0]  %s4, 16, %s393, [#allocation10]
        $region28: #{tpu_custom_call.1} parent=11 // pred_fallthru
          _
        // Predicated region
        $region29: #{tpu_custom_call.1} parent=11 // pred_check
          %p396 = pneg %p162
        $region30: #{tpu_custom_call.1} parent=11 // pred_check_branch
          %398 = sbr.rel (%p396) target = $region32
        $region31: #{tpu_custom_call.1} parent=11 // pred_region
          %s400 = ssub.s32 512, 512
          %401 = vsyncadd [#allocation13], %s400
          %s402 = sshll.u32 [#allocation12], 4
          %s403 = int_to_ptr.vmem [resolvable:$true] %s402
          %408 = dma.hbm_to_vmem [thread:$0]  %s5, 512, %s403, [#allocation13], 128, 128, 8
        $region32: #{tpu_custom_call.1} parent=11 // pred_fallthru
          _
        // Predicated region
        $region33: #{tpu_custom_call.1} parent=11 // pred_check
          %p409 = pneg %p183
        $region34: #{tpu_custom_call.1} parent=11 // pred_check_branch
          %411 = sbr.rel (%p409) target = $region36
        $region35: #{tpu_custom_call.1} parent=11 // pred_region
          %s413 = ssub.s32 16, 16
          %414 = vsyncadd [#allocation13], %s413
          %s416 = sshll.u32 [#allocation14], 4
          %s417 = int_to_ptr.vmem [resolvable:$true] %s416
          %419 = dma.hbm_to_vmem [thread:$0]  %s6, 16, %s417, [#allocation13]
        $region36: #{tpu_custom_call.1} parent=11 // pred_fallthru
          _
        // Predicated region
        $region37: #{tpu_custom_call.1} parent=11 // pred_check
          %p420 = pneg %p204
        $region38: #{tpu_custom_call.1} parent=11 // pred_check_branch
          %422 = sbr.rel (%p420) target = $region40
        $region39: #{tpu_custom_call.1} parent=11 // pred_region
          %s424 = ssub.s32 16, 16
          %425 = vsyncadd [#allocation16], %s424
          %s427 = sshll.u32 [#allocation15], 4
          %s428 = int_to_ptr.vmem [resolvable:$true] %s427
          %430 = dma.hbm_to_vmem [thread:$0]  %s7, 16, %s428, [#allocation16]
        $region40: #{tpu_custom_call.1} parent=11 // pred_fallthru
          _
        // Predicated region
        $region41: #{tpu_custom_call.1} parent=11 // pred_check
          %p431 = pneg %p225
        $region42: #{tpu_custom_call.1} parent=11 // pred_check_branch
          %433 = sbr.rel (%p431) target = $region44
        $region43: #{tpu_custom_call.1} parent=11 // pred_region
          %s435 = ssub.s32 16, 16
          %436 = vsyncadd [#allocation16], %s435
          %s438 = sshll.u32 [#allocation17], 4
          %s439 = int_to_ptr.vmem [resolvable:$true] %s438
          %441 = dma.hbm_to_vmem [thread:$0]  %s8, 16, %s439, [#allocation16]
        $region44: #{tpu_custom_call.1} parent=11 // pred_fallthru
          _
        // Predicated region
        $region45: #{tpu_custom_call.1} parent=11 // pred_check
          %p442 = pneg %p246
        $region46: #{tpu_custom_call.1} parent=11 // pred_check_branch
          %444 = sbr.rel (%p442) target = $region48
        $region47: #{tpu_custom_call.1} parent=11 // pred_region
          %s446 = ssub.s32 512, 512
          %447 = vsyncadd [#allocation19], %s446
          %s448 = sshll.u32 [#allocation18], 4
          %s449 = int_to_ptr.vmem [resolvable:$true] %s448
          %454 = dma.hbm_to_vmem [thread:$0]  %s9, 512, %s449, [#allocation19], 128, 128, 8
        $region48: #{tpu_custom_call.1} parent=11 // pred_fallthru
          _
        // Predicated region
        $region49: #{tpu_custom_call.1} parent=11 // pred_check
          %p455 = pneg %p267
        $region50: #{tpu_custom_call.1} parent=11 // pred_check_branch
          %457 = sbr.rel (%p455) target = $region52
        $region51: #{tpu_custom_call.1} parent=11 // pred_region
          %s459 = ssub.s32 16, 16
          %460 = vsyncadd [#allocation19], %s459
          %s462 = sshll.u32 [#allocation20], 4
          %s463 = int_to_ptr.vmem [resolvable:$true] %s462
          %465 = dma.hbm_to_vmem [thread:$0]  %s10, 16, %s463, [#allocation19]
        $region52: #{tpu_custom_call.1} parent=11 // pred_fallthru
          _
        // Predicated region
        $region53: #{tpu_custom_call.1} parent=11 // pred_check
          %p466 = pneg %p288
        $region54: #{tpu_custom_call.1} parent=11 // pred_check_branch
          %468 = sbr.rel (%p466) target = $region56
        $region55: #{tpu_custom_call.1} parent=11 // pred_region
          %s470 = ssub.s32 2048, 2048
          %471 = vsyncadd [#allocation22], %s470
          %s472 = sshll.u32 [#allocation21], 4
          %s473 = int_to_ptr.vmem [resolvable:$true] %s472
          %478 = dma.hbm_to_vmem [thread:$0]  %s11, 2048, %s473, [#allocation22], 128, 128, 8
        $region56: #{tpu_custom_call.1} parent=11 // pred_fallthru
          _
        // Predicated region
        $region57: #{tpu_custom_call.1} parent=11 // pred_check
          %p479 = pneg %p309
        $region58: #{tpu_custom_call.1} parent=11 // pred_check_branch
          %481 = sbr.rel (%p479) target = $region60
        $region59: #{tpu_custom_call.1} parent=11 // pred_region
          %s483 = ssub.s32 16, 16
          %484 = vsyncadd [#allocation22], %s483
          %s486 = sshll.u32 [#allocation23], 4
          %s487 = int_to_ptr.vmem [resolvable:$true] %s486
          %489 = dma.hbm_to_vmem [thread:$0]  %s12, 16, %s487, [#allocation22]
        $region60: #{tpu_custom_call.1} parent=11 // pred_fallthru
          _
      $region12: #{tpu_custom_call.1} parent=5 // pred_fallthru
        _
      %p490 = scmp.lt.s32.totalorder %s31, 2
      // Predicated region
      $region61: #{tpu_custom_call.1} parent=5 // pred_check
        %p491 = pneg %p490
      $region62: #{tpu_custom_call.1} parent=5 // pred_check_branch
        %493 = sbr.rel (%p491) target = $region64
      $region63: #{tpu_custom_call.1} parent=5 // pred_region
        // Predicated region
        $region65: #{tpu_custom_call.1} parent=63 // pred_check
          %p494 = pneg %p51
        $region66: #{tpu_custom_call.1} parent=63 // pred_check_branch
          %496 = sbr.rel (%p494) target = $region68
        $region67: #{tpu_custom_call.1} parent=63 // pred_region
          %s497 = sand.u32 %s41, 1
          %s498 = scalar_lea.sflag [#allocation4], %s497
          %s499 = sand.u32 %s41, 1
          %s500 = smul.addr %s499, 8
          %s501 = scalar_lea.vmem [#allocation3], %s500
          %s503 = ssub.s32 128, 128
          %504 = vsyncadd %s498, %s503
          %s505 = smul.addr %s31, 128
          %s506 = scalar_lea.hbm %s0, %s505
          %s508 = sshll.u32 %s501, 4
          %s509 = int_to_ptr.vmem [resolvable:$true] %s508
          %511 = dma.hbm_to_vmem [thread:$0]  %s506, 128, %s509, %s498
        $region68: #{tpu_custom_call.1} parent=63 // pred_fallthru
          _
      $region64: #{tpu_custom_call.1} parent=5 // pred_fallthru
        _
      %p512 = scmp.le.s32.totalorder 1, %s31
      %p513 = scmp.lt.s32.totalorder %s31, 3
      %p514 = pnand %p512, %p513
      %p515 = pneg %p514
      // Predicated region
      $region69: #{tpu_custom_call.1} parent=5 // pred_check
        _
      $region70: #{tpu_custom_call.1} parent=5 // pred_check_branch
        %517 = sbr.rel (%p514) target = $region72
      $region71: #{tpu_custom_call.1} parent=5 // pred_region
        %s518 = ssub.s32 %s31, 1
        %s519 = sand.u32 %s44, 1
        %s520 = scalar_lea.sflag [#allocation4], %s519
        %s521 = sand.u32 %s44, 1
        %s522 = smul.addr %s521, 8
        %s523 = scalar_lea.vmem [#allocation3], %s522
        // Predicated region
        $region73: #{tpu_custom_call.1} parent=71 // pred_check
          %p524 = pneg %p57
        $region74: #{tpu_custom_call.1} parent=71 // pred_check_branch
          %526 = sbr.rel (%p524) target = $region76
        $region75: #{tpu_custom_call.1} parent=71 // pred_region
          %527 = dma.done %s520, 128
        $region76: #{tpu_custom_call.1} parent=71 // pred_fallthru
          _
        // Predicated region
        $region77: #{tpu_custom_call.1} parent=71 // pred_check
          %p528 = pneg %p78
        $region78: #{tpu_custom_call.1} parent=71 // pred_check_branch
          %530 = sbr.rel (%p528) target = $region80
        $region79: #{tpu_custom_call.1} parent=71 // pred_region
          %531 = dma.done [#allocation7], 16
        $region80: #{tpu_custom_call.1} parent=71 // pred_fallthru
          _
        // Predicated region
        $region81: #{tpu_custom_call.1} parent=71 // pred_check
          %p532 = pneg %p99
        $region82: #{tpu_custom_call.1} parent=71 // pred_check_branch
          %534 = sbr.rel (%p532) target = $region84
        $region83: #{tpu_custom_call.1} parent=71 // pred_region
          %535 = dma.done [#allocation7], 16
        $region84: #{tpu_custom_call.1} parent=71 // pred_fallthru
          _
        // Predicated region
        $region85: #{tpu_custom_call.1} parent=71 // pred_check
          %p536 = pneg %p120
        $region86: #{tpu_custom_call.1} parent=71 // pred_check_branch
          %538 = sbr.rel (%p536) target = $region88
        $region87: #{tpu_custom_call.1} parent=71 // pred_region
          %539 = dma.done [#allocation10], 512
        $region88: #{tpu_custom_call.1} parent=71 // pred_fallthru
          _
        // Predicated region
        $region89: #{tpu_custom_call.1} parent=71 // pred_check
          %p540 = pneg %p141
        $region90: #{tpu_custom_call.1} parent=71 // pred_check_branch
          %542 = sbr.rel (%p540) target = $region92
        $region91: #{tpu_custom_call.1} parent=71 // pred_region
          %543 = dma.done [#allocation10], 16
        $region92: #{tpu_custom_call.1} parent=71 // pred_fallthru
          _
        // Predicated region
        $region93: #{tpu_custom_call.1} parent=71 // pred_check
          %p544 = pneg %p162
        $region94: #{tpu_custom_call.1} parent=71 // pred_check_branch
          %546 = sbr.rel (%p544) target = $region96
        $region95: #{tpu_custom_call.1} parent=71 // pred_region
          %547 = dma.done [#allocation13], 512
        $region96: #{tpu_custom_call.1} parent=71 // pred_fallthru
          _
        // Predicated region
        $region97: #{tpu_custom_call.1} parent=71 // pred_check
          %p548 = pneg %p183
        $region98: #{tpu_custom_call.1} parent=71 // pred_check_branch
          %550 = sbr.rel (%p548) target = $region100
        $region99: #{tpu_custom_call.1} parent=71 // pred_region
          %551 = dma.done [#allocation13], 16
        $region100: #{tpu_custom_call.1} parent=71 // pred_fallthru
          _
        // Predicated region
        $region101: #{tpu_custom_call.1} parent=71 // pred_check
          %p552 = pneg %p204
        $region102: #{tpu_custom_call.1} parent=71 // pred_check_branch
          %554 = sbr.rel (%p552) target = $region104
        $region103: #{tpu_custom_call.1} parent=71 // pred_region
          %555 = dma.done [#allocation16], 16
        $region104: #{tpu_custom_call.1} parent=71 // pred_fallthru
          _
        // Predicated region
        $region105: #{tpu_custom_call.1} parent=71 // pred_check
          %p556 = pneg %p225
        $region106: #{tpu_custom_call.1} parent=71 // pred_check_branch
          %558 = sbr.rel (%p556) target = $region108
        $region107: #{tpu_custom_call.1} parent=71 // pred_region
          %559 = dma.done [#allocation16], 16
        $region108: #{tpu_custom_call.1} parent=71 // pred_fallthru
          _
        // Predicated region
        $region109: #{tpu_custom_call.1} parent=71 // pred_check
          %p560 = pneg %p246
        $region110: #{tpu_custom_call.1} parent=71 // pred_check_branch
          %562 = sbr.rel (%p560) target = $region112
        $region111: #{tpu_custom_call.1} parent=71 // pred_region
          %563 = dma.done [#allocation19], 512
        $region112: #{tpu_custom_call.1} parent=71 // pred_fallthru
          _
        // Predicated region
        $region113: #{tpu_custom_call.1} parent=71 // pred_check
          %p564 = pneg %p267
        $region114: #{tpu_custom_call.1} parent=71 // pred_check_branch
          %566 = sbr.rel (%p564) target = $region116
        $region115: #{tpu_custom_call.1} parent=71 // pred_region
          %567 = dma.done [#allocation19], 16
        $region116: #{tpu_custom_call.1} parent=71 // pred_fallthru
          _
        // Predicated region
        $region117: #{tpu_custom_call.1} parent=71 // pred_check
          %p568 = pneg %p288
        $region118: #{tpu_custom_call.1} parent=71 // pred_check_branch
          %570 = sbr.rel (%p568) target = $region120
        $region119: #{tpu_custom_call.1} parent=71 // pred_region
          %571 = dma.done [#allocation22], 2048
        $region120: #{tpu_custom_call.1} parent=71 // pred_fallthru
          _
        // Predicated region
        $region121: #{tpu_custom_call.1} parent=71 // pred_check
          %p572 = pneg %p309
        $region122: #{tpu_custom_call.1} parent=71 // pred_check_branch
          %574 = sbr.rel (%p572) target = $region124
        $region123: #{tpu_custom_call.1} parent=71 // pred_region
          %575 = dma.done [#allocation22], 16
        $region124: #{tpu_custom_call.1} parent=71 // pred_fallthru
          _
        %s576 = sand.u32 %s44, 1
        %s577 = scalar_lea.sflag [#allocation4], %s576
        %s578 = sand.u32 %s44, 1
        %s579 = smul.addr %s578, 8
        %s580 = scalar_lea.vmem [#allocation3], %s579
        %p581 = pneg %p57
        %p582 = pneg %p54
        %p583 = pneg %p78
        %p584 = pneg %p75
        %p585 = pneg %p99
        %p586 = pneg %p96
        %p587 = pneg %p120
        %p588 = pneg %p117
        %p589 = pneg %p141
        %p590 = pneg %p138
        %p591 = pneg %p162
        %p592 = pneg %p159
        %p593 = pneg %p183
        %p594 = pneg %p180
        %p595 = pneg %p204
        %p596 = pneg %p201
        %p597 = pneg %p225
        %p598 = pneg %p222
        %p599 = pneg %p246
        %p600 = pneg %p243
        %p601 = pneg %p267
        %p602 = pneg %p264
        %p603 = pneg %p288
        %p604 = pneg %p285
        %p605 = pneg %p309
        %p606 = pneg %p306
        %p607 = pneg %p335
        %p608 = pneg %p332
        %s609 = sand.u32 %s322, 1
        %s610 = scalar_lea.sflag [#allocation5], %s609
        %s611 = sand.u32 %s322, 1
        %s612 = smul.addr %s611, 8
        %s613 = scalar_lea.vmem [#allocation24], %s612
        %v614 = vld [vmem:[%s523] sm:$0xff]
        %v615 = vld [vmem:[#allocation6] sm:$0x1]
        %v616 = vld [vmem:[#allocation8] sm:$0x1]
        %vm617 = vcmask 261120
        %v618 = vsel %vm617, %v614, 0.0
        %619 = vadd.xlane.f32.xlu0 %v618
        %v620 = vpop.xlane.xlu0 %619
        %v621 = vrcp.pop 32.0
        %v622 = vmul.f32 %v620, %v621
        %v623 = vmul.f32 %v614, %v614
        %v624 = vsel %vm617, %v623, 0.0
        %625 = vadd.xlane.f32.xlu0 %v624
        %v626 = vpop.xlane.xlu0 %625
        %v627 = vmul.f32 %v626, %v621
        %v628 = vmul.f32 %v622, %v622
        %v629 = vsub.f32 %v627, %v628
        %v630 = vsub.f32 %v614, %v622
        %v631 = vadd.f32 %v629, 1e-05
        %v632 = vrsqrt.pop %v631
        %v633 = vmul.f32 %v630, %v632
        %v635 = vlaneseq
        %v636 = vshrl.u32 %v635, 7
        %v637 = vsub.s32 0, %v636
        %v638 = vrot.slane %v615, %v637
        %v640 = vmul.f32 %v633, %v638
        %v642 = vlaneseq
        %v643 = vshrl.u32 %v642, 7
        %v644 = vsub.s32 0, %v643
        %v645 = vrot.slane %v616, %v644
        %v647 = vadd.f32 %v640, %v645
        %v648 = vld [vmem:[#allocation9] sm:$0xff]
        %v649 = vld [vmem:[#allocation9 + $0x8] sm:$0xff]
        %v650 = vld [vmem:[#allocation9 + $0x10] sm:$0xff]
        %v651 = vld [vmem:[#allocation9 + $0x18] sm:$0xff]
        %v652 = vld [vmem:[#allocation11] sm:$0x1]
        %v654 = vlaneseq
        %v655 = vshrl.u32 %v654, 7
        %v656 = vsub.s32 0, %v655
        %v657 = vrot.slane %v652, %v656
        %v660 = vsel %vm617, %v647, 0
        %662 = vmatprep.subr.mxu0 0.0
        %663 = vmatpush1.msra.mxu0 %v648
        %664 = vmatprep.subr.mxu0 0.0
        %665 = vmatpush1.msra.mxu0 %v649
        %666 = vmatprep.subr.mxu0 0.0
        %667 = vmatpush1.msra.mxu0 %v650
        %668 = vmatprep.subr.mxu0 0.0
        %669 = vmatpush1.msra.mxu0 %v651
        %670 = vmatprep.subr.mxu0 0.0
        %671 = vmatpush1.msra.mxu0 0.0
        %672 = vmatprep.subr.mxu0 0.0
        %673 = vmatpush1.msra.mxu0 0.0
        %674 = vmatprep.subr.mxu0 0.0
        %675 = vmatpush1.msra.mxu0 0.0
        %676 = vmatprep.subr.mxu0 0.0
        %677 = vmatpush1.msra.mxu0 0.0
        %678 = vmatprep.subr.mxu0 0.0
        %679 = vmatpush1.msra.mxu0 0.0
        %680 = vmatprep.subr.mxu0 0.0
        %681 = vmatpush1.msra.mxu0 0.0
        %682 = vmatprep.subr.mxu0 0.0
        %683 = vmatpush1.msra.mxu0 0.0
        %684 = vmatprep.subr.mxu0 0.0
        %685 = vmatpush1.msra.mxu0 0.0
        %686 = vmatprep.subr.mxu0 0.0
        %687 = vmatpush1.msra.mxu0 0.0
        %688 = vmatprep.subr.mxu0 0.0
        %689 = vmatpush1.msra.mxu0 0.0
        %690 = vmatprep.subr.mxu0 0.0
        %691 = vmatpush1.msra.mxu0 0.0
        %692 = vmatprep.subr.mxu0 0.0
        %693 = vmatpush1.msra.mxu0 0.0
        %694 = vmatprep.subr.mxu0 0.0
        %695 = vmatpush1.msra.mxu0 0.0
        %696 = vmatprep.subr.mxu0 0.0
        %697 = vmatpush1.msra.mxu0 0.0
        %698 = vmatprep.subr.mxu0 0.0
        %699 = vmatpush1.msra.mxu0 0.0
        %700 = vmatprep.subr.mxu0 0.0
        %701 = vmatpush1.msra.mxu0 0.0
        %702 = vmatprep.subr.mxu0 0.0
        %703 = vmatpush1.msra.mxu0 0.0
        %704 = vmatprep.subr.mxu0 0.0
        %705 = vmatpush1.msra.mxu0 0.0
        %706 = vmatprep.subr.mxu0 0.0
        %707 = vmatpush1.msra.mxu0 0.0
        %708 = vmatprep.subr.mxu0 0.0
        %709 = vmatpush1.msra.mxu0 0.0
        %710 = vmatprep.subr.mxu0 0.0
        %711 = vmatpush1.msra.mxu0 0.0
        %712 = vmatprep.subr.mxu0 0.0
        %713 = vmatpush1.msra.mxu0 0.0
        %714 = vmatprep.subr.mxu0 0.0
        %715 = vmatpush1.msra.mxu0 0.0
        %716 = vmatprep.subr.mxu0 0.0
        %717 = vmatpush1.msra.mxu0 0.0
        %718 = vmatprep.subr.mxu0 0.0
        %719 = vmatpush1.msra.mxu0 0.0
        %720 = vmatprep.subr.mxu0 0.0
        %721 = vmatpush1.msra.mxu0 0.0
        %722 = vmatprep.subr.mxu0 0.0
        %723 = vmatpush1.msra.mxu0 0.0
        %724 = vmatprep.subr.mxu0 0.0
        %725 = vmatpush1.msra.mxu0 0.0
        %726 = vmatprep.mubr.f32.mxu0 0.0
        %727 = vmatmul.mubr.f32.gmra.mrb[0].mxu0 %v660
        %v728 = vpop.f32.mrb[0].mxu0
        %v729 = vadd.f32 %v657, %v728
        %v730 = vpop.f32.mrb[0].mxu0
        %731 = vdwg.mxu0
        %v732 = vmul.f32 %v729, 0.35355338
        %734 = vrot.lane.b32.xlu0 %v729, 96
        %v735 = vpop.permute.xlu0 %734
        %vm736 = vcmask 64512
        %v738 = vsel %vm736, %v732, 0
        %v740 = vsel %vm736, %v735, 0
        %742 = vmatprep.subr.mxu0 0.0
        %743 = vmatpush1.xpose.msra.mxu0 %v740
        %744 = vmatprep.subr.mxu0 0.0
        %745 = vmatpush1.xpose.msra.mxu0 0.0
        %746 = vmatprep.subr.mxu0 0.0
        %747 = vmatpush1.xpose.msra.mxu0 0.0
        %748 = vmatprep.subr.mxu0 0.0
        %749 = vmatpush1.xpose.msra.mxu0 0.0
        %750 = vmatprep.subr.mxu0 0.0
        %751 = vmatpush1.xpose.msra.mxu0 0.0
        %752 = vmatprep.subr.mxu0 0.0
        %753 = vmatpush1.xpose.msra.mxu0 0.0
        %754 = vmatprep.subr.mxu0 0.0
        %755 = vmatpush1.xpose.msra.mxu0 0.0
        %756 = vmatprep.subr.mxu0 0.0
        %757 = vmatpush1.xpose.msra.mxu0 0.0
        %758 = vmatprep.subr.mxu0 0.0
        %759 = vmatpush1.xpose.msra.mxu0 0.0
        %760 = vmatprep.subr.mxu0 0.0
        %761 = vmatpush1.xpose.msra.mxu0 0.0
        %762 = vmatprep.subr.mxu0 0.0
        %763 = vmatpush1.xpose.msra.mxu0 0.0
        %764 = vmatprep.subr.mxu0 0.0
        %765 = vmatpush1.xpose.msra.mxu0 0.0
        %766 = vmatprep.subr.mxu0 0.0
        %767 = vmatpush1.xpose.msra.mxu0 0.0
        %768 = vmatprep.subr.mxu0 0.0
        %769 = vmatpush1.xpose.msra.mxu0 0.0
        %770 = vmatprep.subr.mxu0 0.0
        %771 = vmatpush1.xpose.msra.mxu0 0.0
        %772 = vmatprep.subr.mxu0 0.0
        %773 = vmatpush1.xpose.msra.mxu0 0.0
        %774 = vmatprep.subr.mxu0 0.0
        %775 = vmatpush1.xpose.msra.mxu0 0.0
        %776 = vmatprep.subr.mxu0 0.0
        %777 = vmatpush1.xpose.msra.mxu0 0.0
        %778 = vmatprep.subr.mxu0 0.0
        %779 = vmatpush1.xpose.msra.mxu0 0.0
        %780 = vmatprep.subr.mxu0 0.0
        %781 = vmatpush1.xpose.msra.mxu0 0.0
        %782 = vmatprep.subr.mxu0 0.0
        %783 = vmatpush1.xpose.msra.mxu0 0.0
        %784 = vmatprep.subr.mxu0 0.0
        %785 = vmatpush1.xpose.msra.mxu0 0.0
        %786 = vmatprep.subr.mxu0 0.0
        %787 = vmatpush1.xpose.msra.mxu0 0.0
        %788 = vmatprep.subr.mxu0 0.0
        %789 = vmatpush1.xpose.msra.mxu0 0.0
        %790 = vmatprep.subr.mxu0 0.0
        %791 = vmatpush1.xpose.msra.mxu0 0.0
        %792 = vmatprep.subr.mxu0 0.0
        %793 = vmatpush1.xpose.msra.mxu0 0.0
        %794 = vmatprep.subr.mxu0 0.0
        %795 = vmatpush1.xpose.msra.mxu0 0.0
        %796 = vmatprep.subr.mxu0 0.0
        %797 = vmatpush1.xpose.msra.mxu0 0.0
        %798 = vmatprep.subr.mxu0 0.0
        %799 = vmatpush1.xpose.msra.mxu0 0.0
        %800 = vmatprep.subr.mxu0 0.0
        %801 = vmatpush1.xpose.msra.mxu0 0.0
        %802 = vmatprep.subr.mxu0 0.0
        %803 = vmatpush1.xpose.msra.mxu0 0.0
        %804 = vmatprep.subr.mxu0 0.0
        %805 = vmatpush1.xpose.msra.mxu0 0.0
        %806 = vmatprep.mubr.f32.mxu0 0.0
        %807 = vmatmul.mubr.f32.gmra.mrb[0].mxu0 %v738
        %v808 = vpop.f32.mrb[0].mxu0
        %v809 = vadd.f32 0.0, %v808
        %v810 = vpop.f32.mrb[0].mxu0
        %811 = vdwg.mxu0
        %v812 = vsel %vm736, %v809, -inf
        %813 = vmax.xlane.f32.xlu0 %v812
        %v814 = vpop.xlane.xlu0 %813
        %v815 = vsub.f32 %v809, %v814
        %v816 = vmul.f32 %v815, 1.442695
        %v817 = vpow.pop %v816
        %v818 = vsel %vm736, %v817, 0.0
        %819 = vadd.xlane.f32.xlu0 %v818
        %v820 = vpop.xlane.xlu0 %819
        %v821 = vrcp.pop %v820
        %v822 = vmul.f32 %v817, %v821
        %823 = vrot.lane.b32.xlu0 %v729, 64
        %v824 = vpop.permute.xlu0 %823
        %v827 = vsel %vm736, %v822, 0
        %829 = vmatprep.subr.mxu0 0.0
        %830 = vmatpush1.msra.mxu0 %v824
        %831 = vmatprep.subr.mxu0 0.0
        %832 = vmatpush1.msra.mxu0 0.0
        %833 = vmatprep.subr.mxu0 0.0
        %834 = vmatpush1.msra.mxu0 0.0
        %835 = vmatprep.subr.mxu0 0.0
        %836 = vmatpush1.msra.mxu0 0.0
        %837 = vmatprep.subr.mxu0 0.0
        %838 = vmatpush1.msra.mxu0 0.0
        %839 = vmatprep.subr.mxu0 0.0
        %840 = vmatpush1.msra.mxu0 0.0
        %841 = vmatprep.subr.mxu0 0.0
        %842 = vmatpush1.msra.mxu0 0.0
        %843 = vmatprep.subr.mxu0 0.0
        %844 = vmatpush1.msra.mxu0 0.0
        %845 = vmatprep.subr.mxu0 0.0
        %846 = vmatpush1.msra.mxu0 0.0
        %847 = vmatprep.subr.mxu0 0.0
        %848 = vmatpush1.msra.mxu0 0.0
        %849 = vmatprep.subr.mxu0 0.0
        %850 = vmatpush1.msra.mxu0 0.0
        %851 = vmatprep.subr.mxu0 0.0
        %852 = vmatpush1.msra.mxu0 0.0
        %853 = vmatprep.subr.mxu0 0.0
        %854 = vmatpush1.msra.mxu0 0.0
        %855 = vmatprep.subr.mxu0 0.0
        %856 = vmatpush1.msra.mxu0 0.0
        %857 = vmatprep.subr.mxu0 0.0
        %858 = vmatpush1.msra.mxu0 0.0
        %859 = vmatprep.subr.mxu0 0.0
        %860 = vmatpush1.msra.mxu0 0.0
        %861 = vmatprep.subr.mxu0 0.0
        %862 = vmatpush1.msra.mxu0 0.0
        %863 = vmatprep.subr.mxu0 0.0
        %864 = vmatpush1.msra.mxu0 0.0
        %865 = vmatprep.subr.mxu0 0.0
        %866 = vmatpush1.msra.mxu0 0.0
        %867 = vmatprep.subr.mxu0 0.0
        %868 = vmatpush1.msra.mxu0 0.0
        %869 = vmatprep.subr.mxu0 0.0
        %870 = vmatpush1.msra.mxu0 0.0
        %871 = vmatprep.subr.mxu0 0.0
        %872 = vmatpush1.msra.mxu0 0.0
        %873 = vmatprep.subr.mxu0 0.0
        %874 = vmatpush1.msra.mxu0 0.0
        %875 = vmatprep.subr.mxu0 0.0
        %876 = vmatpush1.msra.mxu0 0.0
        %877 = vmatprep.subr.mxu0 0.0
        %878 = vmatpush1.msra.mxu0 0.0
        %879 = vmatprep.subr.mxu0 0.0
        %880 = vmatpush1.msra.mxu0 0.0
        %881 = vmatprep.subr.mxu0 0.0
        %882 = vmatpush1.msra.mxu0 0.0
        %883 = vmatprep.subr.mxu0 0.0
        %884 = vmatpush1.msra.mxu0 0.0
        %885 = vmatprep.subr.mxu0 0.0
        %886 = vmatpush1.msra.mxu0 0.0
        %887 = vmatprep.subr.mxu0 0.0
        %888 = vmatpush1.msra.mxu0 0.0
        %889 = vmatprep.subr.mxu0 0.0
        %890 = vmatpush1.msra.mxu0 0.0
        %891 = vmatprep.subr.mxu0 0.0
        %892 = vmatpush1.msra.mxu0 0.0
        %893 = vmatprep.mubr.f32.mxu0 0.0
        %894 = vmatmul.mubr.f32.gmra.mrb[0].mxu0 %v827
        %v895 = vpop.f32.mrb[0].mxu0
        %v896 = vadd.f32 0.0, %v895
        %v897 = vpop.f32.mrb[0].mxu0
        %898 = vdwg.mxu0
        %899 = vst.msk [vmem:[#allocation2] sm:$0xff] %vm736, %v896
        %900 = vrot.lane.b32.xlu0 %v732, 120
        %v901 = vpop.permute.xlu0 %900
        %902 = vrot.lane.b32.xlu0 %v729, 88
        %v903 = vpop.permute.xlu0 %902
        %v904 = vsel %vm736, %v901, 0
        %v906 = vsel %vm736, %v903, 0
        %908 = vmatprep.subr.mxu0 0.0
        %909 = vmatpush1.xpose.msra.mxu0 %v906
        %910 = vmatprep.subr.mxu0 0.0
        %911 = vmatpush1.xpose.msra.mxu0 0.0
        %912 = vmatprep.subr.mxu0 0.0
        %913 = vmatpush1.xpose.msra.mxu0 0.0
        %914 = vmatprep.subr.mxu0 0.0
        %915 = vmatpush1.xpose.msra.mxu0 0.0
        %916 = vmatprep.subr.mxu0 0.0
        %917 = vmatpush1.xpose.msra.mxu0 0.0
        %918 = vmatprep.subr.mxu0 0.0
        %919 = vmatpush1.xpose.msra.mxu0 0.0
        %920 = vmatprep.subr.mxu0 0.0
        %921 = vmatpush1.xpose.msra.mxu0 0.0
        %922 = vmatprep.subr.mxu0 0.0
        %923 = vmatpush1.xpose.msra.mxu0 0.0
        %924 = vmatprep.subr.mxu0 0.0
        %925 = vmatpush1.xpose.msra.mxu0 0.0
        %926 = vmatprep.subr.mxu0 0.0
        %927 = vmatpush1.xpose.msra.mxu0 0.0
        %928 = vmatprep.subr.mxu0 0.0
        %929 = vmatpush1.xpose.msra.mxu0 0.0
        %930 = vmatprep.subr.mxu0 0.0
        %931 = vmatpush1.xpose.msra.mxu0 0.0
        %932 = vmatprep.subr.mxu0 0.0
        %933 = vmatpush1.xpose.msra.mxu0 0.0
        %934 = vmatprep.subr.mxu0 0.0
        %935 = vmatpush1.xpose.msra.mxu0 0.0
        %936 = vmatprep.subr.mxu0 0.0
        %937 = vmatpush1.xpose.msra.mxu0 0.0
        %938 = vmatprep.subr.mxu0 0.0
        %939 = vmatpush1.xpose.msra.mxu0 0.0
        %940 = vmatprep.subr.mxu0 0.0
        %941 = vmatpush1.xpose.msra.mxu0 0.0
        %942 = vmatprep.subr.mxu0 0.0
        %943 = vmatpush1.xpose.msra.mxu0 0.0
        %944 = vmatprep.subr.mxu0 0.0
        %945 = vmatpush1.xpose.msra.mxu0 0.0
        %946 = vmatprep.subr.mxu0 0.0
        %947 = vmatpush1.xpose.msra.mxu0 0.0
        %948 = vmatprep.subr.mxu0 0.0
        %949 = vmatpush1.xpose.msra.mxu0 0.0
        %950 = vmatprep.subr.mxu0 0.0
        %951 = vmatpush1.xpose.msra.mxu0 0.0
        %952 = vmatprep.subr.mxu0 0.0
        %953 = vmatpush1.xpose.msra.mxu0 0.0
        %954 = vmatprep.subr.mxu0 0.0
        %955 = vmatpush1.xpose.msra.mxu0 0.0
        %956 = vmatprep.subr.mxu0 0.0
        %957 = vmatpush1.xpose.msra.mxu0 0.0
        %958 = vmatprep.subr.mxu0 0.0
        %959 = vmatpush1.xpose.msra.mxu0 0.0
        %960 = vmatprep.subr.mxu0 0.0
        %961 = vmatpush1.xpose.msra.mxu0 0.0
        %962 = vmatprep.subr.mxu0 0.0
        %963 = vmatpush1.xpose.msra.mxu0 0.0
        %964 = vmatprep.subr.mxu0 0.0
        %965 = vmatpush1.xpose.msra.mxu0 0.0
        %966 = vmatprep.subr.mxu0 0.0
        %967 = vmatpush1.xpose.msra.mxu0 0.0
        %968 = vmatprep.subr.mxu0 0.0
        %969 = vmatpush1.xpose.msra.mxu0 0.0
        %970 = vmatprep.subr.mxu0 0.0
        %971 = vmatpush1.xpose.msra.mxu0 0.0
        %972 = vmatprep.mubr.f32.mxu0 0.0
        %973 = vmatmul.mubr.f32.gmra.mrb[0].mxu0 %v904
        %v974 = vpop.f32.mrb[0].mxu0
        %v975 = vadd.f32 0.0, %v974
        %v976 = vpop.f32.mrb[0].mxu0
        %977 = vdwg.mxu0
        %v978 = vsel %vm736, %v975, -inf
        %979 = vmax.xlane.f32.xlu0 %v978
        %v980 = vpop.xlane.xlu0 %979
        %v981 = vsub.f32 %v975, %v980
        %v982 = vmul.f32 %v981, 1.442695
        %v983 = vpow.pop %v982
        %v984 = vsel %vm736, %v983, 0.0
        %985 = vadd.xlane.f32.xlu0 %v984
        %v986 = vpop.xlane.xlu0 %985
        %v987 = vrcp.pop %v986
        %v988 = vmul.f32 %v983, %v987
        %989 = vrot.lane.b32.xlu0 %v729, 56
        %v990 = vpop.permute.xlu0 %989
        %v993 = vsel %vm736, %v988, 0
        %995 = vmatprep.subr.mxu0 0.0
        %996 = vmatpush1.msra.mxu0 %v990
        %997 = vmatprep.subr.mxu0 0.0
        %998 = vmatpush1.msra.mxu0 0.0
        %999 = vmatprep.subr.mxu0 0.0
        %1000 = vmatpush1.msra.mxu0 0.0
        %1001 = vmatprep.subr.mxu0 0.0
        %1002 = vmatpush1.msra.mxu0 0.0
        %1003 = vmatprep.subr.mxu0 0.0
        %1004 = vmatpush1.msra.mxu0 0.0
        %1005 = vmatprep.subr.mxu0 0.0
        %1006 = vmatpush1.msra.mxu0 0.0
        %1007 = vmatprep.subr.mxu0 0.0
        %1008 = vmatpush1.msra.mxu0 0.0
        %1009 = vmatprep.subr.mxu0 0.0
        %1010 = vmatpush1.msra.mxu0 0.0
        %1011 = vmatprep.subr.mxu0 0.0
        %1012 = vmatpush1.msra.mxu0 0.0
        %1013 = vmatprep.subr.mxu0 0.0
        %1014 = vmatpush1.msra.mxu0 0.0
        %1015 = vmatprep.subr.mxu0 0.0
        %1016 = vmatpush1.msra.mxu0 0.0
        %1017 = vmatprep.subr.mxu0 0.0
        %1018 = vmatpush1.msra.mxu0 0.0
        %1019 = vmatprep.subr.mxu0 0.0
        %1020 = vmatpush1.msra.mxu0 0.0
        %1021 = vmatprep.subr.mxu0 0.0
        %1022 = vmatpush1.msra.mxu0 0.0
        %1023 = vmatprep.subr.mxu0 0.0
        %1024 = vmatpush1.msra.mxu0 0.0
        %1025 = vmatprep.subr.mxu0 0.0
        %1026 = vmatpush1.msra.mxu0 0.0
        %1027 = vmatprep.subr.mxu0 0.0
        %1028 = vmatpush1.msra.mxu0 0.0
        %1029 = vmatprep.subr.mxu0 0.0
        %1030 = vmatpush1.msra.mxu0 0.0
        %1031 = vmatprep.subr.mxu0 0.0
        %1032 = vmatpush1.msra.mxu0 0.0
        %1033 = vmatprep.subr.mxu0 0.0
        %1034 = vmatpush1.msra.mxu0 0.0
        %1035 = vmatprep.subr.mxu0 0.0
        %1036 = vmatpush1.msra.mxu0 0.0
        %1037 = vmatprep.subr.mxu0 0.0
        %1038 = vmatpush1.msra.mxu0 0.0
        %1039 = vmatprep.subr.mxu0 0.0
        %1040 = vmatpush1.msra.mxu0 0.0
        %1041 = vmatprep.subr.mxu0 0.0
        %1042 = vmatpush1.msra.mxu0 0.0
        %1043 = vmatprep.subr.mxu0 0.0
        %1044 = vmatpush1.msra.mxu0 0.0
        %1045 = vmatprep.subr.mxu0 0.0
        %1046 = vmatpush1.msra.mxu0 0.0
        %1047 = vmatprep.subr.mxu0 0.0
        %1048 = vmatpush1.msra.mxu0 0.0
        %1049 = vmatprep.subr.mxu0 0.0
        %1050 = vmatpush1.msra.mxu0 0.0
        %1051 = vmatprep.subr.mxu0 0.0
        %1052 = vmatpush1.msra.mxu0 0.0
        %1053 = vmatprep.subr.mxu0 0.0
        %1054 = vmatpush1.msra.mxu0 0.0
        %1055 = vmatprep.subr.mxu0 0.0
        %1056 = vmatpush1.msra.mxu0 0.0
        %1057 = vmatprep.subr.mxu0 0.0
        %1058 = vmatpush1.msra.mxu0 0.0
        %1059 = vmatprep.mubr.f32.mxu0 0.0
        %1060 = vmatmul.mubr.f32.gmra.mrb[0].mxu0 %v993
        %v1061 = vpop.f32.mrb[0].mxu0
        %v1062 = vadd.f32 0.0, %v1061
        %v1063 = vpop.f32.mrb[0].mxu0
        %1064 = vdwg.mxu0
        %1066 = vrot.lane.b32.xlu0 %v1062, 8
        %v1067 = vpop.permute.xlu0 %1066
        %vm1069 = vcmask 130112
        %1070 = vst.msk [vmem:[#allocation2] sm:$0xff] %vm1069, %v1067
        %1071 = vrot.lane.b32.xlu0 %v732, 112
        %v1072 = vpop.permute.xlu0 %1071
        %1073 = vrot.lane.b32.xlu0 %v729, 80
        %v1074 = vpop.permute.xlu0 %1073
        %v1075 = vsel %vm736, %v1072, 0
        %v1077 = vsel %vm736, %v1074, 0
        %1079 = vmatprep.subr.mxu0 0.0
        %1080 = vmatpush1.xpose.msra.mxu0 %v1077
        %1081 = vmatprep.subr.mxu0 0.0
        %1082 = vmatpush1.xpose.msra.mxu0 0.0
        %1083 = vmatprep.subr.mxu0 0.0
        %1084 = vmatpush1.xpose.msra.mxu0 0.0
        %1085 = vmatprep.subr.mxu0 0.0
        %1086 = vmatpush1.xpose.msra.mxu0 0.0
        %1087 = vmatprep.subr.mxu0 0.0
        %1088 = vmatpush1.xpose.msra.mxu0 0.0
        %1089 = vmatprep.subr.mxu0 0.0
        %1090 = vmatpush1.xpose.msra.mxu0 0.0
        %1091 = vmatprep.subr.mxu0 0.0
        %1092 = vmatpush1.xpose.msra.mxu0 0.0
        %1093 = vmatprep.subr.mxu0 0.0
        %1094 = vmatpush1.xpose.msra.mxu0 0.0
        %1095 = vmatprep.subr.mxu0 0.0
        %1096 = vmatpush1.xpose.msra.mxu0 0.0
        %1097 = vmatprep.subr.mxu0 0.0
        %1098 = vmatpush1.xpose.msra.mxu0 0.0
        %1099 = vmatprep.subr.mxu0 0.0
        %1100 = vmatpush1.xpose.msra.mxu0 0.0
        %1101 = vmatprep.subr.mxu0 0.0
        %1102 = vmatpush1.xpose.msra.mxu0 0.0
        %1103 = vmatprep.subr.mxu0 0.0
        %1104 = vmatpush1.xpose.msra.mxu0 0.0
        %1105 = vmatprep.subr.mxu0 0.0
        %1106 = vmatpush1.xpose.msra.mxu0 0.0
        %1107 = vmatprep.subr.mxu0 0.0
        %1108 = vmatpush1.xpose.msra.mxu0 0.0
        %1109 = vmatprep.subr.mxu0 0.0
        %1110 = vmatpush1.xpose.msra.mxu0 0.0
        %1111 = vmatprep.subr.mxu0 0.0
        %1112 = vmatpush1.xpose.msra.mxu0 0.0
        %1113 = vmatprep.subr.mxu0 0.0
        %1114 = vmatpush1.xpose.msra.mxu0 0.0
        %1115 = vmatprep.subr.mxu0 0.0
        %1116 = vmatpush1.xpose.msra.mxu0 0.0
        %1117 = vmatprep.subr.mxu0 0.0
        %1118 = vmatpush1.xpose.msra.mxu0 0.0
        %1119 = vmatprep.subr.mxu0 0.0
        %1120 = vmatpush1.xpose.msra.mxu0 0.0
        %1121 = vmatprep.subr.mxu0 0.0
        %1122 = vmatpush1.xpose.msra.mxu0 0.0
        %1123 = vmatprep.subr.mxu0 0.0
        %1124 = vmatpush1.xpose.msra.mxu0 0.0
        %1125 = vmatprep.subr.mxu0 0.0
        %1126 = vmatpush1.xpose.msra.mxu0 0.0
        %1127 = vmatprep.subr.mxu0 0.0
        %1128 = vmatpush1.xpose.msra.mxu0 0.0
        %1129 = vmatprep.subr.mxu0 0.0
        %1130 = vmatpush1.xpose.msra.mxu0 0.0
        %1131 = vmatprep.subr.mxu0 0.0
        %1132 = vmatpush1.xpose.msra.mxu0 0.0
        %1133 = vmatprep.subr.mxu0 0.0
        %1134 = vmatpush1.xpose.msra.mxu0 0.0
        %1135 = vmatprep.subr.mxu0 0.0
        %1136 = vmatpush1.xpose.msra.mxu0 0.0
        %1137 = vmatprep.subr.mxu0 0.0
        %1138 = vmatpush1.xpose.msra.mxu0 0.0
        %1139 = vmatprep.subr.mxu0 0.0
        %1140 = vmatpush1.xpose.msra.mxu0 0.0
        %1141 = vmatprep.subr.mxu0 0.0
        %1142 = vmatpush1.xpose.msra.mxu0 0.0
        %1143 = vmatprep.mubr.f32.mxu0 0.0
        %1144 = vmatmul.mubr.f32.gmra.mrb[0].mxu0 %v1075
        %v1145 = vpop.f32.mrb[0].mxu0
        %v1146 = vadd.f32 0.0, %v1145
        %v1147 = vpop.f32.mrb[0].mxu0
        %1148 = vdwg.mxu0
        %v1149 = vsel %vm736, %v1146, -inf
        %1150 = vmax.xlane.f32.xlu0 %v1149
        %v1151 = vpop.xlane.xlu0 %1150
        %v1152 = vsub.f32 %v1146, %v1151
        %v1153 = vmul.f32 %v1152, 1.442695
        %v1154 = vpow.pop %v1153
        %v1155 = vsel %vm736, %v1154, 0.0
        %1156 = vadd.xlane.f32.xlu0 %v1155
        %v1157 = vpop.xlane.xlu0 %1156
        %v1158 = vrcp.pop %v1157
        %v1159 = vmul.f32 %v1154, %v1158
        %1160 = vrot.lane.b32.xlu0 %v729, 48
        %v1161 = vpop.permute.xlu0 %1160
        %v1164 = vsel %vm736, %v1159, 0
        %1166 = vmatprep.subr.mxu0 0.0
        %1167 = vmatpush1.msra.mxu0 %v1161
        %1168 = vmatprep.subr.mxu0 0.0
        %1169 = vmatpush1.msra.mxu0 0.0
        %1170 = vmatprep.subr.mxu0 0.0
        %1171 = vmatpush1.msra.mxu0 0.0
        %1172 = vmatprep.subr.mxu0 0.0
        %1173 = vmatpush1.msra.mxu0 0.0
        %1174 = vmatprep.subr.mxu0 0.0
        %1175 = vmatpush1.msra.mxu0 0.0
        %1176 = vmatprep.subr.mxu0 0.0
        %1177 = vmatpush1.msra.mxu0 0.0
        %1178 = vmatprep.subr.mxu0 0.0
        %1179 = vmatpush1.msra.mxu0 0.0
        %1180 = vmatprep.subr.mxu0 0.0
        %1181 = vmatpush1.msra.mxu0 0.0
        %1182 = vmatprep.subr.mxu0 0.0
        %1183 = vmatpush1.msra.mxu0 0.0
        %1184 = vmatprep.subr.mxu0 0.0
        %1185 = vmatpush1.msra.mxu0 0.0
        %1186 = vmatprep.subr.mxu0 0.0
        %1187 = vmatpush1.msra.mxu0 0.0
        %1188 = vmatprep.subr.mxu0 0.0
        %1189 = vmatpush1.msra.mxu0 0.0
        %1190 = vmatprep.subr.mxu0 0.0
        %1191 = vmatpush1.msra.mxu0 0.0
        %1192 = vmatprep.subr.mxu0 0.0
        %1193 = vmatpush1.msra.mxu0 0.0
        %1194 = vmatprep.subr.mxu0 0.0
        %1195 = vmatpush1.msra.mxu0 0.0
        %1196 = vmatprep.subr.mxu0 0.0
        %1197 = vmatpush1.msra.mxu0 0.0
        %1198 = vmatprep.subr.mxu0 0.0
        %1199 = vmatpush1.msra.mxu0 0.0
        %1200 = vmatprep.subr.mxu0 0.0
        %1201 = vmatpush1.msra.mxu0 0.0
        %1202 = vmatprep.subr.mxu0 0.0
        %1203 = vmatpush1.msra.mxu0 0.0
        %1204 = vmatprep.subr.mxu0 0.0
        %1205 = vmatpush1.msra.mxu0 0.0
        %1206 = vmatprep.subr.mxu0 0.0
        %1207 = vmatpush1.msra.mxu0 0.0
        %1208 = vmatprep.subr.mxu0 0.0
        %1209 = vmatpush1.msra.mxu0 0.0
        %1210 = vmatprep.subr.mxu0 0.0
        %1211 = vmatpush1.msra.mxu0 0.0
        %1212 = vmatprep.subr.mxu0 0.0
        %1213 = vmatpush1.msra.mxu0 0.0
        %1214 = vmatprep.subr.mxu0 0.0
        %1215 = vmatpush1.msra.mxu0 0.0
        %1216 = vmatprep.subr.mxu0 0.0
        %1217 = vmatpush1.msra.mxu0 0.0
        %1218 = vmatprep.subr.mxu0 0.0
        %1219 = vmatpush1.msra.mxu0 0.0
        %1220 = vmatprep.subr.mxu0 0.0
        %1221 = vmatpush1.msra.mxu0 0.0
        %1222 = vmatprep.subr.mxu0 0.0
        %1223 = vmatpush1.msra.mxu0 0.0
        %1224 = vmatprep.subr.mxu0 0.0
        %1225 = vmatpush1.msra.mxu0 0.0
        %1226 = vmatprep.subr.mxu0 0.0
        %1227 = vmatpush1.msra.mxu0 0.0
        %1228 = vmatprep.subr.mxu0 0.0
        %1229 = vmatpush1.msra.mxu0 0.0
        %1230 = vmatprep.mubr.f32.mxu0 0.0
        %1231 = vmatmul.mubr.f32.gmra.mrb[0].mxu0 %v1164
        %v1232 = vpop.f32.mrb[0].mxu0
        %v1233 = vadd.f32 0.0, %v1232
        %v1234 = vpop.f32.mrb[0].mxu0
        %1235 = vdwg.mxu0
        %1237 = vrot.lane.b32.xlu0 %v1233, 16
        %v1238 = vpop.permute.xlu0 %1237
        %vm1240 = vcmask 195712
        %1241 = vst.msk [vmem:[#allocation2] sm:$0xff] %vm1240, %v1238
        %1242 = vrot.lane.b32.xlu0 %v732, 104
        %v1243 = vpop.permute.xlu0 %1242
        %1244 = vrot.lane.b32.xlu0 %v729, 72
        %v1245 = vpop.permute.xlu0 %1244
        %v1246 = vsel %vm736, %v1243, 0
        %v1248 = vsel %vm736, %v1245, 0
        %1250 = vmatprep.subr.mxu0 0.0
        %1251 = vmatpush1.xpose.msra.mxu0 %v1248
        %1252 = vmatprep.subr.mxu0 0.0
        %1253 = vmatpush1.xpose.msra.mxu0 0.0
        %1254 = vmatprep.subr.mxu0 0.0
        %1255 = vmatpush1.xpose.msra.mxu0 0.0
        %1256 = vmatprep.subr.mxu0 0.0
        %1257 = vmatpush1.xpose.msra.mxu0 0.0
        %1258 = vmatprep.subr.mxu0 0.0
        %1259 = vmatpush1.xpose.msra.mxu0 0.0
        %1260 = vmatprep.subr.mxu0 0.0
        %1261 = vmatpush1.xpose.msra.mxu0 0.0
        %1262 = vmatprep.subr.mxu0 0.0
        %1263 = vmatpush1.xpose.msra.mxu0 0.0
        %1264 = vmatprep.subr.mxu0 0.0
        %1265 = vmatpush1.xpose.msra.mxu0 0.0
        %1266 = vmatprep.subr.mxu0 0.0
        %1267 = vmatpush1.xpose.msra.mxu0 0.0
        %1268 = vmatprep.subr.mxu0 0.0
        %1269 = vmatpush1.xpose.msra.mxu0 0.0
        %1270 = vmatprep.subr.mxu0 0.0
        %1271 = vmatpush1.xpose.msra.mxu0 0.0
        %1272 = vmatprep.subr.mxu0 0.0
        %1273 = vmatpush1.xpose.msra.mxu0 0.0
        %1274 = vmatprep.subr.mxu0 0.0
        %1275 = vmatpush1.xpose.msra.mxu0 0.0
        %1276 = vmatprep.subr.mxu0 0.0
        %1277 = vmatpush1.xpose.msra.mxu0 0.0
        %1278 = vmatprep.subr.mxu0 0.0
        %1279 = vmatpush1.xpose.msra.mxu0 0.0
        %1280 = vmatprep.subr.mxu0 0.0
        %1281 = vmatpush1.xpose.msra.mxu0 0.0
        %1282 = vmatprep.subr.mxu0 0.0
        %1283 = vmatpush1.xpose.msra.mxu0 0.0
        %1284 = vmatprep.subr.mxu0 0.0
        %1285 = vmatpush1.xpose.msra.mxu0 0.0
        %1286 = vmatprep.subr.mxu0 0.0
        %1287 = vmatpush1.xpose.msra.mxu0 0.0
        %1288 = vmatprep.subr.mxu0 0.0
        %1289 = vmatpush1.xpose.msra.mxu0 0.0
        %1290 = vmatprep.subr.mxu0 0.0
        %1291 = vmatpush1.xpose.msra.mxu0 0.0
        %1292 = vmatprep.subr.mxu0 0.0
        %1293 = vmatpush1.xpose.msra.mxu0 0.0
        %1294 = vmatprep.subr.mxu0 0.0
        %1295 = vmatpush1.xpose.msra.mxu0 0.0
        %1296 = vmatprep.subr.mxu0 0.0
        %1297 = vmatpush1.xpose.msra.mxu0 0.0
        %1298 = vmatprep.subr.mxu0 0.0
        %1299 = vmatpush1.xpose.msra.mxu0 0.0
        %1300 = vmatprep.subr.mxu0 0.0
        %1301 = vmatpush1.xpose.msra.mxu0 0.0
        %1302 = vmatprep.subr.mxu0 0.0
        %1303 = vmatpush1.xpose.msra.mxu0 0.0
        %1304 = vmatprep.subr.mxu0 0.0
        %1305 = vmatpush1.xpose.msra.mxu0 0.0
        %1306 = vmatprep.subr.mxu0 0.0
        %1307 = vmatpush1.xpose.msra.mxu0 0.0
        %1308 = vmatprep.subr.mxu0 0.0
        %1309 = vmatpush1.xpose.msra.mxu0 0.0
        %1310 = vmatprep.subr.mxu0 0.0
        %1311 = vmatpush1.xpose.msra.mxu0 0.0
        %1312 = vmatprep.subr.mxu0 0.0
        %1313 = vmatpush1.xpose.msra.mxu0 0.0
        %1314 = vmatprep.mubr.f32.mxu0 0.0
        %1315 = vmatmul.mubr.f32.gmra.mrb[0].mxu0 %v1246
        %v1316 = vpop.f32.mrb[0].mxu0
        %v1317 = vadd.f32 0.0, %v1316
        %v1318 = vpop.f32.mrb[0].mxu0
        %1319 = vdwg.mxu0
        %v1320 = vsel %vm736, %v1317, -inf
        %1321 = vmax.xlane.f32.xlu0 %v1320
        %v1322 = vpop.xlane.xlu0 %1321
        %v1323 = vsub.f32 %v1317, %v1322
        %v1324 = vmul.f32 %v1323, 1.442695
        %v1325 = vpow.pop %v1324
        %v1326 = vsel %vm736, %v1325, 0.0
        %1327 = vadd.xlane.f32.xlu0 %v1326
        %v1328 = vpop.xlane.xlu0 %1327
        %v1329 = vrcp.pop %v1328
        %v1330 = vmul.f32 %v1325, %v1329
        %1331 = vrot.lane.b32.xlu0 %v729, 40
        %v1332 = vpop.permute.xlu0 %1331
        %v1335 = vsel %vm736, %v1330, 0
        %1337 = vmatprep.subr.mxu0 0.0
        %1338 = vmatpush1.msra.mxu0 %v1332
        %1339 = vmatprep.subr.mxu0 0.0
        %1340 = vmatpush1.msra.mxu0 0.0
        %1341 = vmatprep.subr.mxu0 0.0
        %1342 = vmatpush1.msra.mxu0 0.0
        %1343 = vmatprep.subr.mxu0 0.0
        %1344 = vmatpush1.msra.mxu0 0.0
        %1345 = vmatprep.subr.mxu0 0.0
        %1346 = vmatpush1.msra.mxu0 0.0
        %1347 = vmatprep.subr.mxu0 0.0
        %1348 = vmatpush1.msra.mxu0 0.0
        %1349 = vmatprep.subr.mxu0 0.0
        %1350 = vmatpush1.msra.mxu0 0.0
        %1351 = vmatprep.subr.mxu0 0.0
        %1352 = vmatpush1.msra.mxu0 0.0
        %1353 = vmatprep.subr.mxu0 0.0
        %1354 = vmatpush1.msra.mxu0 0.0
        %1355 = vmatprep.subr.mxu0 0.0
        %1356 = vmatpush1.msra.mxu0 0.0
        %1357 = vmatprep.subr.mxu0 0.0
        %1358 = vmatpush1.msra.mxu0 0.0
        %1359 = vmatprep.subr.mxu0 0.0
        %1360 = vmatpush1.msra.mxu0 0.0
        %1361 = vmatprep.subr.mxu0 0.0
        %1362 = vmatpush1.msra.mxu0 0.0
        %1363 = vmatprep.subr.mxu0 0.0
        %1364 = vmatpush1.msra.mxu0 0.0
        %1365 = vmatprep.subr.mxu0 0.0
        %1366 = vmatpush1.msra.mxu0 0.0
        %1367 = vmatprep.subr.mxu0 0.0
        %1368 = vmatpush1.msra.mxu0 0.0
        %1369 = vmatprep.subr.mxu0 0.0
        %1370 = vmatpush1.msra.mxu0 0.0
        %1371 = vmatprep.subr.mxu0 0.0
        %1372 = vmatpush1.msra.mxu0 0.0
        %1373 = vmatprep.subr.mxu0 0.0
        %1374 = vmatpush1.msra.mxu0 0.0
        %1375 = vmatprep.subr.mxu0 0.0
        %1376 = vmatpush1.msra.mxu0 0.0
        %1377 = vmatprep.subr.mxu0 0.0
        %1378 = vmatpush1.msra.mxu0 0.0
        %1379 = vmatprep.subr.mxu0 0.0
        %1380 = vmatpush1.msra.mxu0 0.0
        %1381 = vmatprep.subr.mxu0 0.0
        %1382 = vmatpush1.msra.mxu0 0.0
        %1383 = vmatprep.subr.mxu0 0.0
        %1384 = vmatpush1.msra.mxu0 0.0
        %1385 = vmatprep.subr.mxu0 0.0
        %1386 = vmatpush1.msra.mxu0 0.0
        %1387 = vmatprep.subr.mxu0 0.0
        %1388 = vmatpush1.msra.mxu0 0.0
        %1389 = vmatprep.subr.mxu0 0.0
        %1390 = vmatpush1.msra.mxu0 0.0
        %1391 = vmatprep.subr.mxu0 0.0
        %1392 = vmatpush1.msra.mxu0 0.0
        %1393 = vmatprep.subr.mxu0 0.0
        %1394 = vmatpush1.msra.mxu0 0.0
        %1395 = vmatprep.subr.mxu0 0.0
        %1396 = vmatpush1.msra.mxu0 0.0
        %1397 = vmatprep.subr.mxu0 0.0
        %1398 = vmatpush1.msra.mxu0 0.0
        %1399 = vmatprep.subr.mxu0 0.0
        %1400 = vmatpush1.msra.mxu0 0.0
        %1401 = vmatprep.mubr.f32.mxu0 0.0
        %1402 = vmatmul.mubr.f32.gmra.mrb[0].mxu0 %v1335
        %v1403 = vpop.f32.mrb[0].mxu0
        %v1404 = vadd.f32 0.0, %v1403
        %v1405 = vpop.f32.mrb[0].mxu0
        %1406 = vdwg.mxu0
        %1408 = vrot.lane.b32.xlu0 %v1404, 24
        %v1409 = vpop.permute.xlu0 %1408
        %vm1411 = vcmask 261312
        %1412 = vst.msk [vmem:[#allocation2] sm:$0xff] %vm1411, %v1409
        %v1413 = vld [vmem:[#allocation2] sm:$0xff]
        %v1414 = vld [vmem:[#allocation12] sm:$0xff]
        %v1415 = vld [vmem:[#allocation12 + $0x8] sm:$0xff]
        %v1416 = vld [vmem:[#allocation12 + $0x10] sm:$0xff]
        %v1417 = vld [vmem:[#allocation12 + $0x18] sm:$0xff]
        %v1418 = vld [vmem:[#allocation14] sm:$0x1]
        %v1420 = vlaneseq
        %v1421 = vshrl.u32 %v1420, 7
        %v1422 = vsub.s32 0, %v1421
        %v1423 = vrot.slane %v1418, %v1422
        %v1426 = vsel %vm617, %v1413, 0
        %1428 = vmatprep.subr.mxu0 0.0
        %1429 = vmatpush1.msra.mxu0 %v1414
        %1430 = vmatprep.subr.mxu0 0.0
        %1431 = vmatpush1.msra.mxu0 %v1415
        %1432 = vmatprep.subr.mxu0 0.0
        %1433 = vmatpush1.msra.mxu0 %v1416
        %1434 = vmatprep.subr.mxu0 0.0
        %1435 = vmatpush1.msra.mxu0 %v1417
        %1436 = vmatprep.subr.mxu0 0.0
        %1437 = vmatpush1.msra.mxu0 0.0
        %1438 = vmatprep.subr.mxu0 0.0
        %1439 = vmatpush1.msra.mxu0 0.0
        %1440 = vmatprep.subr.mxu0 0.0
        %1441 = vmatpush1.msra.mxu0 0.0
        %1442 = vmatprep.subr.mxu0 0.0
        %1443 = vmatpush1.msra.mxu0 0.0
        %1444 = vmatprep.subr.mxu0 0.0
        %1445 = vmatpush1.msra.mxu0 0.0
        %1446 = vmatprep.subr.mxu0 0.0
        %1447 = vmatpush1.msra.mxu0 0.0
        %1448 = vmatprep.subr.mxu0 0.0
        %1449 = vmatpush1.msra.mxu0 0.0
        %1450 = vmatprep.subr.mxu0 0.0
        %1451 = vmatpush1.msra.mxu0 0.0
        %1452 = vmatprep.subr.mxu0 0.0
        %1453 = vmatpush1.msra.mxu0 0.0
        %1454 = vmatprep.subr.mxu0 0.0
        %1455 = vmatpush1.msra.mxu0 0.0
        %1456 = vmatprep.subr.mxu0 0.0
        %1457 = vmatpush1.msra.mxu0 0.0
        %1458 = vmatprep.subr.mxu0 0.0
        %1459 = vmatpush1.msra.mxu0 0.0
        %1460 = vmatprep.subr.mxu0 0.0
        %1461 = vmatpush1.msra.mxu0 0.0
        %1462 = vmatprep.subr.mxu0 0.0
        %1463 = vmatpush1.msra.mxu0 0.0
        %1464 = vmatprep.subr.mxu0 0.0
        %1465 = vmatpush1.msra.mxu0 0.0
        %1466 = vmatprep.subr.mxu0 0.0
        %1467 = vmatpush1.msra.mxu0 0.0
        %1468 = vmatprep.subr.mxu0 0.0
        %1469 = vmatpush1.msra.mxu0 0.0
        %1470 = vmatprep.subr.mxu0 0.0
        %1471 = vmatpush1.msra.mxu0 0.0
        %1472 = vmatprep.subr.mxu0 0.0
        %1473 = vmatpush1.msra.mxu0 0.0
        %1474 = vmatprep.subr.mxu0 0.0
        %1475 = vmatpush1.msra.mxu0 0.0
        %1476 = vmatprep.subr.mxu0 0.0
        %1477 = vmatpush1.msra.mxu0 0.0
        %1478 = vmatprep.subr.mxu0 0.0
        %1479 = vmatpush1.msra.mxu0 0.0
        %1480 = vmatprep.subr.mxu0 0.0
        %1481 = vmatpush1.msra.mxu0 0.0
        %1482 = vmatprep.subr.mxu0 0.0
        %1483 = vmatpush1.msra.mxu0 0.0
        %1484 = vmatprep.subr.mxu0 0.0
        %1485 = vmatpush1.msra.mxu0 0.0
        %1486 = vmatprep.subr.mxu0 0.0
        %1487 = vmatpush1.msra.mxu0 0.0
        %1488 = vmatprep.subr.mxu0 0.0
        %1489 = vmatpush1.msra.mxu0 0.0
        %1490 = vmatprep.subr.mxu0 0.0
        %1491 = vmatpush1.msra.mxu0 0.0
        %1492 = vmatprep.mubr.f32.mxu0 0.0
        %1493 = vmatmul.mubr.f32.gmra.mrb[0].mxu0 %v1426
        %v1494 = vpop.f32.mrb[0].mxu0
        %v1495 = vadd.f32 %v1423, %v1494
        %v1496 = vpop.f32.mrb[0].mxu0
        %1497 = vdwg.mxu0
        %v1498 = vadd.f32 %v614, %v1495
        %v1499 = vld [vmem:[#allocation15] sm:$0x1]
        %v1500 = vld [vmem:[#allocation17] sm:$0x1]
        %v1501 = vsel %vm617, %v1498, 0.0
        %1502 = vadd.xlane.f32.xlu0 %v1501
        %v1503 = vpop.xlane.xlu0 %1502
        %v1504 = vmul.f32 %v1503, %v621
        %v1505 = vmul.f32 %v1498, %v1498
        %v1506 = vsel %vm617, %v1505, 0.0
        %1507 = vadd.xlane.f32.xlu0 %v1506
        %v1508 = vpop.xlane.xlu0 %1507
        %v1509 = vmul.f32 %v1508, %v621
        %v1510 = vmul.f32 %v1504, %v1504
        %v1511 = vsub.f32 %v1509, %v1510
        %v1512 = vsub.f32 %v1498, %v1504
        %v1513 = vadd.f32 %v1511, 1e-05
        %v1514 = vrsqrt.pop %v1513
        %v1515 = vmul.f32 %v1512, %v1514
        %v1517 = vlaneseq
        %v1518 = vshrl.u32 %v1517, 7
        %v1519 = vsub.s32 0, %v1518
        %v1520 = vrot.slane %v1499, %v1519
        %v1522 = vmul.f32 %v1515, %v1520
        %v1524 = vlaneseq
        %v1525 = vshrl.u32 %v1524, 7
        %v1526 = vsub.s32 0, %v1525
        %v1527 = vrot.slane %v1500, %v1526
        %v1529 = vadd.f32 %v1522, %v1527
        %v1530 = vld [vmem:[#allocation18] sm:$0xff]
        %v1531 = vld [vmem:[#allocation18 + $0x8] sm:$0xff]
        %v1532 = vld [vmem:[#allocation18 + $0x10] sm:$0xff]
        %v1533 = vld [vmem:[#allocation18 + $0x18] sm:$0xff]
        %v1534 = vld [vmem:[#allocation20] sm:$0x1]
        %v1536 = vlaneseq
        %v1537 = vshrl.u32 %v1536, 7
        %v1538 = vsub.s32 0, %v1537
        %v1539 = vrot.slane %v1534, %v1538
        %v1542 = vsel %vm617, %v1529, 0
        %1544 = vmatprep.subr.mxu0 0.0
        %1545 = vmatpush1.msra.mxu0 %v1530
        %1546 = vmatprep.subr.mxu0 0.0
        %1547 = vmatpush1.msra.mxu0 %v1531
        %1548 = vmatprep.subr.mxu0 0.0
        %1549 = vmatpush1.msra.mxu0 %v1532
        %1550 = vmatprep.subr.mxu0 0.0
        %1551 = vmatpush1.msra.mxu0 %v1533
        %1552 = vmatprep.subr.mxu0 0.0
        %1553 = vmatpush1.msra.mxu0 0.0
        %1554 = vmatprep.subr.mxu0 0.0
        %1555 = vmatpush1.msra.mxu0 0.0
        %1556 = vmatprep.subr.mxu0 0.0
        %1557 = vmatpush1.msra.mxu0 0.0
        %1558 = vmatprep.subr.mxu0 0.0
        %1559 = vmatpush1.msra.mxu0 0.0
        %1560 = vmatprep.subr.mxu0 0.0
        %1561 = vmatpush1.msra.mxu0 0.0
        %1562 = vmatprep.subr.mxu0 0.0
        %1563 = vmatpush1.msra.mxu0 0.0
        %1564 = vmatprep.subr.mxu0 0.0
        %1565 = vmatpush1.msra.mxu0 0.0
        %1566 = vmatprep.subr.mxu0 0.0
        %1567 = vmatpush1.msra.mxu0 0.0
        %1568 = vmatprep.subr.mxu0 0.0
        %1569 = vmatpush1.msra.mxu0 0.0
        %1570 = vmatprep.subr.mxu0 0.0
        %1571 = vmatpush1.msra.mxu0 0.0
        %1572 = vmatprep.subr.mxu0 0.0
        %1573 = vmatpush1.msra.mxu0 0.0
        %1574 = vmatprep.subr.mxu0 0.0
        %1575 = vmatpush1.msra.mxu0 0.0
        %1576 = vmatprep.subr.mxu0 0.0
        %1577 = vmatpush1.msra.mxu0 0.0
        %1578 = vmatprep.subr.mxu0 0.0
        %1579 = vmatpush1.msra.mxu0 0.0
        %1580 = vmatprep.subr.mxu0 0.0
        %1581 = vmatpush1.msra.mxu0 0.0
        %1582 = vmatprep.subr.mxu0 0.0
        %1583 = vmatpush1.msra.mxu0 0.0
        %1584 = vmatprep.subr.mxu0 0.0
        %1585 = vmatpush1.msra.mxu0 0.0
        %1586 = vmatprep.subr.mxu0 0.0
        %1587 = vmatpush1.msra.mxu0 0.0
        %1588 = vmatprep.subr.mxu0 0.0
        %1589 = vmatpush1.msra.mxu0 0.0
        %1590 = vmatprep.subr.mxu0 0.0
        %1591 = vmatpush1.msra.mxu0 0.0
        %1592 = vmatprep.subr.mxu0 0.0
        %1593 = vmatpush1.msra.mxu0 0.0
        %1594 = vmatprep.subr.mxu0 0.0
        %1595 = vmatpush1.msra.mxu0 0.0
        %1596 = vmatprep.subr.mxu0 0.0
        %1597 = vmatpush1.msra.mxu0 0.0
        %1598 = vmatprep.subr.mxu0 0.0
        %1599 = vmatpush1.msra.mxu0 0.0
        %1600 = vmatprep.subr.mxu0 0.0
        %1601 = vmatpush1.msra.mxu0 0.0
        %1602 = vmatprep.subr.mxu0 0.0
        %1603 = vmatpush1.msra.mxu0 0.0
        %1604 = vmatprep.subr.mxu0 0.0
        %1605 = vmatpush1.msra.mxu0 0.0
        %1606 = vmatprep.subr.mxu0 0.0
        %1607 = vmatpush1.msra.mxu0 0.0
        %1608 = vmatprep.mubr.f32.mxu0 0.0
        %1609 = vmatmul.mubr.f32.gmra.mrb[0].mxu0 %v1542
        %v1610 = vpop.f32.mrb[0].mxu0
        %v1611 = vadd.f32 %v1539, %v1610
        %v1612 = vpop.f32.mrb[0].mxu0
        %1613 = vdwg.mxu0
        %vm1614 = vcmp.gt.f32.partialorder %v1611, 0.0
        %v1615 = vmul.f32 %v1611, 0.01
        %v1616 = vsel %vm1614, %v1611, %v1615
        %v1617 = vld [vmem:[#allocation21] sm:$0xff]
        %v1618 = vld [vmem:[#allocation21 + $0x8] sm:$0xff]
        %v1619 = vld [vmem:[#allocation21 + $0x10] sm:$0xff]
        %v1620 = vld [vmem:[#allocation21 + $0x18] sm:$0xff]
        %v1621 = vld [vmem:[#allocation21 + $0x20] sm:$0xff]
        %v1622 = vld [vmem:[#allocation21 + $0x28] sm:$0xff]
        %v1623 = vld [vmem:[#allocation21 + $0x30] sm:$0xff]
        %v1624 = vld [vmem:[#allocation21 + $0x38] sm:$0xff]
        %v1625 = vld [vmem:[#allocation21 + $0x40] sm:$0xff]
        %v1626 = vld [vmem:[#allocation21 + $0x48] sm:$0xff]
        %v1627 = vld [vmem:[#allocation21 + $0x50] sm:$0xff]
        %v1628 = vld [vmem:[#allocation21 + $0x58] sm:$0xff]
        %v1629 = vld [vmem:[#allocation21 + $0x60] sm:$0xff]
        %v1630 = vld [vmem:[#allocation21 + $0x68] sm:$0xff]
        %v1631 = vld [vmem:[#allocation21 + $0x70] sm:$0xff]
        %v1632 = vld [vmem:[#allocation21 + $0x78] sm:$0xff]
        %v1633 = vld [vmem:[#allocation23] sm:$0x1]
        %v1635 = vlaneseq
        %v1636 = vshrl.u32 %v1635, 7
        %v1637 = vsub.s32 0, %v1636
        %v1638 = vrot.slane %v1633, %v1637
        %1640 = vmatprep.subr.mxu0 0.0
        %1641 = vmatpush1.msra.mxu0 %v1617
        %1642 = vmatprep.subr.mxu0 0.0
        %1643 = vmatpush1.msra.mxu0 %v1618
        %1644 = vmatprep.subr.mxu0 0.0
        %1645 = vmatpush1.msra.mxu0 %v1619
        %1646 = vmatprep.subr.mxu0 0.0
        %1647 = vmatpush1.msra.mxu0 %v1620
        %1648 = vmatprep.subr.mxu0 0.0
        %1649 = vmatpush1.msra.mxu0 %v1621
        %1650 = vmatprep.subr.mxu0 0.0
        %1651 = vmatpush1.msra.mxu0 %v1622
        %1652 = vmatprep.subr.mxu0 0.0
        %1653 = vmatpush1.msra.mxu0 %v1623
        %1654 = vmatprep.subr.mxu0 0.0
        %1655 = vmatpush1.msra.mxu0 %v1624
        %1656 = vmatprep.subr.mxu0 0.0
        %1657 = vmatpush1.msra.mxu0 %v1625
        %1658 = vmatprep.subr.mxu0 0.0
        %1659 = vmatpush1.msra.mxu0 %v1626
        %1660 = vmatprep.subr.mxu0 0.0
        %1661 = vmatpush1.msra.mxu0 %v1627
        %1662 = vmatprep.subr.mxu0 0.0
        %1663 = vmatpush1.msra.mxu0 %v1628
        %1664 = vmatprep.subr.mxu0 0.0
        %1665 = vmatpush1.msra.mxu0 %v1629
        %1666 = vmatprep.subr.mxu0 0.0
        %1667 = vmatpush1.msra.mxu0 %v1630
        %1668 = vmatprep.subr.mxu0 0.0
        %1669 = vmatpush1.msra.mxu0 %v1631
        %1670 = vmatprep.subr.mxu0 0.0
        %1671 = vmatpush1.msra.mxu0 %v1632
        %1672 = vmatprep.subr.mxu0 0.0
        %1673 = vmatpush1.msra.mxu0 0.0
        %1674 = vmatprep.subr.mxu0 0.0
        %1675 = vmatpush1.msra.mxu0 0.0
        %1676 = vmatprep.subr.mxu0 0.0
        %1677 = vmatpush1.msra.mxu0 0.0
        %1678 = vmatprep.subr.mxu0 0.0
        %1679 = vmatpush1.msra.mxu0 0.0
        %1680 = vmatprep.subr.mxu0 0.0
        %1681 = vmatpush1.msra.mxu0 0.0
        %1682 = vmatprep.subr.mxu0 0.0
        %1683 = vmatpush1.msra.mxu0 0.0
        %1684 = vmatprep.subr.mxu0 0.0
        %1685 = vmatpush1.msra.mxu0 0.0
        %1686 = vmatprep.subr.mxu0 0.0
        %1687 = vmatpush1.msra.mxu0 0.0
        %1688 = vmatprep.subr.mxu0 0.0
        %1689 = vmatpush1.msra.mxu0 0.0
        %1690 = vmatprep.subr.mxu0 0.0
        %1691 = vmatpush1.msra.mxu0 0.0
        %1692 = vmatprep.subr.mxu0 0.0
        %1693 = vmatpush1.msra.mxu0 0.0
        %1694 = vmatprep.subr.mxu0 0.0
        %1695 = vmatpush1.msra.mxu0 0.0
        %1696 = vmatprep.subr.mxu0 0.0
        %1697 = vmatpush1.msra.mxu0 0.0
        %1698 = vmatprep.subr.mxu0 0.0
        %1699 = vmatpush1.msra.mxu0 0.0
        %1700 = vmatprep.subr.mxu0 0.0
        %1701 = vmatpush1.msra.mxu0 0.0
        %1702 = vmatprep.subr.mxu0 0.0
        %1703 = vmatpush1.msra.mxu0 0.0
        %1704 = vmatprep.mubr.f32.mxu0 0.0
        %1705 = vmatmul.mubr.f32.gmra.mrb[0].mxu0 %v1616
        %v1706 = vpop.f32.mrb[0].mxu0
        %v1707 = vadd.f32 %v1638, %v1706
        %v1708 = vpop.f32.mrb[0].mxu0
        %1709 = vdwg.mxu0
        %v1710 = vadd.f32 %v1498, %v1707
        %1711 = vst.msk [vmem:[%s613] sm:$0xff] %vm617, %v1710
        %s1712 = sand.u32 %s322, 1
        %s1713 = scalar_lea.sflag [#allocation5], %s1712
        %s1714 = sand.u32 %s322, 1
        %s1715 = smul.addr %s1714, 8
        %s1716 = scalar_lea.vmem [#allocation24], %s1715
        // Predicated region
        $region125: #{tpu_custom_call.1} parent=71 // pred_check
          %p1717 = pneg %p332
        $region126: #{tpu_custom_call.1} parent=71 // pred_check_branch
          %1719 = sbr.rel (%p1717) target = $region128
        $region127: #{tpu_custom_call.1} parent=71 // pred_region
          %s1721 = ssub.s32 128, 128
          %1722 = vsyncadd %s1713, %s1721
          %s1723 = smul.addr %s36, 128
          %s1724 = scalar_lea.hbm %s13, %s1723
          %s1726 = sshll.u32 %s1716, 4
          %s1727 = int_to_ptr.vmem [resolvable:$true] %s1726
          %1729 = dma.vmem_to_hbm [thread:$0]  %s1727, 128, %s1724, %s1713
        $region128: #{tpu_custom_call.1} parent=71 // pred_fallthru
          _
      $region72: #{tpu_custom_call.1} parent=5 // pred_fallthru
        _
      %p1730 = scmp.le.s32.totalorder 2, %s31
      // Predicated region
      $region129: #{tpu_custom_call.1} parent=5 // pred_check
        %p1731 = pneg %p1730
      $region130: #{tpu_custom_call.1} parent=5 // pred_check_branch
        %1733 = sbr.rel (%p1731) target = $region132
      $region131: #{tpu_custom_call.1} parent=5 // pred_region
        %s1734 = ssub.s32 %s31, 2
        // Predicated region
        $region133: #{tpu_custom_call.1} parent=131 // pred_check
          %p1735 = pneg %p338
        $region134: #{tpu_custom_call.1} parent=131 // pred_check_branch
          %1737 = sbr.rel (%p1735) target = $region136
        $region135: #{tpu_custom_call.1} parent=131 // pred_region
          %s1738 = sand.u32 %s323, 1
          %s1739 = scalar_lea.sflag [#allocation5], %s1738
          %s1740 = sand.u32 %s323, 1
          %s1741 = smul.addr %s1740, 8
          %s1742 = scalar_lea.vmem [#allocation24], %s1741
          %1743 = dma.done %s1739, 128
        $region136: #{tpu_custom_call.1} parent=131 // pred_fallthru
          _
      $region132: #{tpu_custom_call.1} parent=5 // pred_fallthru
        _
    $region6: #{tpu_custom_call.1} parent=1 // loop_footer
      %s35 = sadd.s32 1, %s31
    $region7: #{tpu_custom_call.1} parent=1 // loop_footer_branch
      %30 = sbr.rel target = $region3
    $region8: #{tpu_custom_call.1} parent=1 // loop_exit
      _
    %1744 = vsyncpa [#allocation4], 1
    %s1745 = scalar_lea.sflag [#allocation4], 1
    %1746 = vsyncpa %s1745, 1
    %1747 = vsyncpa [#allocation7], 1
    %1748 = vsyncpa [#allocation10], 1
    %1749 = vsyncpa [#allocation13], 1
    %1750 = vsyncpa [#allocation16], 1
    %1751 = vsyncpa [#allocation19], 1
    %1752 = vsyncpa [#allocation22], 1
    %1753 = vsyncpa [#allocation5], 1
    %s1754 = scalar_lea.sflag [#allocation5], 1
    %1755 = vsyncpa %s1754, 1

// kernel: tpu_custom_call.1
$region0: #{tpu_custom_call.1}
  #allocation0 [shape = 'u32[]', space=smem, size = 0x4, offset = 0x4, fixed_abs, tag = 'smem constant byte address 0x4 - core index']
  #allocation1 [shape = 'u32[144,128]{1,0:T(1,128)}', space=vmem, size = 0x12000, scoped, tag = 'internal scratch']
  #allocation2 [shape = 'f32[8,32]{1,0:T(8,128)}', space=vmem, size = 0x1000, scoped, tag = 'scratch operand']
  %s0 = inlined_call_operand.hbm [shape: f32[2,8,32], index: 0, kind: input, shape index: {}]
  %s1 = inlined_call_operand.hbm [shape: f32[1,32], index: 1, kind: input, shape index: {}]
  %s2 = inlined_call_operand.hbm [shape: f32[1,32], index: 2, kind: input, shape index: {}]
  %s3 = inlined_call_operand.hbm [shape: f32[32,96], index: 3, kind: input, shape index: {}]
  %s4 = inlined_call_operand.hbm [shape: f32[1,96], index: 4, kind: input, shape index: {}]
  %s5 = inlined_call_operand.hbm [shape: f32[32,32], index: 5, kind: input, shape index: {}]
  %s6 = inlined_call_operand.hbm [shape: f32[1,32], index: 6, kind: input, shape index: {}]
  %s7 = inlined_call_operand.hbm [shape: f32[1,32], index: 7, kind: input, shape index: {}]
  %s8 = inlined_call_operand.hbm [shape: f32[1,32], index: 8, kind: input, shape index: {}]
  %s9 = inlined_call_operand.hbm [shape: f32[32,128], index: 9, kind: input, shape index: {}]
  %s10 = inlined_call_operand.hbm [shape: f32[1,128], index: 10, kind: input, shape index: {}]
  %s11 = inlined_call_operand.hbm [shape: f32[128,32], index: 11, kind: input, shape index: {}]
  %s12 = inlined_call_operand.hbm [shape: f32[1,32], index: 12, kind: input, shape index: {}]
  %s13 = inlined_call_operand.hbm [shape: f32[2,8,32], index: 13, kind: output, shape index: {}]
  %s14 = sld [smem:[#allocation0]]
  $region137: #{tpu_custom_call.1} parent=0
    _
  %s16 = ssub.s32 1, %s14
  %s17 = scalar_select 0, %s16, %s14
  $region1: #{tpu_custom_call.1} parent=0
    #allocation3 [shape = 'u8[8192]{0}', space=vmem, size = 0x2000, scoped, tag = 'input window, operand 0']
    #allocation4 [shape = 's32[2]{0}', space=sflag, size = 0x8, scoped, tag = 'scoped memory for tpu_custom_call.1']
    #allocation5 [shape = 's32[2]{0}', space=sflag, size = 0x8, scoped, tag = 'scoped memory for tpu_custom_call.1']
    #allocation6 [shape = 'u8[512]{0}', space=vmem, size = 0x400, scoped, tag = 'input window, operand 1, single buffered']
    #allocation7 [shape = 's32[1]{0}', space=sflag, size = 0x4, scoped, tag = 'scoped memory for tpu_custom_call.1']
    #allocation8 [shape = 'u8[512]{0}', space=vmem, size = 0x400, scoped, tag = 'input window, operand 2, single buffered']
    #allocation9 [shape = 'u8[16384]{0}', space=vmem, size = 0x4000, scoped, tag = 'input window, operand 3, single buffered']
    #allocation10 [shape = 's32[1]{0}', space=sflag, size = 0x4, scoped, tag = 'scoped memory for tpu_custom_call.1']
    #allocation11 [shape = 'u8[512]{0}', space=vmem, size = 0x400, scoped, tag = 'input window, operand 4, single buffered']
    #allocation12 [shape = 'u8[16384]{0}', space=vmem, size = 0x4000, scoped, tag = 'input window, operand 5, single buffered']
    #allocation13 [shape = 's32[1]{0}', space=sflag, size = 0x4, scoped, tag = 'scoped memory for tpu_custom_call.1']
    #allocation14 [shape = 'u8[512]{0}', space=vmem, size = 0x400, scoped, tag = 'input window, operand 6, single buffered']
    #allocation15 [shape = 'u8[512]{0}', space=vmem, size = 0x400, scoped, tag = 'input window, operand 7, single buffered']
    #allocation16 [shape = 's32[1]{0}', space=sflag, size = 0x4, scoped, tag = 'scoped memory for tpu_custom_call.1']
    #allocation17 [shape = 'u8[512]{0}', space=vmem, size = 0x400, scoped, tag = 'input window, operand 8, single buffered']
    #allocation18 [shape = 'u8[16384]{0}', space=vmem, size = 0x4000, scoped, tag = 'input window, operand 9, single buffered']
    #allocation19 [shape = 's32[1]{0}', space=sflag, size = 0x4, scoped, tag = 'scoped memory for tpu_custom_call.1']
    #allocation20 [shape = 'u8[512]{0}', space=vmem, size = 0x400, scoped, tag = 'input window, operand 10, single buffered']
    #allocation21 [shape = 'u8[65536]{0}', space=vmem, size = 0x10000, scoped, tag = 'input window, operand 11, single buffered']
    #allocation22 [shape = 's32[1]{0}', space=sflag, size = 0x4, scoped, tag = 'scoped memory for tpu_custom_call.1']
    #allocation23 [shape = 'u8[512]{0}', space=vmem, size = 0x400, scoped, tag = 'input window, operand 12, single buffered']
    #allocation24 [shape = 'u8[8192]{0}', space=vmem, size = 0x2000, scoped, tag = 'output window, operand 0']
    %18 = vsyncpa [#allocation4], 0
    %s19 = scalar_lea.sflag [#allocation4], 1
    %20 = vsyncpa %s19, 0
    %21 = vsyncpa [#allocation7], 0
    %22 = vsyncpa [#allocation10], 0
    %23 = vsyncpa [#allocation13], 0
    %24 = vsyncpa [#allocation16], 0
    %25 = vsyncpa [#allocation19], 0
    %26 = vsyncpa [#allocation22], 0
    %27 = vsyncpa [#allocation5], 0
    %s28 = scalar_lea.sflag [#allocation5], 1
    %29 = vsyncpa %s28, 0
    loop: start=0, step=1, limit=4
    $region2: #{tpu_custom_call.1} parent=1 // loop_pre_header
      _
    $region3: #{tpu_custom_call.1} parent=1 // loop_header
      %s31 = sphi 0, %s35
      %p32 = scmp.ge.s32.totalorder %s31, 4
      %s41 = sphi 0, %s43
      %s44 = sphi 0, %s41
      %s45 = sphi 0, %s44
      %s61 = sphi 0, %s45
      %s65 = sphi 0, %s65
      %s67 = sphi 0, %s65
      %s68 = sphi 0, %s67
      %s82 = sphi 0, %s68
      %s86 = sphi 0, %s86
      %s88 = sphi 0, %s86
      %s89 = sphi 0, %s88
      %s103 = sphi 0, %s89
      %s107 = sphi 0, %s107
      %s109 = sphi 0, %s107
      %s110 = sphi 0, %s109
      %s124 = sphi 0, %s110
      %s128 = sphi 0, %s128
      %s130 = sphi 0, %s128
      %s131 = sphi 0, %s130
      %s145 = sphi 0, %s131
      %s149 = sphi 0, %s149
      %s151 = sphi 0, %s149
      %s152 = sphi 0, %s151
      %s166 = sphi 0, %s152
      %s170 = sphi 0, %s170
      %s172 = sphi 0, %s170
      %s173 = sphi 0, %s172
      %s187 = sphi 0, %s173
      %s191 = sphi 0, %s191
      %s193 = sphi 0, %s191
      %s194 = sphi 0, %s193
      %s208 = sphi 0, %s194
      %s212 = sphi 0, %s212
      %s214 = sphi 0, %s212
      %s215 = sphi 0, %s214
      %s229 = sphi 0, %s215
      %s233 = sphi 0, %s233
      %s235 = sphi 0, %s233
      %s236 = sphi 0, %s235
      %s250 = sphi 0, %s236
      %s254 = sphi 0, %s254
      %s256 = sphi 0, %s254
      %s257 = sphi 0, %s256
      %s271 = sphi 0, %s257
      %s275 = sphi 0, %s275
      %s277 = sphi 0, %s275
      %s278 = sphi 0, %s277
      %s292 = sphi 0, %s278
      %s296 = sphi 0, %s296
      %s298 = sphi 0, %s296
      %s299 = sphi 0, %s298
      %s313 = sphi 0, %s299
      %s319 = sphi 0, %s321
      %s322 = sphi 0, %s319
      %s323 = sphi 0, %s322
      %s339 = sphi 0, %s323
    $region4: #{tpu_custom_call.1} parent=1 // loop_header_branch
      %34 = sbr.rel (%p32) target = $region8
    $region5: #{tpu_custom_call.1} parent=1 // loop_body
      %s36 = ssub.s32 %s31, 1
      %s37 = ssub.s32 %s31, 2
      %s38 = sadd.s32 %s31, 1
      %s39 = ssub.s32 %s31, %s38
      %p40 = scmp.eq.s32.totalorder %s39, 0
      %s42 = sadd.s32 %s41, 1
      %s43 = scalar_select %p40, %s41, %s42
      %p46 = pneg %p40
      %p47 = scmp.eq.s32.totalorder %s31, 1
      %p48 = por %p46, %p47
      %p49 = scmp.ne.s32.totalorder %s41, %s44
      %p50 = scmp.eq.s32.totalorder %s31, 0
      %p51 = por %p49, %p50
      %p52 = scmp.ne.s32.totalorder %s41, %s44
      %p53 = scmp.eq.s32.totalorder %s36, 1
      %p54 = por %p52, %p53
      %p55 = scmp.ne.s32.totalorder %s44, %s45
      %p56 = scmp.eq.s32.totalorder %s36, 0
      %p57 = por %p55, %p56
      %p58 = scmp.ne.s32.totalorder %s44, %s45
      %p59 = scmp.eq.s32.totalorder %s37, 1
      %p60 = por %p58, %p59
      %p62 = scmp.ne.s32.totalorder %s45, %s61
      %p63 = scmp.eq.s32.totalorder %s37, 0
      %p64 = por %p62, %p63
      %s66 = sadd.s32 %s65, 1
      %p69 = scmp.eq.s32.totalorder %s31, 1
      %p70 = scmp.ne.s32.totalorder %s65, %s67
      %p71 = scmp.eq.s32.totalorder %s31, 0
      %p72 = por %p70, %p71
      %p73 = scmp.ne.s32.totalorder %s65, %s67
      %p74 = scmp.eq.s32.totalorder %s36, 1
      %p75 = por %p73, %p74
      %p76 = scmp.ne.s32.totalorder %s67, %s68
      %p77 = scmp.eq.s32.totalorder %s36, 0
      %p78 = por %p76, %p77
      %p79 = scmp.ne.s32.totalorder %s67, %s68
      %p80 = scmp.eq.s32.totalorder %s37, 1
      %p81 = por %p79, %p80
      %p83 = scmp.ne.s32.totalorder %s68, %s82
      %p84 = scmp.eq.s32.totalorder %s37, 0
      %p85 = por %p83, %p84
      %s87 = sadd.s32 %s86, 1
      %p90 = scmp.eq.s32.totalorder %s31, 1
      %p91 = scmp.ne.s32.totalorder %s86, %s88
      %p92 = scmp.eq.s32.totalorder %s31, 0
      %p93 = por %p91, %p92
      %p94 = scmp.ne.s32.totalorder %s86, %s88
      %p95 = scmp.eq.s32.totalorder %s36, 1
      %p96 = por %p94, %p95
      %p97 = scmp.ne.s32.totalorder %s88, %s89
      %p98 = scmp.eq.s32.totalorder %s36, 0
      %p99 = por %p97, %p98
      %p100 = scmp.ne.s32.totalorder %s88, %s89
      %p101 = scmp.eq.s32.totalorder %s37, 1
      %p102 = por %p100, %p101
      %p104 = scmp.ne.s32.totalorder %s89, %s103
      %p105 = scmp.eq.s32.totalorder %s37, 0
      %p106 = por %p104, %p105
      %s108 = sadd.s32 %s107, 1
      %p111 = scmp.eq.s32.totalorder %s31, 1
      %p112 = scmp.ne.s32.totalorder %s107, %s109
      %p113 = scmp.eq.s32.totalorder %s31, 0
      %p114 = por %p112, %p113
      %p115 = scmp.ne.s32.totalorder %s107, %s109
      %p116 = scmp.eq.s32.totalorder %s36, 1
      %p117 = por %p115, %p116
      %p118 = scmp.ne.s32.totalorder %s109, %s110
      %p119 = scmp.eq.s32.totalorder %s36, 0
      %p120 = por %p118, %p119
      %p121 = scmp.ne.s32.totalorder %s109, %s110
      %p122 = scmp.eq.s32.totalorder %s37, 1
      %p123 = por %p121, %p122
      %p125 = scmp.ne.s32.totalorder %s110, %s124
      %p126 = scmp.eq.s32.totalorder %s37, 0
      %p127 = por %p125, %p126
      %s129 = sadd.s32 %s128, 1
      %p132 = scmp.eq.s32.totalorder %s31, 1
      %p133 = scmp.ne.s32.totalorder %s128, %s130
      %p134 = scmp.eq.s32.totalorder %s31, 0
      %p135 = por %p133, %p134
      %p136 = scmp.ne.s32.totalorder %s128, %s130
      %p137 = scmp.eq.s32.totalorder %s36, 1
      %p138 = por %p136, %p137
      %p139 = scmp.ne.s32.totalorder %s130, %s131
      %p140 = scmp.eq.s32.totalorder %s36, 0
      %p141 = por %p139, %p140
      %p142 = scmp.ne.s32.totalorder %s130, %s131
      %p143 = scmp.eq.s32.totalorder %s37, 1
      %p144 = por %p142, %p143
      %p146 = scmp.ne.s32.totalorder %s131, %s145
      %p147 = scmp.eq.s32.totalorder %s37, 0
      %p148 = por %p146, %p147
      %s150 = sadd.s32 %s149, 1
      %p153 = scmp.eq.s32.totalorder %s31, 1
      %p154 = scmp.ne.s32.totalorder %s149, %s151
      %p155 = scmp.eq.s32.totalorder %s31, 0
      %p156 = por %p154, %p155
      %p157 = scmp.ne.s32.totalorder %s149, %s151
      %p158 = scmp.eq.s32.totalorder %s36, 1
      %p159 = por %p157, %p158
      %p160 = scmp.ne.s32.totalorder %s151, %s152
      %p161 = scmp.eq.s32.totalorder %s36, 0
      %p162 = por %p160, %p161
      %p163 = scmp.ne.s32.totalorder %s151, %s152
      %p164 = scmp.eq.s32.totalorder %s37, 1
      %p165 = por %p163, %p164
      %p167 = scmp.ne.s32.totalorder %s152, %s166
      %p168 = scmp.eq.s32.totalorder %s37, 0
      %p169 = por %p167, %p168
      %s171 = sadd.s32 %s170, 1
      %p174 = scmp.eq.s32.totalorder %s31, 1
      %p175 = scmp.ne.s32.totalorder %s170, %s172
      %p176 = scmp.eq.s32.totalorder %s31, 0
      %p177 = por %p175, %p176
      %p178 = scmp.ne.s32.totalorder %s170, %s172
      %p179 = scmp.eq.s32.totalorder %s36, 1
      %p180 = por %p178, %p179
      %p181 = scmp.ne.s32.totalorder %s172, %s173
      %p182 = scmp.eq.s32.totalorder %s36, 0
      %p183 = por %p181, %p182
      %p184 = scmp.ne.s32.totalorder %s172, %s173
      %p185 = scmp.eq.s32.totalorder %s37, 1
      %p186 = por %p184, %p185
      %p188 = scmp.ne.s32.totalorder %s173, %s187
      %p189 = scmp.eq.s32.totalorder %s37, 0
      %p190 = por %p188, %p189
      %s192 = sadd.s32 %s191, 1
      %p195 = scmp.eq.s32.totalorder %s31, 1
      %p196 = scmp.ne.s32.totalorder %s191, %s193
      %p197 = scmp.eq.s32.totalorder %s31, 0
      %p198 = por %p196, %p197
      %p199 = scmp.ne.s32.totalorder %s191, %s193
      %p200 = scmp.eq.s32.totalorder %s36, 1
      %p201 = por %p199, %p200
      %p202 = scmp.ne.s32.totalorder %s193, %s194
      %p203 = scmp.eq.s32.totalorder %s36, 0
      %p204 = por %p202, %p203
      %p205 = scmp.ne.s32.totalorder %s193, %s194
      %p206 = scmp.eq.s32.totalorder %s37, 1
      %p207 = por %p205, %p206
      %p209 = scmp.ne.s32.totalorder %s194, %s208
      %p210 = scmp.eq.s32.totalorder %s37, 0
      %p211 = por %p209, %p210
      %s213 = sadd.s32 %s212, 1
      %p216 = scmp.eq.s32.totalorder %s31, 1
      %p217 = scmp.ne.s32.totalorder %s212, %s214
      %p218 = scmp.eq.s32.totalorder %s31, 0
      %p219 = por %p217, %p218
      %p220 = scmp.ne.s32.totalorder %s212, %s214
      %p221 = scmp.eq.s32.totalorder %s36, 1
      %p222 = por %p220, %p221
      %p223 = scmp.ne.s32.totalorder %s214, %s215
      %p224 = scmp.eq.s32.totalorder %s36, 0
      %p225 = por %p223, %p224
      %p226 = scmp.ne.s32.totalorder %s214, %s215
      %p227 = scmp.eq.s32.totalorder %s37, 1
      %p228 = por %p226, %p227
      %p230 = scmp.ne.s32.totalorder %s215, %s229
      %p231 = scmp.eq.s32.totalorder %s37, 0
      %p232 = por %p230, %p231
      %s234 = sadd.s32 %s233, 1
      %p237 = scmp.eq.s32.totalorder %s31, 1
      %p238 = scmp.ne.s32.totalorder %s233, %s235
      %p239 = scmp.eq.s32.totalorder %s31, 0
      %p240 = por %p238, %p239
      %p241 = scmp.ne.s32.totalorder %s233, %s235
      %p242 = scmp.eq.s32.totalorder %s36, 1
      %p243 = por %p241, %p242
      %p244 = scmp.ne.s32.totalorder %s235, %s236
      %p245 = scmp.eq.s32.totalorder %s36, 0
      %p246 = por %p244, %p245
      %p247 = scmp.ne.s32.totalorder %s235, %s236
      %p248 = scmp.eq.s32.totalorder %s37, 1
      %p249 = por %p247, %p248
      %p251 = scmp.ne.s32.totalorder %s236, %s250
      %p252 = scmp.eq.s32.totalorder %s37, 0
      %p253 = por %p251, %p252
      %s255 = sadd.s32 %s254, 1
      %p258 = scmp.eq.s32.totalorder %s31, 1
      %p259 = scmp.ne.s32.totalorder %s254, %s256
      %p260 = scmp.eq.s32.totalorder %s31, 0
      %p261 = por %p259, %p260
      %p262 = scmp.ne.s32.totalorder %s254, %s256
      %p263 = scmp.eq.s32.totalorder %s36, 1
      %p264 = por %p262, %p263
      %p265 = scmp.ne.s32.totalorder %s256, %s257
      %p266 = scmp.eq.s32.totalorder %s36, 0
      %p267 = por %p265, %p266
      %p268 = scmp.ne.s32.totalorder %s256, %s257
      %p269 = scmp.eq.s32.totalorder %s37, 1
      %p270 = por %p268, %p269
      %p272 = scmp.ne.s32.totalorder %s257, %s271
      %p273 = scmp.eq.s32.totalorder %s37, 0
      %p274 = por %p272, %p273
      %s276 = sadd.s32 %s275, 1
      %p279 = scmp.eq.s32.totalorder %s31, 1
      %p280 = scmp.ne.s32.totalorder %s275, %s277
      %p281 = scmp.eq.s32.totalorder %s31, 0
      %p282 = por %p280, %p281
      %p283 = scmp.ne.s32.totalorder %s275, %s277
      %p284 = scmp.eq.s32.totalorder %s36, 1
      %p285 = por %p283, %p284
      %p286 = scmp.ne.s32.totalorder %s277, %s278
      %p287 = scmp.eq.s32.totalorder %s36, 0
      %p288 = por %p286, %p287
      %p289 = scmp.ne.s32.totalorder %s277, %s278
      %p290 = scmp.eq.s32.totalorder %s37, 1
      %p291 = por %p289, %p290
      %p293 = scmp.ne.s32.totalorder %s278, %s292
      %p294 = scmp.eq.s32.totalorder %s37, 0
      %p295 = por %p293, %p294
      %s297 = sadd.s32 %s296, 1
      %p300 = scmp.eq.s32.totalorder %s31, 1
      %p301 = scmp.ne.s32.totalorder %s296, %s298
      %p302 = scmp.eq.s32.totalorder %s31, 0
      %p303 = por %p301, %p302
      %p304 = scmp.ne.s32.totalorder %s296, %s298
      %p305 = scmp.eq.s32.totalorder %s36, 1
      %p306 = por %p304, %p305
      %p307 = scmp.ne.s32.totalorder %s298, %s299
      %p308 = scmp.eq.s32.totalorder %s36, 0
      %p309 = por %p307, %p308
      %p310 = scmp.ne.s32.totalorder %s298, %s299
      %p311 = scmp.eq.s32.totalorder %s37, 1
      %p312 = por %p310, %p311
      %p314 = scmp.ne.s32.totalorder %s299, %s313
      %p315 = scmp.eq.s32.totalorder %s37, 0
      %p316 = por %p314, %p315
      %s317 = ssub.s32 %s31, %s38
      %p318 = scmp.eq.s32.totalorder %s317, 0
      %s320 = sadd.s32 %s319, 1
      %s321 = scalar_select %p318, %s319, %s320
      %p324 = pneg %p318
      %p325 = scmp.eq.s32.totalorder %s31, 1
      %p326 = por %p324, %p325
      %p327 = scmp.ne.s32.totalorder %s319, %s322
      %p328 = scmp.eq.s32.totalorder %s31, 0
      %p329 = por %p327, %p328
      %p330 = scmp.ne.s32.totalorder %s319, %s322
      %p331 = scmp.eq.s32.totalorder %s36, 1
      %p332 = por %p330, %p331
      %p333 = scmp.ne.s32.totalorder %s322, %s323
      %p334 = scmp.eq.s32.totalorder %s36, 0
      %p335 = por %p333, %p334
      %p336 = scmp.ne.s32.totalorder %s322, %s323
      %p337 = scmp.eq.s32.totalorder %s37, 1
      %p338 = por %p336, %p337
      %p340 = scmp.ne.s32.totalorder %s323, %s339
      %p341 = scmp.eq.s32.totalorder %s37, 0
      %p342 = por %p340, %p341
      %p343 = scmp.le.s32.totalorder 1, %s31
      %p344 = scmp.lt.s32.totalorder %s31, 3
      %p345 = pnand %p343, %p344
      %p346 = pneg %p345
      // Predicated region
      $region9: #{tpu_custom_call.1} parent=5 // pred_check
        _
      $region10: #{tpu_custom_call.1} parent=5 // pred_check_branch
        %348 = sbr.rel (%p345) target = $region12
      $region11: #{tpu_custom_call.1} parent=5 // pred_region
        %s349 = ssub.s32 %s31, 1
        // Predicated region
        $region13: #{tpu_custom_call.1} parent=11 // pred_check
          %p350 = pneg %p78
        $region14: #{tpu_custom_call.1} parent=11 // pred_check_branch
          %352 = sbr.rel (%p350) target = $region16
        $region15: #{tpu_custom_call.1} parent=11 // pred_region
          %s354 = ssub.s32 16, 16
          %355 = vsyncadd [#allocation7], %s354
          %s357 = sshll.u32 [#allocation6], 4
          %s358 = int_to_ptr.vmem [resolvable:$true] %s357
          %360 = dma.hbm_to_vmem [thread:$0]  %s1, 16, %s358, [#allocation7]
        $region16: #{tpu_custom_call.1} parent=11 // pred_fallthru
          _
        // Predicated region
        $region17: #{tpu_custom_call.1} parent=11 // pred_check
          %p361 = pneg %p99
        $region18: #{tpu_custom_call.1} parent=11 // pred_check_branch
          %363 = sbr.rel (%p361) target = $region20
        $region19: #{tpu_custom_call.1} parent=11 // pred_region
          %s365 = ssub.s32 16, 16
          %366 = vsyncadd [#allocation7], %s365
          %s368 = sshll.u32 [#allocation8], 4
          %s369 = int_to_ptr.vmem [resolvable:$true] %s368
          %371 = dma.hbm_to_vmem [thread:$0]  %s2, 16, %s369, [#allocation7]
        $region20: #{tpu_custom_call.1} parent=11 // pred_fallthru
          _
        // Predicated region
        $region21: #{tpu_custom_call.1} parent=11 // pred_check
          %p372 = pneg %p120
        $region22: #{tpu_custom_call.1} parent=11 // pred_check_branch
          %374 = sbr.rel (%p372) target = $region24
        $region23: #{tpu_custom_call.1} parent=11 // pred_region
          %s376 = ssub.s32 512, 512
          %377 = vsyncadd [#allocation10], %s376
          %s378 = sshll.u32 [#allocation9], 4
          %s379 = int_to_ptr.vmem [resolvable:$true] %s378
          %384 = dma.hbm_to_vmem [thread:$0]  %s3, 512, %s379, [#allocation10], 128, 128, 8
        $region24: #{tpu_custom_call.1} parent=11 // pred_fallthru
          _
        // Predicated region
        $region25: #{tpu_custom_call.1} parent=11 // pred_check
          %p385 = pneg %p141
        $region26: #{tpu_custom_call.1} parent=11 // pred_check_branch
          %387 = sbr.rel (%p385) target = $region28
        $region27: #{tpu_custom_call.1} parent=11 // pred_region
          %s389 = ssub.s32 16, 16
          %390 = vsyncadd [#allocation10], %s389
          %s392 = sshll.u32 [#allocation11], 4
          %s393 = int_to_ptr.vmem [resolvable:$true] %s392
          %395 = dma.hbm_to_vmem [thread:$0]  %s4, 16, %s393, [#allocation10]
        $region28: #{tpu_custom_call.1} parent=11 // pred_fallthru
          _
        // Predicated region
        $region29: #{tpu_custom_call.1} parent=11 // pred_check
          %p396 = pneg %p162
        $region30: #{tpu_custom_call.1} parent=11 // pred_check_branch
          %398 = sbr.rel (%p396) target = $region32
        $region31: #{tpu_custom_call.1} parent=11 // pred_region
          %s400 = ssub.s32 512, 512
          %401 = vsyncadd [#allocation13], %s400
          %s402 = sshll.u32 [#allocation12], 4
          %s403 = int_to_ptr.vmem [resolvable:$true] %s402
          %408 = dma.hbm_to_vmem [thread:$0]  %s5, 512, %s403, [#allocation13], 128, 128, 8
        $region32: #{tpu_custom_call.1} parent=11 // pred_fallthru
          _
        // Predicated region
        $region33: #{tpu_custom_call.1} parent=11 // pred_check
          %p409 = pneg %p183
        $region34: #{tpu_custom_call.1} parent=11 // pred_check_branch
          %411 = sbr.rel (%p409) target = $region36
        $region35: #{tpu_custom_call.1} parent=11 // pred_region
          %s413 = ssub.s32 16, 16
          %414 = vsyncadd [#allocation13], %s413
          %s416 = sshll.u32 [#allocation14], 4
          %s417 = int_to_ptr.vmem [resolvable:$true] %s416
          %419 = dma.hbm_to_vmem [thread:$0]  %s6, 16, %s417, [#allocation13]
        $region36: #{tpu_custom_call.1} parent=11 // pred_fallthru
          _
        // Predicated region
        $region37: #{tpu_custom_call.1} parent=11 // pred_check
          %p420 = pneg %p204
        $region38: #{tpu_custom_call.1} parent=11 // pred_check_branch
          %422 = sbr.rel (%p420) target = $region40
        $region39: #{tpu_custom_call.1} parent=11 // pred_region
          %s424 = ssub.s32 16, 16
          %425 = vsyncadd [#allocation16], %s424
          %s427 = sshll.u32 [#allocation15], 4
          %s428 = int_to_ptr.vmem [resolvable:$true] %s427
          %430 = dma.hbm_to_vmem [thread:$0]  %s7, 16, %s428, [#allocation16]
        $region40: #{tpu_custom_call.1} parent=11 // pred_fallthru
          _
        // Predicated region
        $region41: #{tpu_custom_call.1} parent=11 // pred_check
          %p431 = pneg %p225
        $region42: #{tpu_custom_call.1} parent=11 // pred_check_branch
          %433 = sbr.rel (%p431) target = $region44
        $region43: #{tpu_custom_call.1} parent=11 // pred_region
          %s435 = ssub.s32 16, 16
          %436 = vsyncadd [#allocation16], %s435
          %s438 = sshll.u32 [#allocation17], 4
          %s439 = int_to_ptr.vmem [resolvable:$true] %s438
          %441 = dma.hbm_to_vmem [thread:$0]  %s8, 16, %s439, [#allocation16]
        $region44: #{tpu_custom_call.1} parent=11 // pred_fallthru
          _
        // Predicated region
        $region45: #{tpu_custom_call.1} parent=11 // pred_check
          %p442 = pneg %p246
        $region46: #{tpu_custom_call.1} parent=11 // pred_check_branch
          %444 = sbr.rel (%p442) target = $region48
        $region47: #{tpu_custom_call.1} parent=11 // pred_region
          %s446 = ssub.s32 512, 512
          %447 = vsyncadd [#allocation19], %s446
          %s448 = sshll.u32 [#allocation18], 4
          %s449 = int_to_ptr.vmem [resolvable:$true] %s448
          %454 = dma.hbm_to_vmem [thread:$0]  %s9, 512, %s449, [#allocation19], 128, 128, 8
        $region48: #{tpu_custom_call.1} parent=11 // pred_fallthru
          _
        // Predicated region
        $region49: #{tpu_custom_call.1} parent=11 // pred_check
          %p455 = pneg %p267
        $region50: #{tpu_custom_call.1} parent=11 // pred_check_branch
          %457 = sbr.rel (%p455) target = $region52
        $region51: #{tpu_custom_call.1} parent=11 // pred_region
          %s459 = ssub.s32 16, 16
          %460 = vsyncadd [#allocation19], %s459
          %s462 = sshll.u32 [#allocation20], 4
          %s463 = int_to_ptr.vmem [resolvable:$true] %s462
          %465 = dma.hbm_to_vmem [thread:$0]  %s10, 16, %s463, [#allocation19]
        $region52: #{tpu_custom_call.1} parent=11 // pred_fallthru
          _
        // Predicated region
        $region53: #{tpu_custom_call.1} parent=11 // pred_check
          %p466 = pneg %p288
        $region54: #{tpu_custom_call.1} parent=11 // pred_check_branch
          %468 = sbr.rel (%p466) target = $region56
        $region55: #{tpu_custom_call.1} parent=11 // pred_region
          %s470 = ssub.s32 2048, 2048
          %471 = vsyncadd [#allocation22], %s470
          %s472 = sshll.u32 [#allocation21], 4
          %s473 = int_to_ptr.vmem [resolvable:$true] %s472
          %478 = dma.hbm_to_vmem [thread:$0]  %s11, 2048, %s473, [#allocation22], 128, 128, 8
        $region56: #{tpu_custom_call.1} parent=11 // pred_fallthru
          _
        // Predicated region
        $region57: #{tpu_custom_call.1} parent=11 // pred_check
          %p479 = pneg %p309
        $region58: #{tpu_custom_call.1} parent=11 // pred_check_branch
          %481 = sbr.rel (%p479) target = $region60
        $region59: #{tpu_custom_call.1} parent=11 // pred_region
          %s483 = ssub.s32 16, 16
          %484 = vsyncadd [#allocation22], %s483
          %s486 = sshll.u32 [#allocation23], 4
          %s487 = int_to_ptr.vmem [resolvable:$true] %s486
          %489 = dma.hbm_to_vmem [thread:$0]  %s12, 16, %s487, [#allocation22]
        $region60: #{tpu_custom_call.1} parent=11 // pred_fallthru
          _
      $region12: #{tpu_custom_call.1} parent=5 // pred_fallthru
        _
      %p490 = scmp.lt.s32.totalorder %s31, 2
      // Predicated region
      $region61: #{tpu_custom_call.1} parent=5 // pred_check
        %p491 = pneg %p490
      $region62: #{tpu_custom_call.1} parent=5 // pred_check_branch
        %493 = sbr.rel (%p491) target = $region64
      $region63: #{tpu_custom_call.1} parent=5 // pred_region
        // Predicated region
        $region65: #{tpu_custom_call.1} parent=63 // pred_check
          %p494 = pneg %p51
        $region66: #{tpu_custom_call.1} parent=63 // pred_check_branch
          %496 = sbr.rel (%p494) target = $region68
        $region67: #{tpu_custom_call.1} parent=63 // pred_region
          %s497 = sand.u32 %s41, 1
          %s498 = scalar_lea.sflag [#allocation4], %s497
          %s499 = sand.u32 %s41, 1
          %s500 = smul.addr %s499, 8
          %s501 = scalar_lea.vmem [#allocation3], %s500
          %s503 = ssub.s32 128, 128
          %504 = vsyncadd %s498, %s503
          %s505 = smul.addr %s31, 128
          %s506 = scalar_lea.hbm %s0, %s505
          %s508 = sshll.u32 %s501, 4
          %s509 = int_to_ptr.vmem [resolvable:$true] %s508
          %511 = dma.hbm_to_vmem [thread:$0]  %s506, 128, %s509, %s498
        $region68: #{tpu_custom_call.1} parent=63 // pred_fallthru
          _
      $region64: #{tpu_custom_call.1} parent=5 // pred_fallthru
        _
      %p512 = scmp.le.s32.totalorder 1, %s31
      %p513 = scmp.lt.s32.totalorder %s31, 3
      %p514 = pnand %p512, %p513
      %p515 = pneg %p514
      // Predicated region
      $region69: #{tpu_custom_call.1} parent=5 // pred_check
        _
      $region70: #{tpu_custom_call.1} parent=5 // pred_check_branch
        %517 = sbr.rel (%p514) target = $region72
      $region71: #{tpu_custom_call.1} parent=5 // pred_region
        %s518 = ssub.s32 %s31, 1
        %s519 = sand.u32 %s44, 1
        %s520 = scalar_lea.sflag [#allocation4], %s519
        %s521 = sand.u32 %s44, 1
        %s522 = smul.addr %s521, 8
        %s523 = scalar_lea.vmem [#allocation3], %s522
        // Predicated region
        $region73: #{tpu_custom_call.1} parent=71 // pred_check
          %p524 = pneg %p57
        $region74: #{tpu_custom_call.1} parent=71 // pred_check_branch
          %526 = sbr.rel (%p524) target = $region76
        $region75: #{tpu_custom_call.1} parent=71 // pred_region
          %527 = dma.done %s520, 128
        $region76: #{tpu_custom_call.1} parent=71 // pred_fallthru
          _
        // Predicated region
        $region77: #{tpu_custom_call.1} parent=71 // pred_check
          %p528 = pneg %p78
        $region78: #{tpu_custom_call.1} parent=71 // pred_check_branch
          %530 = sbr.rel (%p528) target = $region80
        $region79: #{tpu_custom_call.1} parent=71 // pred_region
          %531 = dma.done [#allocation7], 16
        $region80: #{tpu_custom_call.1} parent=71 // pred_fallthru
          _
        // Predicated region
        $region81: #{tpu_custom_call.1} parent=71 // pred_check
          %p532 = pneg %p99
        $region82: #{tpu_custom_call.1} parent=71 // pred_check_branch
          %534 = sbr.rel (%p532) target = $region84
        $region83: #{tpu_custom_call.1} parent=71 // pred_region
          %535 = dma.done [#allocation7], 16
        $region84: #{tpu_custom_call.1} parent=71 // pred_fallthru
          _
        // Predicated region
        $region85: #{tpu_custom_call.1} parent=71 // pred_check
          %p536 = pneg %p120
        $region86: #{tpu_custom_call.1} parent=71 // pred_check_branch
          %538 = sbr.rel (%p536) target = $region88
        $region87: #{tpu_custom_call.1} parent=71 // pred_region
          %539 = dma.done [#allocation10], 512
        $region88: #{tpu_custom_call.1} parent=71 // pred_fallthru
          _
        // Predicated region
        $region89: #{tpu_custom_call.1} parent=71 // pred_check
          %p540 = pneg %p141
        $region90: #{tpu_custom_call.1} parent=71 // pred_check_branch
          %542 = sbr.rel (%p540) target = $region92
        $region91: #{tpu_custom_call.1} parent=71 // pred_region
          %543 = dma.done [#allocation10], 16
        $region92: #{tpu_custom_call.1} parent=71 // pred_fallthru
          _
        // Predicated region
        $region93: #{tpu_custom_call.1} parent=71 // pred_check
          %p544 = pneg %p162
        $region94: #{tpu_custom_call.1} parent=71 // pred_check_branch
          %546 = sbr.rel (%p544) target = $region96
        $region95: #{tpu_custom_call.1} parent=71 // pred_region
          %547 = dma.done [#allocation13], 512
        $region96: #{tpu_custom_call.1} parent=71 // pred_fallthru
          _
        // Predicated region
        $region97: #{tpu_custom_call.1} parent=71 // pred_check
          %p548 = pneg %p183
        $region98: #{tpu_custom_call.1} parent=71 // pred_check_branch
          %550 = sbr.rel (%p548) target = $region100
        $region99: #{tpu_custom_call.1} parent=71 // pred_region
          %551 = dma.done [#allocation13], 16
        $region100: #{tpu_custom_call.1} parent=71 // pred_fallthru
          _
        // Predicated region
        $region101: #{tpu_custom_call.1} parent=71 // pred_check
          %p552 = pneg %p204
        $region102: #{tpu_custom_call.1} parent=71 // pred_check_branch
          %554 = sbr.rel (%p552) target = $region104
        $region103: #{tpu_custom_call.1} parent=71 // pred_region
          %555 = dma.done [#allocation16], 16
        $region104: #{tpu_custom_call.1} parent=71 // pred_fallthru
          _
        // Predicated region
        $region105: #{tpu_custom_call.1} parent=71 // pred_check
          %p556 = pneg %p225
        $region106: #{tpu_custom_call.1} parent=71 // pred_check_branch
          %558 = sbr.rel (%p556) target = $region108
        $region107: #{tpu_custom_call.1} parent=71 // pred_region
          %559 = dma.done [#allocation16], 16
        $region108: #{tpu_custom_call.1} parent=71 // pred_fallthru
          _
        // Predicated region
        $region109: #{tpu_custom_call.1} parent=71 // pred_check
          %p560 = pneg %p246
        $region110: #{tpu_custom_call.1} parent=71 // pred_check_branch
          %562 = sbr.rel (%p560) target = $region112
        $region111: #{tpu_custom_call.1} parent=71 // pred_region
          %563 = dma.done [#allocation19], 512
        $region112: #{tpu_custom_call.1} parent=71 // pred_fallthru
          _
        // Predicated region
        $region113: #{tpu_custom_call.1} parent=71 // pred_check
          %p564 = pneg %p267
        $region114: #{tpu_custom_call.1} parent=71 // pred_check_branch
          %566 = sbr.rel (%p564) target = $region116
        $region115: #{tpu_custom_call.1} parent=71 // pred_region
          %567 = dma.done [#allocation19], 16
        $region116: #{tpu_custom_call.1} parent=71 // pred_fallthru
          _
        // Predicated region
        $region117: #{tpu_custom_call.1} parent=71 // pred_check
          %p568 = pneg %p288
        $region118: #{tpu_custom_call.1} parent=71 // pred_check_branch
          %570 = sbr.rel (%p568) target = $region120
        $region119: #{tpu_custom_call.1} parent=71 // pred_region
          %571 = dma.done [#allocation22], 2048
        $region120: #{tpu_custom_call.1} parent=71 // pred_fallthru
          _
        // Predicated region
        $region121: #{tpu_custom_call.1} parent=71 // pred_check
          %p572 = pneg %p309
        $region122: #{tpu_custom_call.1} parent=71 // pred_check_branch
          %574 = sbr.rel (%p572) target = $region124
        $region123: #{tpu_custom_call.1} parent=71 // pred_region
          %575 = dma.done [#allocation22], 16
        $region124: #{tpu_custom_call.1} parent=71 // pred_fallthru
          _
        %s576 = sand.u32 %s44, 1
        %s577 = scalar_lea.sflag [#allocation4], %s576
        %s578 = sand.u32 %s44, 1
        %s579 = smul.addr %s578, 8
        %s580 = scalar_lea.vmem [#allocation3], %s579
        %p581 = pneg %p57
        %p582 = pneg %p54
        %p583 = pneg %p78
        %p584 = pneg %p75
        %p585 = pneg %p99
        %p586 = pneg %p96
        %p587 = pneg %p120
        %p588 = pneg %p117
        %p589 = pneg %p141
        %p590 = pneg %p138
        %p591 = pneg %p162
        %p592 = pneg %p159
        %p593 = pneg %p183
        %p594 = pneg %p180
        %p595 = pneg %p204
        %p596 = pneg %p201
        %p597 = pneg %p225
        %p598 = pneg %p222
        %p599 = pneg %p246
        %p600 = pneg %p243
        %p601 = pneg %p267
        %p602 = pneg %p264
        %p603 = pneg %p288
        %p604 = pneg %p285
        %p605 = pneg %p309
        %p606 = pneg %p306
        %p607 = pneg %p335
        %p608 = pneg %p332
        %s609 = sand.u32 %s322, 1
        %s610 = scalar_lea.sflag [#allocation5], %s609
        %s611 = sand.u32 %s322, 1
        %s612 = smul.addr %s611, 8
        %s613 = scalar_lea.vmem [#allocation24], %s612
        %v614 = vld [vmem:[%s523] sm:$0xff]
        %v615 = vld [vmem:[#allocation6] sm:$0x1]
        %v616 = vld [vmem:[#allocation8] sm:$0x1]
        %vm617 = vcmask 261120
        %v618 = vsel %vm617, %v614, 0.0
        %619 = vadd.xlane.f32.xlu0 %v618
        %v620 = vpop.xlane.xlu0 %619
        %v621 = vrcp.pop 32.0
        %v622 = vmul.f32 %v620, %v621
        %v623 = vmul.f32 %v614, %v614
        %v624 = vsel %vm617, %v623, 0.0
        %625 = vadd.xlane.f32.xlu0 %v624
        %v626 = vpop.xlane.xlu0 %625
        %v627 = vmul.f32 %v626, %v621
        %v628 = vmul.f32 %v622, %v622
        %v629 = vsub.f32 %v627, %v628
        %v630 = vsub.f32 %v614, %v622
        %v631 = vadd.f32 %v629, 1e-05
        %v632 = vrsqrt.pop %v631
        %v633 = vmul.f32 %v630, %v632
        %v635 = vlaneseq
        %v636 = vshrl.u32 %v635, 7
        %v637 = vsub.s32 0, %v636
        %v638 = vrot.slane %v615, %v637
        %v640 = vmul.f32 %v633, %v638
        %v642 = vlaneseq
        %v643 = vshrl.u32 %v642, 7
        %v644 = vsub.s32 0, %v643
        %v645 = vrot.slane %v616, %v644
        %v647 = vadd.f32 %v640, %v645
        %v648 = vld [vmem:[#allocation9] sm:$0xff]
        %v649 = vld [vmem:[#allocation9 + $0x8] sm:$0xff]
        %v650 = vld [vmem:[#allocation9 + $0x10] sm:$0xff]
        %v651 = vld [vmem:[#allocation9 + $0x18] sm:$0xff]
        %v652 = vld [vmem:[#allocation11] sm:$0x1]
        %v654 = vlaneseq
        %v655 = vshrl.u32 %v654, 7
        %v656 = vsub.s32 0, %v655
        %v657 = vrot.slane %v652, %v656
        %v660 = vsel %vm617, %v647, 0
        %662 = vmatprep.subr.mxu0 0.0
        %663 = vmatpush1.msra.mxu0 %v648
        %664 = vmatprep.subr.mxu0 0.0
        %665 = vmatpush1.msra.mxu0 %v649
        %666 = vmatprep.subr.mxu0 0.0
        %667 = vmatpush1.msra.mxu0 %v650
        %668 = vmatprep.subr.mxu0 0.0
        %669 = vmatpush1.msra.mxu0 %v651
        %670 = vmatprep.subr.mxu0 0.0
        %671 = vmatpush1.msra.mxu0 0.0
        %672 = vmatprep.subr.mxu0 0.0
        %673 = vmatpush1.msra.mxu0 0.0
        %674 = vmatprep.subr.mxu0 0.0
        %675 = vmatpush1.msra.mxu0 0.0
        %676 = vmatprep.subr.mxu0 0.0
        %677 = vmatpush1.msra.mxu0 0.0
        %678 = vmatprep.subr.mxu0 0.0
        %679 = vmatpush1.msra.mxu0 0.0
        %680 = vmatprep.subr.mxu0 0.0
        %681 = vmatpush1.msra.mxu0 0.0
        %682 = vmatprep.subr.mxu0 0.0
        %683 = vmatpush1.msra.mxu0 0.0
        %684 = vmatprep.subr.mxu0 0.0
        %685 = vmatpush1.msra.mxu0 0.0
        %686 = vmatprep.subr.mxu0 0.0
        %687 = vmatpush1.msra.mxu0 0.0
        %688 = vmatprep.subr.mxu0 0.0
        %689 = vmatpush1.msra.mxu0 0.0
        %690 = vmatprep.subr.mxu0 0.0
        %691 = vmatpush1.msra.mxu0 0.0
        %692 = vmatprep.subr.mxu0 0.0
        %693 = vmatpush1.msra.mxu0 0.0
        %694 = vmatprep.subr.mxu0 0.0
        %695 = vmatpush1.msra.mxu0 0.0
        %696 = vmatprep.subr.mxu0 0.0
        %697 = vmatpush1.msra.mxu0 0.0
        %698 = vmatprep.subr.mxu0 0.0
        %699 = vmatpush1.msra.mxu0 0.0
        %700 = vmatprep.subr.mxu0 0.0
        %701 = vmatpush1.msra.mxu0 0.0
        %702 = vmatprep.subr.mxu0 0.0
        %703 = vmatpush1.msra.mxu0 0.0
        %704 = vmatprep.subr.mxu0 0.0
        %705 = vmatpush1.msra.mxu0 0.0
        %706 = vmatprep.subr.mxu0 0.0
        %707 = vmatpush1.msra.mxu0 0.0
        %708 = vmatprep.subr.mxu0 0.0
        %709 = vmatpush1.msra.mxu0 0.0
        %710 = vmatprep.subr.mxu0 0.0
        %711 = vmatpush1.msra.mxu0 0.0
        %712 = vmatprep.subr.mxu0 0.0
        %713 = vmatpush1.msra.mxu0 0.0
        %714 = vmatprep.subr.mxu0 0.0
        %715 = vmatpush1.msra.mxu0 0.0
        %716 = vmatprep.subr.mxu0 0.0
        %717 = vmatpush1.msra.mxu0 0.0
        %718 = vmatprep.subr.mxu0 0.0
        %719 = vmatpush1.msra.mxu0 0.0
        %720 = vmatprep.subr.mxu0 0.0
        %721 = vmatpush1.msra.mxu0 0.0
        %722 = vmatprep.subr.mxu0 0.0
        %723 = vmatpush1.msra.mxu0 0.0
        %724 = vmatprep.subr.mxu0 0.0
        %725 = vmatpush1.msra.mxu0 0.0
        %726 = vmatprep.mubr.f32.mxu0 0.0
        %727 = vmatmul.mubr.f32.gmra.mrb[0].mxu0 %v660
        %v728 = vpop.f32.mrb[0].mxu0
        %v729 = vadd.f32 %v657, %v728
        %v730 = vpop.f32.mrb[0].mxu0
        %731 = vdwg.mxu0
        %v732 = vmul.f32 %v729, 0.35355338
        %734 = vrot.lane.b32.xlu0 %v729, 96
        %v735 = vpop.permute.xlu0 %734
        %vm736 = vcmask 64512
        %v738 = vsel %vm736, %v732, 0
        %v740 = vsel %vm736, %v735, 0
        %742 = vmatprep.subr.mxu0 0.0
        %743 = vmatpush1.xpose.msra.mxu0 %v740
        %744 = vmatprep.subr.mxu0 0.0
        %745 = vmatpush1.xpose.msra.mxu0 0.0
        %746 = vmatprep.subr.mxu0 0.0
        %747 = vmatpush1.xpose.msra.mxu0 0.0
        %748 = vmatprep.subr.mxu0 0.0
        %749 = vmatpush1.xpose.msra.mxu0 0.0
        %750 = vmatprep.subr.mxu0 0.0
        %751 = vmatpush1.xpose.msra.mxu0 0.0
        %752 = vmatprep.subr.mxu0 0.0
        %753 = vmatpush1.xpose.msra.mxu0 0.0
        %754 = vmatprep.subr.mxu0 0.0
        %755 = vmatpush1.xpose.msra.mxu0 0.0
        %756 = vmatprep.subr.mxu0 0.0
        %757 = vmatpush1.xpose.msra.mxu0 0.0
        %758 = vmatprep.subr.mxu0 0.0
        %759 = vmatpush1.xpose.msra.mxu0 0.0
        %760 = vmatprep.subr.mxu0 0.0
        %761 = vmatpush1.xpose.msra.mxu0 0.0
        %762 = vmatprep.subr.mxu0 0.0
        %763 = vmatpush1.xpose.msra.mxu0 0.0
        %764 = vmatprep.subr.mxu0 0.0
        %765 = vmatpush1.xpose.msra.mxu0 0.0
        %766 = vmatprep.subr.mxu0 0.0
        %767 = vmatpush1.xpose.msra.mxu0 0.0
        %768 = vmatprep.subr.mxu0 0.0
        %769 = vmatpush1.xpose.msra.mxu0 0.0
        %770 = vmatprep.subr.mxu0 0.0
        %771 = vmatpush1.xpose.msra.mxu0 0.0
        %772 = vmatprep.subr.mxu0 0.0
        %773 = vmatpush1.xpose.msra.mxu0 0.0
        %774 = vmatprep.subr.mxu0 0.0
        %775 = vmatpush1.xpose.msra.mxu0 0.0
        %776 = vmatprep.subr.mxu0 0.0
        %777 = vmatpush1.xpose.msra.mxu0 0.0
        %778 = vmatprep.subr.mxu0 0.0
        %779 = vmatpush1.xpose.msra.mxu0 0.0
        %780 = vmatprep.subr.mxu0 0.0
        %781 = vmatpush1.xpose.msra.mxu0 0.0
        %782 = vmatprep.subr.mxu0 0.0
        %783 = vmatpush1.xpose.msra.mxu0 0.0
        %784 = vmatprep.subr.mxu0 0.0
        %785 = vmatpush1.xpose.msra.mxu0 0.0
        %786 = vmatprep.subr.mxu0 0.0
        %787 = vmatpush1.xpose.msra.mxu0 0.0
        %788 = vmatprep.subr.mxu0 0.0
        %789 = vmatpush1.xpose.msra.mxu0 0.0
        %790 = vmatprep.subr.mxu0 0.0
        %791 = vmatpush1.xpose.msra.mxu0 0.0
        %792 = vmatprep.subr.mxu0 0.0
        %793 = vmatpush1.xpose.msra.mxu0 0.0
        %794 = vmatprep.subr.mxu0 0.0
        %795 = vmatpush1.xpose.msra.mxu0 0.0
        %796 = vmatprep.subr.mxu0 0.0
        %797 = vmatpush1.xpose.msra.mxu0 0.0
        %798 = vmatprep.subr.mxu0 0.0
        %799 = vmatpush1.xpose.msra.mxu0 0.0
        %800 = vmatprep.subr.mxu0 0.0
        %801 = vmatpush1.xpose.msra.mxu0 0.0
        %802 = vmatprep.subr.mxu0 0.0
        %803 = vmatpush1.xpose.msra.mxu0 0.0
        %804 = vmatprep.subr.mxu0 0.0
        %805 = vmatpush1.xpose.msra.mxu0 0.0
        %806 = vmatprep.mubr.f32.mxu0 0.0
        %807 = vmatmul.mubr.f32.gmra.mrb[0].mxu0 %v738
        %v808 = vpop.f32.mrb[0].mxu0
        %v809 = vadd.f32 0.0, %v808
        %v810 = vpop.f32.mrb[0].mxu0
        %811 = vdwg.mxu0
        %v812 = vsel %vm736, %v809, -inf
        %813 = vmax.xlane.f32.xlu0 %v812
        %v814 = vpop.xlane.xlu0 %813
        %v815 = vsub.f32 %v809, %v814
        %v816 = vmul.f32 %v815, 1.442695
        %v817 = vpow.pop %v816
        %v818 = vsel %vm736, %v817, 0.0
        %819 = vadd.xlane.f32.xlu0 %v818
        %v820 = vpop.xlane.xlu0 %819
        %v821 = vrcp.pop %v820
        %v822 = vmul.f32 %v817, %v821
        %823 = vrot.lane.b32.xlu0 %v729, 64
        %v824 = vpop.permute.xlu0 %823
        %v827 = vsel %vm736, %v822, 0
        %829 = vmatprep.subr.mxu0 0.0
        %830 = vmatpush1.msra.mxu0 %v824
        %831 = vmatprep.subr.mxu0 0.0
        %832 = vmatpush1.msra.mxu0 0.0
        %833 = vmatprep.subr.mxu0 0.0
        %834 = vmatpush1.msra.mxu0 0.0
        %835 = vmatprep.subr.mxu0 0.0
        %836 = vmatpush1.msra.mxu0 0.0
        %837 = vmatprep.subr.mxu0 0.0
        %838 = vmatpush1.msra.mxu0 0.0
        %839 = vmatprep.subr.mxu0 0.0
        %840 = vmatpush1.msra.mxu0 0.0
        %841 = vmatprep.subr.mxu0 0.0
        %842 = vmatpush1.msra.mxu0 0.0
        %843 = vmatprep.subr.mxu0 0.0
        %844 = vmatpush1.msra.mxu0 0.0
        %845 = vmatprep.subr.mxu0 0.0
        %846 = vmatpush1.msra.mxu0 0.0
        %847 = vmatprep.subr.mxu0 0.0
        %848 = vmatpush1.msra.mxu0 0.0
        %849 = vmatprep.subr.mxu0 0.0
        %850 = vmatpush1.msra.mxu0 0.0
        %851 = vmatprep.subr.mxu0 0.0
        %852 = vmatpush1.msra.mxu0 0.0
        %853 = vmatprep.subr.mxu0 0.0
        %854 = vmatpush1.msra.mxu0 0.0
        %855 = vmatprep.subr.mxu0 0.0
        %856 = vmatpush1.msra.mxu0 0.0
        %857 = vmatprep.subr.mxu0 0.0
        %858 = vmatpush1.msra.mxu0 0.0
        %859 = vmatprep.subr.mxu0 0.0
        %860 = vmatpush1.msra.mxu0 0.0
        %861 = vmatprep.subr.mxu0 0.0
        %862 = vmatpush1.msra.mxu0 0.0
        %863 = vmatprep.subr.mxu0 0.0
        %864 = vmatpush1.msra.mxu0 0.0
        %865 = vmatprep.subr.mxu0 0.0
        %866 = vmatpush1.msra.mxu0 0.0
        %867 = vmatprep.subr.mxu0 0.0
        %868 = vmatpush1.msra.mxu0 0.0
        %869 = vmatprep.subr.mxu0 0.0
        %870 = vmatpush1.msra.mxu0 0.0
        %871 = vmatprep.subr.mxu0 0.0
        %872 = vmatpush1.msra.mxu0 0.0
        %873 = vmatprep.subr.mxu0 0.0
        %874 = vmatpush1.msra.mxu0 0.0
        %875 = vmatprep.subr.mxu0 0.0
        %876 = vmatpush1.msra.mxu0 0.0
        %877 = vmatprep.subr.mxu0 0.0
        %878 = vmatpush1.msra.mxu0 0.0
        %879 = vmatprep.subr.mxu0 0.0
        %880 = vmatpush1.msra.mxu0 0.0
        %881 = vmatprep.subr.mxu0 0.0
        %882 = vmatpush1.msra.mxu0 0.0
        %883 = vmatprep.subr.mxu0 0.0
        %884 = vmatpush1.msra.mxu0 0.0
        %885 = vmatprep.subr.mxu0 0.0
        %886 = vmatpush1.msra.mxu0 0.0
        %887 = vmatprep.subr.mxu0 0.0
        %888 = vmatpush1.msra.mxu0 0.0
        %889 = vmatprep.subr.mxu0 0.0
        %890 = vmatpush1.msra.mxu0 0.0
        %891 = vmatprep.subr.mxu0 0.0
        %892 = vmatpush1.msra.mxu0 0.0
        %893 = vmatprep.mubr.f32.mxu0 0.0
        %894 = vmatmul.mubr.f32.gmra.mrb[0].mxu0 %v827
        %v895 = vpop.f32.mrb[0].mxu0
        %v896 = vadd.f32 0.0, %v895
        %v897 = vpop.f32.mrb[0].mxu0
        %898 = vdwg.mxu0
        %899 = vst.msk [vmem:[#allocation2] sm:$0xff] %vm736, %v896
        %900 = vrot.lane.b32.xlu0 %v732, 120
        %v901 = vpop.permute.xlu0 %900
        %902 = vrot.lane.b32.xlu0 %v729, 88
        %v903 = vpop.permute.xlu0 %902
        %v904 = vsel %vm736, %v901, 0
        %v906 = vsel %vm736, %v903, 0
        %908 = vmatprep.subr.mxu0 0.0
        %909 = vmatpush1.xpose.msra.mxu0 %v906
        %910 = vmatprep.subr.mxu0 0.0
        %911 = vmatpush1.xpose.msra.mxu0 0.0
        %912 = vmatprep.subr.mxu0 0.0
        %913 = vmatpush1.xpose.msra.mxu0 0.0
        %914 = vmatprep.subr.mxu0 0.0
        %915 = vmatpush1.xpose.msra.mxu0 0.0
        %916 = vmatprep.subr.mxu0 0.0
        %917 = vmatpush1.xpose.msra.mxu0 0.0
        %918 = vmatprep.subr.mxu0 0.0
        %919 = vmatpush1.xpose.msra.mxu0 0.0
        %920 = vmatprep.subr.mxu0 0.0
        %921 = vmatpush1.xpose.msra.mxu0 0.0
        %922 = vmatprep.subr.mxu0 0.0
        %923 = vmatpush1.xpose.msra.mxu0 0.0
        %924 = vmatprep.subr.mxu0 0.0
        %925 = vmatpush1.xpose.msra.mxu0 0.0
        %926 = vmatprep.subr.mxu0 0.0
        %927 = vmatpush1.xpose.msra.mxu0 0.0
        %928 = vmatprep.subr.mxu0 0.0
        %929 = vmatpush1.xpose.msra.mxu0 0.0
        %930 = vmatprep.subr.mxu0 0.0
        %931 = vmatpush1.xpose.msra.mxu0 0.0
        %932 = vmatprep.subr.mxu0 0.0
        %933 = vmatpush1.xpose.msra.mxu0 0.0
        %934 = vmatprep.subr.mxu0 0.0
        %935 = vmatpush1.xpose.msra.mxu0 0.0
        %936 = vmatprep.subr.mxu0 0.0
        %937 = vmatpush1.xpose.msra.mxu0 0.0
        %938 = vmatprep.subr.mxu0 0.0
        %939 = vmatpush1.xpose.msra.mxu0 0.0
        %940 = vmatprep.subr.mxu0 0.0
        %941 = vmatpush1.xpose.msra.mxu0 0.0
        %942 = vmatprep.subr.mxu0 0.0
        %943 = vmatpush1.xpose.msra.mxu0 0.0
        %944 = vmatprep.subr.mxu0 0.0
        %945 = vmatpush1.xpose.msra.mxu0 0.0
        %946 = vmatprep.subr.mxu0 0.0
        %947 = vmatpush1.xpose.msra.mxu0 0.0
        %948 = vmatprep.subr.mxu0 0.0
        %949 = vmatpush1.xpose.msra.mxu0 0.0
        %950 = vmatprep.subr.mxu0 0.0
        %951 = vmatpush1.xpose.msra.mxu0 0.0
        %952 = vmatprep.subr.mxu0 0.0
        %953 = vmatpush1.xpose.msra.mxu0 0.0
        %954 = vmatprep.subr.mxu0 0.0
        %955 = vmatpush1.xpose.msra.mxu0 0.0
        %956 = vmatprep.subr.mxu0 0.0
        %957 = vmatpush1.xpose.msra.mxu0 0.0
        %958 = vmatprep.subr.mxu0 0.0
        %959 = vmatpush1.xpose.msra.mxu0 0.0
        %960 = vmatprep.subr.mxu0 0.0
        %961 = vmatpush1.xpose.msra.mxu0 0.0
        %962 = vmatprep.subr.mxu0 0.0
        %963 = vmatpush1.xpose.msra.mxu0 0.0
        %964 = vmatprep.subr.mxu0 0.0
        %965 = vmatpush1.xpose.msra.mxu0 0.0
        %966 = vmatprep.subr.mxu0 0.0
        %967 = vmatpush1.xpose.msra.mxu0 0.0
        %968 = vmatprep.subr.mxu0 0.0
        %969 = vmatpush1.xpose.msra.mxu0 0.0
        %970 = vmatprep.subr.mxu0 0.0
        %971 = vmatpush1.xpose.msra.mxu0 0.0
        %972 = vmatprep.mubr.f32.mxu0 0.0
        %973 = vmatmul.mubr.f32.gmra.mrb[0].mxu0 %v904
        %v974 = vpop.f32.mrb[0].mxu0
        %v975 = vadd.f32 0.0, %v974
        %v976 = vpop.f32.mrb[0].mxu0
        %977 = vdwg.mxu0
        %v978 = vsel %vm736, %v975, -inf
        %979 = vmax.xlane.f32.xlu0 %v978
        %v980 = vpop.xlane.xlu0 %979
        %v981 = vsub.f32 %v975, %v980
        %v982 = vmul.f32 %v981, 1.442695
        %v983 = vpow.pop %v982
        %v984 = vsel %vm736, %v983, 0.0
        %985 = vadd.xlane.f32.xlu0 %v984
        %v986 = vpop.xlane.xlu0 %985
        %v987 = vrcp.pop %v986
        %v988 = vmul.f32 %v983, %v987
        %989 = vrot.lane.b32.xlu0 %v729, 56
        %v990 = vpop.permute.xlu0 %989
        %v993 = vsel %vm736, %v988, 0
        %995 = vmatprep.subr.mxu0 0.0
        %996 = vmatpush1.msra.mxu0 %v990
        %997 = vmatprep.subr.mxu0 0.0
        %998 = vmatpush1.msra.mxu0 0.0
        %999 = vmatprep.subr.mxu0 0.0
        %1000 = vmatpush1.msra.mxu0 0.0
        %1001 = vmatprep.subr.mxu0 0.0
        %1002 = vmatpush1.msra.mxu0 0.0
        %1003 = vmatprep.subr.mxu0 0.0
        %1004 = vmatpush1.msra.mxu0 0.0
        %1005 = vmatprep.subr.mxu0 0.0
        %1006 = vmatpush1.msra.mxu0 0.0
        %1007 = vmatprep.subr.mxu0 0.0
        %1008 = vmatpush1.msra.mxu0 0.0
        %1009 = vmatprep.subr.mxu0 0.0
        %1010 = vmatpush1.msra.mxu0 0.0
        %1011 = vmatprep.subr.mxu0 0.0
        %1012 = vmatpush1.msra.mxu0 0.0
        %1013 = vmatprep.subr.mxu0 0.0
        %1014 = vmatpush1.msra.mxu0 0.0
        %1015 = vmatprep.subr.mxu0 0.0
        %1016 = vmatpush1.msra.mxu0 0.0
        %1017 = vmatprep.subr.mxu0 0.0
        %1018 = vmatpush1.msra.mxu0 0.0
        %1019 = vmatprep.subr.mxu0 0.0
        %1020 = vmatpush1.msra.mxu0 0.0
        %1021 = vmatprep.subr.mxu0 0.0
        %1022 = vmatpush1.msra.mxu0 0.0
        %1023 = vmatprep.subr.mxu0 0.0
        %1024 = vmatpush1.msra.mxu0 0.0
        %1025 = vmatprep.subr.mxu0 0.0
        %1026 = vmatpush1.msra.mxu0 0.0
        %1027 = vmatprep.subr.mxu0 0.0
        %1028 = vmatpush1.msra.mxu0 0.0
        %1029 = vmatprep.subr.mxu0 0.0
        %1030 = vmatpush1.msra.mxu0 0.0
        %1031 = vmatprep.subr.mxu0 0.0
        %1032 = vmatpush1.msra.mxu0 0.0
        %1033 = vmatprep.subr.mxu0 0.0
        %1034 = vmatpush1.msra.mxu0 0.0
        %1035 = vmatprep.subr.mxu0 0.0
        %1036 = vmatpush1.msra.mxu0 0.0
        %1037 = vmatprep.subr.mxu0 0.0
        %1038 = vmatpush1.msra.mxu0 0.0
        %1039 = vmatprep.subr.mxu0 0.0
        %1040 = vmatpush1.msra.mxu0 0.0
        %1041 = vmatprep.subr.mxu0 0.0
        %1042 = vmatpush1.msra.mxu0 0.0
        %1043 = vmatprep.subr.mxu0 0.0
        %1044 = vmatpush1.msra.mxu0 0.0
        %1045 = vmatprep.subr.mxu0 0.0
        %1046 = vmatpush1.msra.mxu0 0.0
        %1047 = vmatprep.subr.mxu0 0.0
        %1048 = vmatpush1.msra.mxu0 0.0
        %1049 = vmatprep.subr.mxu0 0.0
        %1050 = vmatpush1.msra.mxu0 0.0
        %1051 = vmatprep.subr.mxu0 0.0
        %1052 = vmatpush1.msra.mxu0 0.0
        %1053 = vmatprep.subr.mxu0 0.0
        %1054 = vmatpush1.msra.mxu0 0.0
        %1055 = vmatprep.subr.mxu0 0.0
        %1056 = vmatpush1.msra.mxu0 0.0
        %1057 = vmatprep.subr.mxu0 0.0
        %1058 = vmatpush1.msra.mxu0 0.0
        %1059 = vmatprep.mubr.f32.mxu0 0.0
        %1060 = vmatmul.mubr.f32.gmra.mrb[0].mxu0 %v993
        %v1061 = vpop.f32.mrb[0].mxu0
        %v1062 = vadd.f32 0.0, %v1061
        %v1063 = vpop.f32.mrb[0].mxu0
        %1064 = vdwg.mxu0
        %1066 = vrot.lane.b32.xlu0 %v1062, 8
        %v1067 = vpop.permute.xlu0 %1066
        %vm1069 = vcmask 130112
        %1070 = vst.msk [vmem:[#allocation2] sm:$0xff] %vm1069, %v1067
        %1071 = vrot.lane.b32.xlu0 %v732, 112
        %v1072 = vpop.permute.xlu0 %1071
        %1073 = vrot.lane.b32.xlu0 %v729, 80
        %v1074 = vpop.permute.xlu0 %1073
        %v1075 = vsel %vm736, %v1072, 0
        %v1077 = vsel %vm736, %v1074, 0
        %1079 = vmatprep.subr.mxu0 0.0
        %1080 = vmatpush1.xpose.msra.mxu0 %v1077
        %1081 = vmatprep.subr.mxu0 0.0
        %1082 = vmatpush1.xpose.msra.mxu0 0.0
        %1083 = vmatprep.subr.mxu0 0.0
        %1084 = vmatpush1.xpose.msra.mxu0 0.0
        %1085 = vmatprep.subr.mxu0 0.0
        %1086 = vmatpush1.xpose.msra.mxu0 0.0
        %1087 = vmatprep.subr.mxu0 0.0
        %1088 = vmatpush1.xpose.msra.mxu0 0.0
        %1089 = vmatprep.subr.mxu0 0.0
        %1090 = vmatpush1.xpose.msra.mxu0 0.0
        %1091 = vmatprep.subr.mxu0 0.0
        %1092 = vmatpush1.xpose.msra.mxu0 0.0
        %1093 = vmatprep.subr.mxu0 0.0
        %1094 = vmatpush1.xpose.msra.mxu0 0.0
        %1095 = vmatprep.subr.mxu0 0.0
        %1096 = vmatpush1.xpose.msra.mxu0 0.0
        %1097 = vmatprep.subr.mxu0 0.0
        %1098 = vmatpush1.xpose.msra.mxu0 0.0
        %1099 = vmatprep.subr.mxu0 0.0
        %1100 = vmatpush1.xpose.msra.mxu0 0.0
        %1101 = vmatprep.subr.mxu0 0.0
        %1102 = vmatpush1.xpose.msra.mxu0 0.0
        %1103 = vmatprep.subr.mxu0 0.0
        %1104 = vmatpush1.xpose.msra.mxu0 0.0
        %1105 = vmatprep.subr.mxu0 0.0
        %1106 = vmatpush1.xpose.msra.mxu0 0.0
        %1107 = vmatprep.subr.mxu0 0.0
        %1108 = vmatpush1.xpose.msra.mxu0 0.0
        %1109 = vmatprep.subr.mxu0 0.0
        %1110 = vmatpush1.xpose.msra.mxu0 0.0
        %1111 = vmatprep.subr.mxu0 0.0
        %1112 = vmatpush1.xpose.msra.mxu0 0.0
        %1113 = vmatprep.subr.mxu0 0.0
        %1114 = vmatpush1.xpose.msra.mxu0 0.0
        %1115 = vmatprep.subr.mxu0 0.0
        %1116 = vmatpush1.xpose.msra.mxu0 0.0
        %1117 = vmatprep.subr.mxu0 0.0
        %1118 = vmatpush1.xpose.msra.mxu0 0.0
        %1119 = vmatprep.subr.mxu0 0.0
        %1120 = vmatpush1.xpose.msra.mxu0 0.0
        %1121 = vmatprep.subr.mxu0 0.0
        %1122 = vmatpush1.xpose.msra.mxu0 0.0
        %1123 = vmatprep.subr.mxu0 0.0
        %1124 = vmatpush1.xpose.msra.mxu0 0.0
        %1125 = vmatprep.subr.mxu0 0.0
        %1126 = vmatpush1.xpose.msra.mxu0 0.0
        %1127 = vmatprep.subr.mxu0 0.0
        %1128 = vmatpush1.xpose.msra.mxu0 0.0
        %1129 = vmatprep.subr.mxu0 0.0
        %1130 = vmatpush1.xpose.msra.mxu0 0.0
        %1131 = vmatprep.subr.mxu0 0.0
        %1132 = vmatpush1.xpose.msra.mxu0 0.0
        %1133 = vmatprep.subr.mxu0 0.0
        %1134 = vmatpush1.xpose.msra.mxu0 0.0
        %1135 = vmatprep.subr.mxu0 0.0
        %1136 = vmatpush1.xpose.msra.mxu0 0.0
        %1137 = vmatprep.subr.mxu0 0.0
        %1138 = vmatpush1.xpose.msra.mxu0 0.0
        %1139 = vmatprep.subr.mxu0 0.0
        %1140 = vmatpush1.xpose.msra.mxu0 0.0
        %1141 = vmatprep.subr.mxu0 0.0
        %1142 = vmatpush1.xpose.msra.mxu0 0.0
        %1143 = vmatprep.mubr.f32.mxu0 0.0
        %1144 = vmatmul.mubr.f32.gmra.mrb[0].mxu0 %v1075
        %v1145 = vpop.f32.mrb[0].mxu0
        %v1146 = vadd.f32 0.0, %v1145
        %v1147 = vpop.f32.mrb[0].mxu0
        %1148 = vdwg.mxu0
        %v1149 = vsel %vm736, %v1146, -inf
        %1150 = vmax.xlane.f32.xlu0 %v1149
        %v1151 = vpop.xlane.xlu0 %1150
        %v1152 = vsub.f32 %v1146, %v1151
        %v1153 = vmul.f32 %v1152, 1.442695
        %v1154 = vpow.pop %v1153
        %v1155 = vsel %vm736, %v1154, 0.0
        %1156 = vadd.xlane.f32.xlu0 %v1155
        %v1157 = vpop.xlane.xlu0 %1156
        %v1158 = vrcp.pop %v1157
        %v1159 = vmul.f32 %v1154, %v1158
        %1160 = vrot.lane.b32.xlu0 %v729, 48
        %v1161 = vpop.permute.xlu0 %1160
        %v1164 = vsel %vm736, %v1159, 0
        %1166 = vmatprep.subr.mxu0 0.0
        %1167 = vmatpush1.msra.mxu0 %v1161
        %1168 = vmatprep.subr.mxu0 0.0
        %1169 = vmatpush1.msra.mxu0 0.0
        %1170 = vmatprep.subr.mxu0 0.0
        %1171 = vmatpush1.msra.mxu0 0.0
        %1172 = vmatprep.subr.mxu0 0.0
        %1173 = vmatpush1.msra.mxu0 0.0
        %1174 = vmatprep.subr.mxu0 0.0
        %1175 = vmatpush1.msra.mxu0 0.0
        %1176 = vmatprep.subr.mxu0 0.0
        %1177 = vmatpush1.msra.mxu0 0.0
        %1178 = vmatprep.subr.mxu0 0.0
        %1179 = vmatpush1.msra.mxu0 0.0
        %1180 = vmatprep.subr.mxu0 0.0
        %1181 = vmatpush1.msra.mxu0 0.0
        %1182 = vmatprep.subr.mxu0 0.0
        %1183 = vmatpush1.msra.mxu0 0.0
        %1184 = vmatprep.subr.mxu0 0.0
        %1185 = vmatpush1.msra.mxu0 0.0
        %1186 = vmatprep.subr.mxu0 0.0
        %1187 = vmatpush1.msra.mxu0 0.0
        %1188 = vmatprep.subr.mxu0 0.0
        %1189 = vmatpush1.msra.mxu0 0.0
        %1190 = vmatprep.subr.mxu0 0.0
        %1191 = vmatpush1.msra.mxu0 0.0
        %1192 = vmatprep.subr.mxu0 0.0
        %1193 = vmatpush1.msra.mxu0 0.0
        %1194 = vmatprep.subr.mxu0 0.0
        %1195 = vmatpush1.msra.mxu0 0.0
        %1196 = vmatprep.subr.mxu0 0.0
        %1197 = vmatpush1.msra.mxu0 0.0
        %1198 = vmatprep.subr.mxu0 0.0
        %1199 = vmatpush1.msra.mxu0 0.0
        %1200 = vmatprep.subr.mxu0 0.0
        %1201 = vmatpush1.msra.mxu0 0.0
        %1202 = vmatprep.subr.mxu0 0.0
        %1203 = vmatpush1.msra.mxu0 0.0
        %1204 = vmatprep.subr.mxu0 0.0
        %1205 = vmatpush1.msra.mxu0 0.0
        %1206 = vmatprep.subr.mxu0 0.0
        %1207 = vmatpush1.msra.mxu0 0.0
        %1208 = vmatprep.subr.mxu0 0.0
        %1209 = vmatpush1.msra.mxu0 0.0
        %1210 = vmatprep.subr.mxu0 0.0
        %1211 = vmatpush1.msra.mxu0 0.0
        %1212 = vmatprep.subr.mxu0 0.0
        %1213 = vmatpush1.msra.mxu0 0.0
        %1214 = vmatprep.subr.mxu0 0.0
        %1215 = vmatpush1.msra.mxu0 0.0
        %1216 = vmatprep.subr.mxu0 0.0
        %1217 = vmatpush1.msra.mxu0 0.0
        %1218 = vmatprep.subr.mxu0 0.0
        %1219 = vmatpush1.msra.mxu0 0.0
        %1220 = vmatprep.subr.mxu0 0.0
        %1221 = vmatpush1.msra.mxu0 0.0
        %1222 = vmatprep.subr.mxu0 0.0
        %1223 = vmatpush1.msra.mxu0 0.0
        %1224 = vmatprep.subr.mxu0 0.0
        %1225 = vmatpush1.msra.mxu0 0.0
        %1226 = vmatprep.subr.mxu0 0.0
        %1227 = vmatpush1.msra.mxu0 0.0
        %1228 = vmatprep.subr.mxu0 0.0
        %1229 = vmatpush1.msra.mxu0 0.0
        %1230 = vmatprep.mubr.f32.mxu0 0.0
        %1231 = vmatmul.mubr.f32.gmra.mrb[0].mxu0 %v1164
        %v1232 = vpop.f32.mrb[0].mxu0
        %v1233 = vadd.f32 0.0, %v1232
        %v1234 = vpop.f32.mrb[0].mxu0
        %1235 = vdwg.mxu0
        %1237 = vrot.lane.b32.xlu0 %v1233, 16
        %v1238 = vpop.permute.xlu0 %1237
        %vm1240 = vcmask 195712
        %1241 = vst.msk [vmem:[#allocation2] sm:$0xff] %vm1240, %v1238
        %1242 = vrot.lane.b32.xlu0 %v732, 104
        %v1243 = vpop.permute.xlu0 %1242
        %1244 = vrot.lane.b32.xlu0 %v729, 72
        %v1245 = vpop.permute.xlu0 %1244
        %v1246 = vsel %vm736, %v1243, 0
        %v1248 = vsel %vm736, %v1245, 0
        %1250 = vmatprep.subr.mxu0 0.0
        %1251 = vmatpush1.xpose.msra.mxu0 %v1248
        %1252 = vmatprep.subr.mxu0 0.0
        %1253 = vmatpush1.xpose.msra.mxu0 0.0
        %1254 = vmatprep.subr.mxu0 0.0
        %1255 = vmatpush1.xpose.msra.mxu0 0.0
        %1256 = vmatprep.subr.mxu0 0.0
        %1257 = vmatpush1.xpose.msra.mxu0 0.0
        %1258 = vmatprep.subr.mxu0 0.0
        %1259 = vmatpush1.xpose.msra.mxu0 0.0
        %1260 = vmatprep.subr.mxu0 0.0
        %1261 = vmatpush1.xpose.msra.mxu0 0.0
        %1262 = vmatprep.subr.mxu0 0.0
        %1263 = vmatpush1.xpose.msra.mxu0 0.0
        %1264 = vmatprep.subr.mxu0 0.0
        %1265 = vmatpush1.xpose.msra.mxu0 0.0
        %1266 = vmatprep.subr.mxu0 0.0
        %1267 = vmatpush1.xpose.msra.mxu0 0.0
        %1268 = vmatprep.subr.mxu0 0.0
        %1269 = vmatpush1.xpose.msra.mxu0 0.0
        %1270 = vmatprep.subr.mxu0 0.0
        %1271 = vmatpush1.xpose.msra.mxu0 0.0
        %1272 = vmatprep.subr.mxu0 0.0
        %1273 = vmatpush1.xpose.msra.mxu0 0.0
        %1274 = vmatprep.subr.mxu0 0.0
        %1275 = vmatpush1.xpose.msra.mxu0 0.0
        %1276 = vmatprep.subr.mxu0 0.0
        %1277 = vmatpush1.xpose.msra.mxu0 0.0
        %1278 = vmatprep.subr.mxu0 0.0
        %1279 = vmatpush1.xpose.msra.mxu0 0.0
        %1280 = vmatprep.subr.mxu0 0.0
        %1281 = vmatpush1.xpose.msra.mxu0 0.0
        %1282 = vmatprep.subr.mxu0 0.0
        %1283 = vmatpush1.xpose.msra.mxu0 0.0
        %1284 = vmatprep.subr.mxu0 0.0
        %1285 = vmatpush1.xpose.msra.mxu0 0.0
        %1286 = vmatprep.subr.mxu0 0.0
        %1287 = vmatpush1.xpose.msra.mxu0 0.0
        %1288 = vmatprep.subr.mxu0 0.0
        %1289 = vmatpush1.xpose.msra.mxu0 0.0
        %1290 = vmatprep.subr.mxu0 0.0
        %1291 = vmatpush1.xpose.msra.mxu0 0.0
        %1292 = vmatprep.subr.mxu0 0.0
        %1293 = vmatpush1.xpose.msra.mxu0 0.0
        %1294 = vmatprep.subr.mxu0 0.0
        %1295 = vmatpush1.xpose.msra.mxu0 0.0
        %1296 = vmatprep.subr.mxu0 0.0
        %1297 = vmatpush1.xpose.msra.mxu0 0.0
        %1298 = vmatprep.subr.mxu0 0.0
        %1299 = vmatpush1.xpose.msra.mxu0 0.0
        %1300 = vmatprep.subr.mxu0 0.0
        %1301 = vmatpush1.xpose.msra.mxu0 0.0
        %1302 = vmatprep.subr.mxu0 0.0
        %1303 = vmatpush1.xpose.msra.mxu0 0.0
        %1304 = vmatprep.subr.mxu0 0.0
        %1305 = vmatpush1.xpose.msra.mxu0 0.0
        %1306 = vmatprep.subr.mxu0 0.0
        %1307 = vmatpush1.xpose.msra.mxu0 0.0
        %1308 = vmatprep.subr.mxu0 0.0
        %1309 = vmatpush1.xpose.msra.mxu0 0.0
        %1310 = vmatprep.subr.mxu0 0.0
        %1311 = vmatpush1.xpose.msra.mxu0 0.0
        %1312 = vmatprep.subr.mxu0 0.0
        %1313 = vmatpush1.xpose.msra.mxu0 0.0
        %1314 = vmatprep.mubr.f32.mxu0 0.0
        %1315 = vmatmul.mubr.f32.gmra.mrb[0].mxu0 %v1246
        %v1316 = vpop.f32.mrb[0].mxu0
        %v1317 = vadd.f32 0.0, %v1316
        %v1318 = vpop.f32.mrb[0].mxu0
        %1319 = vdwg.mxu0
        %v1320 = vsel %vm736, %v1317, -inf
        %1321 = vmax.xlane.f32.xlu0 %v1320
        %v1322 = vpop.xlane.xlu0 %1321
        %v1323 = vsub.f32 %v1317, %v1322
        %v1324 = vmul.f32 %v1323, 1.442695
        %v1325 = vpow.pop %v1324
        %v1326 = vsel %vm736, %v1325, 0.0
        %1327 = vadd.xlane.f32.xlu0 %v1326
        %v1328 = vpop.xlane.xlu0 %1327
        %v1329 = vrcp.pop %v1328
        %v1330 = vmul.f32 %v1325, %v1329
        %1331 = vrot.lane.b32.xlu0 %v729, 40
        %v1332 = vpop.permute.xlu0 %1331
        %v1335 = vsel %vm736, %v1330, 0
        %1337 = vmatprep.subr.mxu0 0.0
        %1338 = vmatpush1.msra.mxu0 %v1332
        %1339 = vmatprep.subr.mxu0 0.0
        %1340 = vmatpush1.msra.mxu0 0.0
        %1341 = vmatprep.subr.mxu0 0.0
        %1342 = vmatpush1.msra.mxu0 0.0
        %1343 = vmatprep.subr.mxu0 0.0
        %1344 = vmatpush1.msra.mxu0 0.0
        %1345 = vmatprep.subr.mxu0 0.0
        %1346 = vmatpush1.msra.mxu0 0.0
        %1347 = vmatprep.subr.mxu0 0.0
        %1348 = vmatpush1.msra.mxu0 0.0
        %1349 = vmatprep.subr.mxu0 0.0
        %1350 = vmatpush1.msra.mxu0 0.0
        %1351 = vmatprep.subr.mxu0 0.0
        %1352 = vmatpush1.msra.mxu0 0.0
        %1353 = vmatprep.subr.mxu0 0.0
        %1354 = vmatpush1.msra.mxu0 0.0
        %1355 = vmatprep.subr.mxu0 0.0
        %1356 = vmatpush1.msra.mxu0 0.0
        %1357 = vmatprep.subr.mxu0 0.0
        %1358 = vmatpush1.msra.mxu0 0.0
        %1359 = vmatprep.subr.mxu0 0.0
        %1360 = vmatpush1.msra.mxu0 0.0
        %1361 = vmatprep.subr.mxu0 0.0
        %1362 = vmatpush1.msra.mxu0 0.0
        %1363 = vmatprep.subr.mxu0 0.0
        %1364 = vmatpush1.msra.mxu0 0.0
        %1365 = vmatprep.subr.mxu0 0.0
        %1366 = vmatpush1.msra.mxu0 0.0
        %1367 = vmatprep.subr.mxu0 0.0
        %1368 = vmatpush1.msra.mxu0 0.0
        %1369 = vmatprep.subr.mxu0 0.0
        %1370 = vmatpush1.msra.mxu0 0.0
        %1371 = vmatprep.subr.mxu0 0.0
        %1372 = vmatpush1.msra.mxu0 0.0
        %1373 = vmatprep.subr.mxu0 0.0
        %1374 = vmatpush1.msra.mxu0 0.0
        %1375 = vmatprep.subr.mxu0 0.0
        %1376 = vmatpush1.msra.mxu0 0.0
        %1377 = vmatprep.subr.mxu0 0.0
        %1378 = vmatpush1.msra.mxu0 0.0
        %1379 = vmatprep.subr.mxu0 0.0
        %1380 = vmatpush1.msra.mxu0 0.0
        %1381 = vmatprep.subr.mxu0 0.0
        %1382 = vmatpush1.msra.mxu0 0.0
        %1383 = vmatprep.subr.mxu0 0.0
        %1384 = vmatpush1.msra.mxu0 0.0
        %1385 = vmatprep.subr.mxu0 0.0
        %1386 = vmatpush1.msra.mxu0 0.0
        %1387 = vmatprep.subr.mxu0 0.0
        %1388 = vmatpush1.msra.mxu0 0.0
        %1389 = vmatprep.subr.mxu0 0.0
        %1390 = vmatpush1.msra.mxu0 0.0
        %1391 = vmatprep.subr.mxu0 0.0
        %1392 = vmatpush1.msra.mxu0 0.0
        %1393 = vmatprep.subr.mxu0 0.0
        %1394 = vmatpush1.msra.mxu0 0.0
        %1395 = vmatprep.subr.mxu0 0.0
        %1396 = vmatpush1.msra.mxu0 0.0
        %1397 = vmatprep.subr.mxu0 0.0
        %1398 = vmatpush1.msra.mxu0 0.0
        %1399 = vmatprep.subr.mxu0 0.0
        %1400 = vmatpush1.msra.mxu0 0.0
        %1401 = vmatprep.mubr.f32.mxu0 0.0
        %1402 = vmatmul.mubr.f32.gmra.mrb[0].mxu0 %v1335
        %v1403 = vpop.f32.mrb[0].mxu0
        %v1404 = vadd.f32 0.0, %v1403
        %v1405 = vpop.f32.mrb[0].mxu0
        %1406 = vdwg.mxu0
        %1408 = vrot.lane.b32.xlu0 %v1404, 24
        %v1409 = vpop.permute.xlu0 %1408
        %vm1411 = vcmask 261312
        %1412 = vst.msk [vmem:[#allocation2] sm:$0xff] %vm1411, %v1409
        %v1413 = vld [vmem:[#allocation2] sm:$0xff]
        %v1414 = vld [vmem:[#allocation12] sm:$0xff]
        %v1415 = vld [vmem:[#allocation12 + $0x8] sm:$0xff]
        %v1416 = vld [vmem:[#allocation12 + $0x10] sm:$0xff]
        %v1417 = vld [vmem:[#allocation12 + $0x18] sm:$0xff]
        %v1418 = vld [vmem:[#allocation14] sm:$0x1]
        %v1420 = vlaneseq
        %v1421 = vshrl.u32 %v1420, 7
        %v1422 = vsub.s32 0, %v1421
        %v1423 = vrot.slane %v1418, %v1422
        %v1426 = vsel %vm617, %v1413, 0
        %1428 = vmatprep.subr.mxu0 0.0
        %1429 = vmatpush1.msra.mxu0 %v1414
        %1430 = vmatprep.subr.mxu0 0.0
        %1431 = vmatpush1.msra.mxu0 %v1415
        %1432 = vmatprep.subr.mxu0 0.0
        %1433 = vmatpush1.msra.mxu0 %v1416
        %1434 = vmatprep.subr.mxu0 0.0
        %1435 = vmatpush1.msra.mxu0 %v1417
        %1436 = vmatprep.subr.mxu0 0.0
        %1437 = vmatpush1.msra.mxu0 0.0
        %1438 = vmatprep.subr.mxu0 0.0
        %1439 = vmatpush1.msra.mxu0 0.0
        %1440 = vmatprep.subr.mxu0 0.0
        %1441 = vmatpush1.msra.mxu0 0.0
        %1442 = vmatprep.subr.mxu0 0.0
        %1443 = vmatpush1.msra.mxu0 0.0
        %1444 = vmatprep.subr.mxu0 0.0
        %1445 = vmatpush1.msra.mxu0 0.0
        %1446 = vmatprep.subr.mxu0 0.0
        %1447 = vmatpush1.msra.mxu0 0.0
        %1448 = vmatprep.subr.mxu0 0.0
        %1449 = vmatpush1.msra.mxu0 0.0
        %1450 = vmatprep.subr.mxu0 0.0
        %1451 = vmatpush1.msra.mxu0 0.0
        %1452 = vmatprep.subr.mxu0 0.0
        %1453 = vmatpush1.msra.mxu0 0.0
        %1454 = vmatprep.subr.mxu0 0.0
        %1455 = vmatpush1.msra.mxu0 0.0
        %1456 = vmatprep.subr.mxu0 0.0
        %1457 = vmatpush1.msra.mxu0 0.0
        %1458 = vmatprep.subr.mxu0 0.0
        %1459 = vmatpush1.msra.mxu0 0.0
        %1460 = vmatprep.subr.mxu0 0.0
        %1461 = vmatpush1.msra.mxu0 0.0
        %1462 = vmatprep.subr.mxu0 0.0
        %1463 = vmatpush1.msra.mxu0 0.0
        %1464 = vmatprep.subr.mxu0 0.0
        %1465 = vmatpush1.msra.mxu0 0.0
        %1466 = vmatprep.subr.mxu0 0.0
        %1467 = vmatpush1.msra.mxu0 0.0
        %1468 = vmatprep.subr.mxu0 0.0
        %1469 = vmatpush1.msra.mxu0 0.0
        %1470 = vmatprep.subr.mxu0 0.0
        %1471 = vmatpush1.msra.mxu0 0.0
        %1472 = vmatprep.subr.mxu0 0.0
        %1473 = vmatpush1.msra.mxu0 0.0
        %1474 = vmatprep.subr.mxu0 0.0
        %1475 = vmatpush1.msra.mxu0 0.0
        %1476 = vmatprep.subr.mxu0 0.0
        %1477 = vmatpush1.msra.mxu0 0.0
        %1478 = vmatprep.subr.mxu0 0.0
        %1479 = vmatpush1.msra.mxu0 0.0
        %1480 = vmatprep.subr.mxu0 0.0
        %1481 = vmatpush1.msra.mxu0 0.0
        %1482 = vmatprep.subr.mxu0 0.0
        %1483 = vmatpush1.msra.mxu0 0.0
        %1484 = vmatprep.subr.mxu0 0.0
        %1485 = vmatpush1.msra.mxu0 0.0
        %1486 = vmatprep.subr.mxu0 0.0
        %1487 = vmatpush1.msra.mxu0 0.0
        %1488 = vmatprep.subr.mxu0 0.0
        %1489 = vmatpush1.msra.mxu0 0.0
        %1490 = vmatprep.subr.mxu0 0.0
        %1491 = vmatpush1.msra.mxu0 0.0
        %1492 = vmatprep.mubr.f32.mxu0 0.0
        %1493 = vmatmul.mubr.f32.gmra.mrb[0].mxu0 %v1426
        %v1494 = vpop.f32.mrb[0].mxu0
        %v1495 = vadd.f32 %v1423, %v1494
        %v1496 = vpop.f32.mrb[0].mxu0
        %1497 = vdwg.mxu0
        %v1498 = vadd.f32 %v614, %v1495
        %v1499 = vld [vmem:[#allocation15] sm:$0x1]
        %v1500 = vld [vmem:[#allocation17] sm:$0x1]
        %v1501 = vsel %vm617, %v1498, 0.0
        %1502 = vadd.xlane.f32.xlu0 %v1501
        %v1503 = vpop.xlane.xlu0 %1502
        %v1504 = vmul.f32 %v1503, %v621
        %v1505 = vmul.f32 %v1498, %v1498
        %v1506 = vsel %vm617, %v1505, 0.0
        %1507 = vadd.xlane.f32.xlu0 %v1506
        %v1508 = vpop.xlane.xlu0 %1507
        %v1509 = vmul.f32 %v1508, %v621
        %v1510 = vmul.f32 %v1504, %v1504
        %v1511 = vsub.f32 %v1509, %v1510
        %v1512 = vsub.f32 %v1498, %v1504
        %v1513 = vadd.f32 %v1511, 1e-05
        %v1514 = vrsqrt.pop %v1513
        %v1515 = vmul.f32 %v1512, %v1514
        %v1517 = vlaneseq
        %v1518 = vshrl.u32 %v1517, 7
        %v1519 = vsub.s32 0, %v1518
        %v1520 = vrot.slane %v1499, %v1519
        %v1522 = vmul.f32 %v1515, %v1520
        %v1524 = vlaneseq
        %v1525 = vshrl.u32 %v1524, 7
        %v1526 = vsub.s32 0, %v1525
        %v1527 = vrot.slane %v1500, %v1526
        %v1529 = vadd.f32 %v1522, %v1527
        %v1530 = vld [vmem:[#allocation18] sm:$0xff]
        %v1531 = vld [vmem:[#allocation18 + $0x8] sm:$0xff]
        %v1532 = vld [vmem:[#allocation18 + $0x10] sm:$0xff]
        %v1533 = vld [vmem:[#allocation18 + $0x18] sm:$0xff]
        %v1534 = vld [vmem:[#allocation20] sm:$0x1]
        %v1536 = vlaneseq
        %v1537 = vshrl.u32 %v1536, 7
        %v1538 = vsub.s32 0, %v1537
        %v1539 = vrot.slane %v1534, %v1538
        %v1542 = vsel %vm617, %v1529, 0
        %1544 = vmatprep.subr.mxu0 0.0
        %1545 = vmatpush1.msra.mxu0 %v1530
        %1546 = vmatprep.subr.mxu0 0.0
        %1547 = vmatpush1.msra.mxu0 %v1531
        %1548 = vmatprep.subr.mxu0 0.0
        %1549 = vmatpush1.msra.mxu0 %v1532
        %1550 = vmatprep.subr.mxu0 0.0
        %1551 = vmatpush1.msra.mxu0 %v1533
        %1552 = vmatprep.subr.mxu0 0.0
        %1553 = vmatpush1.msra.mxu0 0.0
        %1554 = vmatprep.subr.mxu0 0.0
        %1555 = vmatpush1.msra.mxu0 0.0
        %1556 = vmatprep.subr.mxu0 0.0
        %1557 = vmatpush1.msra.mxu0 0.0
        %1558 = vmatprep.subr.mxu0 0.0
        %1559 = vmatpush1.msra.mxu0 0.0
        %1560 = vmatprep.subr.mxu0 0.0
        %1561 = vmatpush1.msra.mxu0 0.0
        %1562 = vmatprep.subr.mxu0 0.0
        %1563 = vmatpush1.msra.mxu0 0.0
        %1564 = vmatprep.subr.mxu0 0.0
        %1565 = vmatpush1.msra.mxu0 0.0
        %1566 = vmatprep.subr.mxu0 0.0
        %1567 = vmatpush1.msra.mxu0 0.0
        %1568 = vmatprep.subr.mxu0 0.0
        %1569 = vmatpush1.msra.mxu0 0.0
        %1570 = vmatprep.subr.mxu0 0.0
        %1571 = vmatpush1.msra.mxu0 0.0
        %1572 = vmatprep.subr.mxu0 0.0
        %1573 = vmatpush1.msra.mxu0 0.0
        %1574 = vmatprep.subr.mxu0 0.0
        %1575 = vmatpush1.msra.mxu0 0.0
        %1576 = vmatprep.subr.mxu0 0.0
        %1577 = vmatpush1.msra.mxu0 0.0
        %1578 = vmatprep.subr.mxu0 0.0
        %1579 = vmatpush1.msra.mxu0 0.0
        %1580 = vmatprep.subr.mxu0 0.0
        %1581 = vmatpush1.msra.mxu0 0.0
        %1582 = vmatprep.subr.mxu0 0.0
        %1583 = vmatpush1.msra.mxu0 0.0
        %1584 = vmatprep.subr.mxu0 0.0
        %1585 = vmatpush1.msra.mxu0 0.0
        %1586 = vmatprep.subr.mxu0 0.0
        %1587 = vmatpush1.msra.mxu0 0.0
        %1588 = vmatprep.subr.mxu0 0.0
        %1589 = vmatpush1.msra.mxu0 0.0
        %1590 = vmatprep.subr.mxu0 0.0
        %1591 = vmatpush1.msra.mxu0 0.0
        %1592 = vmatprep.subr.mxu0 0.0
        %1593 = vmatpush1.msra.mxu0 0.0
        %1594 = vmatprep.subr.mxu0 0.0
        %1595 = vmatpush1.msra.mxu0 0.0
        %1596 = vmatprep.subr.mxu0 0.0
        %1597 = vmatpush1.msra.mxu0 0.0
        %1598 = vmatprep.subr.mxu0 0.0
        %1599 = vmatpush1.msra.mxu0 0.0
        %1600 = vmatprep.subr.mxu0 0.0
        %1601 = vmatpush1.msra.mxu0 0.0
        %1602 = vmatprep.subr.mxu0 0.0
        %1603 = vmatpush1.msra.mxu0 0.0
        %1604 = vmatprep.subr.mxu0 0.0
        %1605 = vmatpush1.msra.mxu0 0.0
        %1606 = vmatprep.subr.mxu0 0.0
        %1607 = vmatpush1.msra.mxu0 0.0
        %1608 = vmatprep.mubr.f32.mxu0 0.0
        %1609 = vmatmul.mubr.f32.gmra.mrb[0].mxu0 %v1542
        %v1610 = vpop.f32.mrb[0].mxu0
        %v1611 = vadd.f32 %v1539, %v1610
        %v1612 = vpop.f32.mrb[0].mxu0
        %1613 = vdwg.mxu0
        %vm1614 = vcmp.gt.f32.partialorder %v1611, 0.0
        %v1615 = vmul.f32 %v1611, 0.01
        %v1616 = vsel %vm1614, %v1611, %v1615
        %v1617 = vld [vmem:[#allocation21] sm:$0xff]
        %v1618 = vld [vmem:[#allocation21 + $0x8] sm:$0xff]
        %v1619 = vld [vmem:[#allocation21 + $0x10] sm:$0xff]
        %v1620 = vld [vmem:[#allocation21 + $0x18] sm:$0xff]
        %v1621 = vld [vmem:[#allocation21 + $0x20] sm:$0xff]
        %v1622 = vld [vmem:[#allocation21 + $0x28] sm:$0xff]
        %v1623 = vld [vmem:[#allocation21 + $0x30] sm:$0xff]
        %v1624 = vld [vmem:[#allocation21 + $0x38] sm:$0xff]
        %v1625 = vld [vmem:[#allocation21 + $0x40] sm:$0xff]
        %v1626 = vld [vmem:[#allocation21 + $0x48] sm:$0xff]
        %v1627 = vld [vmem:[#allocation21 + $0x50] sm:$0xff]
        %v1628 = vld [vmem:[#allocation21 + $0x58] sm:$0xff]
        %v1629 = vld [vmem:[#allocation21 + $0x60] sm:$0xff]
        %v1630 = vld [vmem:[#allocation21 + $0x68] sm:$0xff]
        %v1631 = vld [vmem:[#allocation21 + $0x70] sm:$0xff]
        %v1632 = vld [vmem:[#allocation21 + $0x78] sm:$0xff]
        %v1633 = vld [vmem:[#allocation23] sm:$0x1]
        %v1635 = vlaneseq
        %v1636 = vshrl.u32 %v1635, 7
        %v1637 = vsub.s32 0, %v1636
        %v1638 = vrot.slane %v1633, %v1637
        %1640 = vmatprep.subr.mxu0 0.0
        %1641 = vmatpush1.msra.mxu0 %v1617
        %1642 = vmatprep.subr.mxu0 0.0
        %1643 = vmatpush1.msra.mxu0 %v1618
        %1644 = vmatprep.subr.mxu0 0.0
        %1645 = vmatpush1.msra.mxu0 %v1619
        %1646 = vmatprep.subr.mxu0 0.0
        %1647 = vmatpush1.msra.mxu0 %v1620
        %1648 = vmatprep.subr.mxu0 0.0
        %1649 = vmatpush1.msra.mxu0 %v1621
        %1650 = vmatprep.subr.mxu0 0.0
        %1651 = vmatpush1.msra.mxu0 %v1622
        %1652 = vmatprep.subr.mxu0 0.0
        %1653 = vmatpush1.msra.mxu0 %v1623
        %1654 = vmatprep.subr.mxu0 0.0
        %1655 = vmatpush1.msra.mxu0 %v1624
        %1656 = vmatprep.subr.mxu0 0.0
        %1657 = vmatpush1.msra.mxu0 %v1625
        %1658 = vmatprep.subr.mxu0 0.0
        %1659 = vmatpush1.msra.mxu0 %v1626
        %1660 = vmatprep.subr.mxu0 0.0
        %1661 = vmatpush1.msra.mxu0 %v1627
        %1662 = vmatprep.subr.mxu0 0.0
        %1663 = vmatpush1.msra.mxu0 %v1628
        %1664 = vmatprep.subr.mxu0 0.0
        %1665 = vmatpush1.msra.mxu0 %v1629
        %1666 = vmatprep.subr.mxu0 0.0
        %1667 = vmatpush1.msra.mxu0 %v1630
        %1668 = vmatprep.subr.mxu0 0.0
        %1669 = vmatpush1.msra.mxu0 %v1631
        %1670 = vmatprep.subr.mxu0 0.0
        %1671 = vmatpush1.msra.mxu0 %v1632
        %1672 = vmatprep.subr.mxu0 0.0
        %1673 = vmatpush1.msra.mxu0 0.0
        %1674 = vmatprep.subr.mxu0 0.0
        %1675 = vmatpush1.msra.mxu0 0.0
        %1676 = vmatprep.subr.mxu0 0.0
        %1677 = vmatpush1.msra.mxu0 0.0
        %1678 = vmatprep.subr.mxu0 0.0
        %1679 = vmatpush1.msra.mxu0 0.0
        %1680 = vmatprep.subr.mxu0 0.0
        %1681 = vmatpush1.msra.mxu0 0.0
        %1682 = vmatprep.subr.mxu0 0.0
        %1683 = vmatpush1.msra.mxu0 0.0
        %1684 = vmatprep.subr.mxu0 0.0
        %1685 = vmatpush1.msra.mxu0 0.0
        %1686 = vmatprep.subr.mxu0 0.0
        %1687 = vmatpush1.msra.mxu0 0.0
        %1688 = vmatprep.subr.mxu0 0.0
        %1689 = vmatpush1.msra.mxu0 0.0
        %1690 = vmatprep.subr.mxu0 0.0
        %1691 = vmatpush1.msra.mxu0 0.0
        %1692 = vmatprep.subr.mxu0 0.0
        %1693 = vmatpush1.msra.mxu0 0.0
        %1694 = vmatprep.subr.mxu0 0.0
        %1695 = vmatpush1.msra.mxu0 0.0
        %1696 = vmatprep.subr.mxu0 0.0
        %1697 = vmatpush1.msra.mxu0 0.0
        %1698 = vmatprep.subr.mxu0 0.0
        %1699 = vmatpush1.msra.mxu0 0.0
        %1700 = vmatprep.subr.mxu0 0.0
        %1701 = vmatpush1.msra.mxu0 0.0
        %1702 = vmatprep.subr.mxu0 0.0
        %1703 = vmatpush1.msra.mxu0 0.0
        %1704 = vmatprep.mubr.f32.mxu0 0.0
        %1705 = vmatmul.mubr.f32.gmra.mrb[0].mxu0 %v1616
        %v1706 = vpop.f32.mrb[0].mxu0
        %v1707 = vadd.f32 %v1638, %v1706
        %v1708 = vpop.f32.mrb[0].mxu0
        %1709 = vdwg.mxu0
        %v1710 = vadd.f32 %v1498, %v1707
        %1711 = vst.msk [vmem:[%s613] sm:$0xff] %vm617, %v1710
        %s1712 = sand.u32 %s322, 1
        %s1713 = scalar_lea.sflag [#allocation5], %s1712
        %s1714 = sand.u32 %s322, 1
        %s1715 = smul.addr %s1714, 8
        %s1716 = scalar_lea.vmem [#allocation24], %s1715
        // Predicated region
        $region125: #{tpu_custom_call.1} parent=71 // pred_check
          %p1717 = pneg %p332
        $region126: #{tpu_custom_call.1} parent=71 // pred_check_branch
          %1719 = sbr.rel (%p1717) target = $region128
        $region127: #{tpu_custom_call.1} parent=71 // pred_region
          %s1721 = ssub.s32 128, 128
          %1722 = vsyncadd %s1713, %s1721
          %s1723 = smul.addr %s36, 128
          %s1724 = scalar_lea.hbm %s13, %s1723
          %s1726 = sshll.u32 %s1716, 4
          %s1727 = int_to_ptr.vmem [resolvable:$true] %s1726
          %1729 = dma.vmem_to_hbm [thread:$0]  %s1727, 128, %s1724, %s1713
        $region128: #{tpu_custom_call.1} parent=71 // pred_fallthru
          _
      $region72: #{tpu_custom_call.1} parent=5 // pred_fallthru
        _
      %p1730 = scmp.le.s32.totalorder 2, %s31
      // Predicated region
      $region129: #{tpu_custom_call.1} parent=5 // pred_check
        %p1731 = pneg %p1730
      $region130: #{tpu_custom_call.1} parent=5 // pred_check_branch
        %1733 = sbr.rel (%p1731) target = $region132
      $region131: #{tpu_custom_call.1} parent=5 // pred_region
        %s1734 = ssub.s32 %s31, 2
        // Predicated region
        $region133: #{tpu_custom_call.1} parent=131 // pred_check
          %p1735 = pneg %p338
        $region134: #{tpu_custom_call.1} parent=131 // pred_check_branch
          %1737 = sbr.rel (%p1735) target = $region136
        $region135: #{tpu_custom_call.1} parent=131 // pred_region
          %s1738 = sand.u32 %s323, 1
          %s1739 = scalar_lea.sflag [#allocation5], %s1738
          %s1740 = sand.u32 %s323, 1
          %s1741 = smul.addr %s1740, 8
          %s1742 = scalar_lea.vmem [#allocation24], %s1741
          %1743 = dma.done %s1739, 128
        $region136: #{tpu_custom_call.1} parent=131 // pred_fallthru
          _
      $region132: #{tpu_custom_call.1} parent=5 // pred_fallthru
        _
    $region6: #{tpu_custom_call.1} parent=1 // loop_footer
      %s35 = sadd.s32 1, %s31
    $region7: #{tpu_custom_call.1} parent=1 // loop_footer_branch
      %30 = sbr.rel target = $region3
    $region8: #{tpu_custom_call.1} parent=1 // loop_exit
      _
    %1744 = vsyncpa [#allocation4], 1
    %s1745 = scalar_lea.sflag [#allocation4], 1
    %1746 = vsyncpa %s1745, 1
    %1747 = vsyncpa [#allocation7], 1
    %1748 = vsyncpa [#allocation10], 1
    %1749 = vsyncpa [#allocation13], 1
    %1750 = vsyncpa [#allocation16], 1
    %1751 = vsyncpa [#allocation19], 1
    %1752 = vsyncpa [#allocation22], 1
    %1753 = vsyncpa [#allocation5], 1
    %s1754 = scalar_lea.sflag [#allocation5], 1
    %1755 = vsyncpa %s1754, 1

</llo_original>
